<compile_context>
chip_gen: v5e
topology: v5e:2x2
jax: 0.10.0
libtpu: 0.0.40
codegen_flags: <defaults>
</compile_context>

<pallas_src>
import functools
import math

import jax
import jax.numpy as jnp
from jax.experimental import pallas as pl
from jax.experimental.pallas import tpu as pltpu


def pointnet_kernel(x_ref,
                    w1, t1, w2, t2, w3, t3, w4, t4, w5, t5,
                    w6, t6, w7, b7,
                    out_ref, *, n_points):
    """One grid step = TB point clouds, channels on sublanes, points on lanes."""
    tile_points = x_ref.shape[1]                 # TB * N
    tb = tile_points // n_points

    h = x_ref[...].astype(jnp.bfloat16)          # (3, TB*N)

    # conv1..conv5 (kernel_size=1) + folded-BN shift + ReLU, bf16 activations.
    for w, t in ((w1, t1), (w2, t2), (w3, t3), (w4, t4), (w5, t5)):
        acc = jnp.dot(w[...], h, preferred_element_type=jnp.float32)
        h = jnp.maximum(acc + t[...], 0.0).astype(jnp.bfloat16)

    emb = h.shape[0]
    # adaptive_max_pool1d(x, 1): max over the N points of each cloud.
    pooled = jnp.max(h.astype(jnp.float32).reshape(emb, tb, n_points), axis=2)
    g = pooled.T.astype(jnp.bfloat16)            # (TB, emb)

    # linear1 (BN6 scale folded into w6) + shift + ReLU.
    h6 = jnp.maximum(
        jnp.dot(g, w6[...], preferred_element_type=jnp.float32) + t6[...], 0.0)
    # dp1: nn.Dropout() -> identity in inference mode.
    # linear2 (+ bias), output columns zero-padded to 128 lanes.
    out_ref[...] = (jnp.dot(h6.astype(jnp.bfloat16), w7[...],
                            preferred_element_type=jnp.float32) + b7[...])


def _choose_tb(B, N, emb, budget_bytes=24 * 1024 * 1024):
    """Pick the batch-tile size TB.

    VMEM bytes per point: f32 input block padded to 8 sublanes and
    double-buffered (8*4*2 = 64 B), bf16 activations of every layer, plus one
    f32 accumulator of the widest layer live at a time.  TB must divide B and
    keep the (3, TB*N) block and (TB, 128) output block layout-legal
    ((8,128) rule), preferring >= 2 grid steps for pipelining / 2-TC sharding.
    """
    per_point = 64 + (3 * 64 + 128 + emb) * 2 + emb * 4
    cap = max(1, budget_bytes // (per_point * N))

    aligned = [tb for tb in range(1, B + 1)
               if B % tb == 0
               and (tb % 8 == 0 or tb == B)
               and ((tb * N) % 128 == 0 or tb == B)]
    in_budget = [tb for tb in aligned if tb <= cap]
    multi_step = [tb for tb in in_budget if B // tb >= 2]
    if multi_step:
        return max(multi_step)
    if in_budget:
        return max(in_budget)
    return min(aligned)        # tb == B always satisfies the layout rules


def pointnet_forward(x_b3n, params, out_channels):
    """x_b3n: (B, 3, N) float32 point clouds (PyTorch layout). Returns (B, out)."""
    B, C, N = x_b3n.shape
    (w1, t1, w2, t2, w3, t3, w4, t4, w5, t5, w6, t6, w7, b7) = params
    emb = w5.shape[0]
    out_pad = w7.shape[-1]

    # Points-on-lanes slab: (3, B*N).  (Small transpose; no zero-pad copy.)
    x_flat = jnp.transpose(x_b3n, (1, 0, 2)).reshape(C, B * N)

    tb = _choose_tb(B, N, emb)
    grid = (B // tb,)

    param_list = [w1, t1, w2, t2, w3, t3, w4, t4, w5, t5, w6, t6, w7, b7]

    def resident(a):
        # Constant index_map: weights / BN shifts stay resident across steps.
        return pl.BlockSpec(a.shape, lambda b: (0, 0))

    out = pl.pallas_call(
        functools.partial(pointnet_kernel, n_points=N),
        out_shape=jax.ShapeDtypeStruct((B, out_pad), jnp.float32),
        grid_spec=pltpu.PrefetchScalarGridSpec(
            num_scalar_prefetch=0,
            grid=grid,
            in_specs=[pl.BlockSpec((C, tb * N), lambda b: (0, b))]
                     + [resident(p) for p in param_list],
            out_specs=pl.BlockSpec((tb, out_pad), lambda b: (b, 0)),
        ),
        compiler_params=pltpu.CompilerParams(
            dimension_semantics=("parallel",),
            vmem_limit_bytes=48 * 1024 * 1024),
    )(x_flat, *param_list)

    return out[:, :out_channels]


def init_params(key, emb_dims=128, output_channels=40, out_pad=128):
    """Synthetic parameters matching PointNet.__init__, pre-folded for the kernel.

    Conv1d(kernel_size=1) weight (Cout, Cin, 1) -> (Cout, Cin) with the
    inference-BN scale folded in (f32 fold, then bf16 cast); BN shift kept as
    f32 (Cout, 1).  linear1 weight stored as (emb, 512) with bn6 scale folded;
    linear2 stored as (512, out_pad) with zero-padded columns + padded bias.
    """
    keys = iter(jax.random.split(key, 64))

    def bn(c):
        gamma = 0.5 + jax.random.uniform(next(keys), (c,), jnp.float32)
        beta = 0.1 * jax.random.normal(next(keys), (c,), jnp.float32)
        mean = 0.1 * jax.random.normal(next(keys), (c,), jnp.float32)
        var = 0.5 + jax.random.uniform(next(keys), (c,), jnp.float32)
        scale = gamma / jnp.sqrt(var + 1e-5)
        shift = beta - mean * scale
        return scale, shift

    params = []
    conv_dims = [(3, 64), (64, 64), (64, 64), (64, 128), (128, emb_dims)]
    for cin, cout in conv_dims:
        w = jax.random.normal(next(keys), (cout, cin), jnp.float32) / math.sqrt(cin)
        scale, shift = bn(cout)
        params += [(w * scale[:, None]).astype(jnp.bfloat16),   # (Cout, Cin)
                   shift[:, None].astype(jnp.float32)]          # (Cout, 1)

    # linear1: emb -> 512 (no bias) + bn6.
    w6 = jax.random.normal(next(keys), (512, emb_dims), jnp.float32) / math.sqrt(emb_dims)
    s6, t6 = bn(512)
    params += [(w6.T * s6[None, :]).astype(jnp.bfloat16),       # (emb, 512)
               t6[None, :].astype(jnp.float32)]                 # (1, 512)

    # linear2: 512 -> output_channels (with bias), columns padded to out_pad.
    w7 = jax.random.normal(next(keys), (output_channels, 512), jnp.float32) / math.sqrt(512.0)
    b7 = 0.1 * jax.random.normal(next(keys), (output_channels,), jnp.float32)
    w7p = jnp.zeros((512, out_pad), jnp.float32).at[:, :output_channels].set(w7.T)
    b7p = jnp.zeros((1, out_pad), jnp.float32).at[:, :output_channels].set(b7[None, :])
    params += [w7p.astype(jnp.bfloat16), b7p]
    return params


def reference_forward(x_b3n, params, out_channels):
    """Plain-JAX reference of the same math (same bf16 cast / fold points)."""
    (w1, t1, w2, t2, w3, t3, w4, t4, w5, t5, w6, t6, w7, b7) = params
    B, C, N = x_b3n.shape
    h = jnp.transpose(x_b3n, (1, 0, 2)).reshape(C, B * N).astype(jnp.bfloat16)
    for w, t in ((w1, t1), (w2, t2), (w3, t3), (w4, t4), (w5, t5)):
        h = jnp.maximum(jnp.dot(w, h, preferred_element_type=jnp.float32) + t,
                        0.0).astype(jnp.bfloat16)
    emb = h.shape[0]
    pooled = jnp.max(h.astype(jnp.float32).reshape(emb, B, N), axis=2)   # (emb, B)
    g = pooled.T.astype(jnp.bfloat16)
    h6 = jnp.maximum(jnp.dot(g, w6, preferred_element_type=jnp.float32) + t6, 0.0)
    out = jnp.dot(h6.astype(jnp.bfloat16), w7,
                  preferred_element_type=jnp.float32) + b7
    return out[:, :out_channels]


if __name__ == "__main__":
    key = jax.random.PRNGKey(0)
    k_x, k_p = jax.random.split(key)

    B, N, EMB, OUT = 16, 64, 128, 40
    # PyTorch input layout: (B, 3, N).
    x = jax.random.normal(k_x, (B, 3, N), jnp.float32)
    params = init_params(k_p, emb_dims=EMB, output_channels=OUT)

    out = jax.block_until_ready(pointnet_forward(x, params, OUT))
    ref = reference_forward(x, params, OUT)

    assert out.shape == (B, OUT)
    max_err = jnp.max(jnp.abs(out - ref))
    assert jnp.allclose(out, ref, atol=2e-2, rtol=2e-2), f"max abs err {max_err}"

    print("KERNEL_OK")
</pallas_src>

<mosaic_0001>
module attributes {stable_mosaic.version = 11 : i64} {
  func.func @pointnet_kernel(%arg0: i32, %arg1: memref<3x512xf32, #tpu.memory_space<vmem>>, %arg2: memref<64x3xbf16, #tpu.memory_space<vmem>>, %arg3: memref<64x1xf32, #tpu.memory_space<vmem>>, %arg4: memref<64x64xbf16, #tpu.memory_space<vmem>>, %arg5: memref<64x1xf32, #tpu.memory_space<vmem>>, %arg6: memref<64x64xbf16, #tpu.memory_space<vmem>>, %arg7: memref<64x1xf32, #tpu.memory_space<vmem>>, %arg8: memref<128x64xbf16, #tpu.memory_space<vmem>>, %arg9: memref<128x1xf32, #tpu.memory_space<vmem>>, %arg10: memref<128x128xbf16, #tpu.memory_space<vmem>>, %arg11: memref<128x1xf32, #tpu.memory_space<vmem>>, %arg12: memref<128x512xbf16, #tpu.memory_space<vmem>>, %arg13: memref<1x512xf32, #tpu.memory_space<vmem>>, %arg14: memref<512x128xbf16, #tpu.memory_space<vmem>>, %arg15: memref<1x128xf32, #tpu.memory_space<vmem>>, %arg16: memref<8x128xf32, #tpu.memory_space<vmem>>) attributes {dimension_semantics = [#tpu.dimension_semantics<parallel>], iteration_bounds = array<i64: 2>, scalar_prefetch = 0 : i64, scratch_operands = 0 : i64, tpu.core_type = #tpu.core_type<tc>, window_params = [{transform_indices = @transform_0, window_bounds = array<i64: 3, 512>}, {pipeline_mode = #tpu.pipeline_mode<synchronous>, transform_indices = @transform_1, window_bounds = array<i64: 64, 3>}, {pipeline_mode = #tpu.pipeline_mode<synchronous>, transform_indices = @transform_2, window_bounds = array<i64: 64, 1>}, {pipeline_mode = #tpu.pipeline_mode<synchronous>, transform_indices = @transform_3, window_bounds = array<i64: 64, 64>}, {pipeline_mode = #tpu.pipeline_mode<synchronous>, transform_indices = @transform_4, window_bounds = array<i64: 64, 1>}, {pipeline_mode = #tpu.pipeline_mode<synchronous>, transform_indices = @transform_5, window_bounds = array<i64: 64, 64>}, {pipeline_mode = #tpu.pipeline_mode<synchronous>, transform_indices = @transform_6, window_bounds = array<i64: 64, 1>}, {pipeline_mode = #tpu.pipeline_mode<synchronous>, transform_indices = @transform_7, window_bounds = array<i64: 128, 64>}, {pipeline_mode = #tpu.pipeline_mode<synchronous>, transform_indices = @transform_8, window_bounds = array<i64: 128, 1>}, {pipeline_mode = #tpu.pipeline_mode<synchronous>, transform_indices = @transform_9, window_bounds = array<i64: 128, 128>}, {pipeline_mode = #tpu.pipeline_mode<synchronous>, transform_indices = @transform_10, window_bounds = array<i64: 128, 1>}, {pipeline_mode = #tpu.pipeline_mode<synchronous>, transform_indices = @transform_11, window_bounds = array<i64: 128, 512>}, {pipeline_mode = #tpu.pipeline_mode<synchronous>, transform_indices = @transform_12, window_bounds = array<i64: 1, 512>}, {pipeline_mode = #tpu.pipeline_mode<synchronous>, transform_indices = @transform_13, window_bounds = array<i64: 512, 128>}, {pipeline_mode = #tpu.pipeline_mode<synchronous>, transform_indices = @transform_14, window_bounds = array<i64: 1, 128>}, {transform_indices = @transform_15, window_bounds = array<i64: 8, 128>}]} {
    %c0 = arith.constant 0 : index
    %c0_0 = arith.constant 0 : index
    %0 = vector.load %arg1[%c0, %c0_0] : memref<3x512xf32, #tpu.memory_space<vmem>>, vector<3x512xf32>
    %1 = arith.truncf %0 : vector<3x512xf32> to vector<3x512xbf16>
    %c0_1 = arith.constant 0 : index
    %c0_2 = arith.constant 0 : index
    %2 = vector.load %arg2[%c0_1, %c0_2] : memref<64x3xbf16, #tpu.memory_space<vmem>>, vector<64x3xbf16>
    %cst = arith.constant dense<0.000000e+00> : vector<64x512xf32>
    %3 = tpu.matmul %2, %1, %cst {dimension_numbers = #tpu.dot_dimension_numbers<[1], [0], [0], [1], [0, 0, 1, 1], [], []>} : vector<64x3xbf16>, vector<3x512xbf16>, vector<64x512xf32> -> vector<64x512xf32>
    %c0_3 = arith.constant 0 : index
    %c0_4 = arith.constant 0 : index
    %4 = vector.load %arg3[%c0_3, %c0_4] : memref<64x1xf32, #tpu.memory_space<vmem>>, vector<64x1xf32>
    %5 = vector.broadcast %4 : vector<64x1xf32> to vector<64x512xf32>
    %6 = arith.addf %3, %5 : vector<64x512xf32>
    %cst_5 = arith.constant 0.000000e+00 : f32
    %7 = vector.broadcast %cst_5 : f32 to vector<64x512xf32>
    %8 = arith.maximumf %6, %7 : vector<64x512xf32>
    %9 = arith.truncf %8 : vector<64x512xf32> to vector<64x512xbf16>
    %c0_6 = arith.constant 0 : index
    %c0_7 = arith.constant 0 : index
    %10 = vector.load %arg4[%c0_6, %c0_7] : memref<64x64xbf16, #tpu.memory_space<vmem>>, vector<64x64xbf16>
    %cst_8 = arith.constant dense<0.000000e+00> : vector<64x512xf32>
    %11 = tpu.matmul %10, %9, %cst_8 {dimension_numbers = #tpu.dot_dimension_numbers<[1], [0], [0], [1], [0, 0, 1, 1], [], []>} : vector<64x64xbf16>, vector<64x512xbf16>, vector<64x512xf32> -> vector<64x512xf32>
    %c0_9 = arith.constant 0 : index
    %c0_10 = arith.constant 0 : index
    %12 = vector.load %arg5[%c0_9, %c0_10] : memref<64x1xf32, #tpu.memory_space<vmem>>, vector<64x1xf32>
    %13 = vector.broadcast %12 : vector<64x1xf32> to vector<64x512xf32>
    %14 = arith.addf %11, %13 : vector<64x512xf32>
    %cst_11 = arith.constant 0.000000e+00 : f32
    %15 = vector.broadcast %cst_11 : f32 to vector<64x512xf32>
    %16 = arith.maximumf %14, %15 : vector<64x512xf32>
    %17 = arith.truncf %16 : vector<64x512xf32> to vector<64x512xbf16>
    %c0_12 = arith.constant 0 : index
    %c0_13 = arith.constant 0 : index
    %18 = vector.load %arg6[%c0_12, %c0_13] : memref<64x64xbf16, #tpu.memory_space<vmem>>, vector<64x64xbf16>
    %cst_14 = arith.constant dense<0.000000e+00> : vector<64x512xf32>
    %19 = tpu.matmul %18, %17, %cst_14 {dimension_numbers = #tpu.dot_dimension_numbers<[1], [0], [0], [1], [0, 0, 1, 1], [], []>} : vector<64x64xbf16>, vector<64x512xbf16>, vector<64x512xf32> -> vector<64x512xf32>
    %c0_15 = arith.constant 0 : index
    %c0_16 = arith.constant 0 : index
    %20 = vector.load %arg7[%c0_15, %c0_16] : memref<64x1xf32, #tpu.memory_space<vmem>>, vector<64x1xf32>
    %21 = vector.broadcast %20 : vector<64x1xf32> to vector<64x512xf32>
    %22 = arith.addf %19, %21 : vector<64x512xf32>
    %cst_17 = arith.constant 0.000000e+00 : f32
    %23 = vector.broadcast %cst_17 : f32 to vector<64x512xf32>
    %24 = arith.maximumf %22, %23 : vector<64x512xf32>
    %25 = arith.truncf %24 : vector<64x512xf32> to vector<64x512xbf16>
    %c0_18 = arith.constant 0 : index
    %c0_19 = arith.constant 0 : index
    %26 = vector.load %arg8[%c0_18, %c0_19] : memref<128x64xbf16, #tpu.memory_space<vmem>>, vector<128x64xbf16>
    %cst_20 = arith.constant dense<0.000000e+00> : vector<128x512xf32>
    %27 = tpu.matmul %26, %25, %cst_20 {dimension_numbers = #tpu.dot_dimension_numbers<[1], [0], [0], [1], [0, 0, 1, 1], [], []>} : vector<128x64xbf16>, vector<64x512xbf16>, vector<128x512xf32> -> vector<128x512xf32>
    %c0_21 = arith.constant 0 : index
    %c0_22 = arith.constant 0 : index
    %28 = vector.load %arg9[%c0_21, %c0_22] : memref<128x1xf32, #tpu.memory_space<vmem>>, vector<128x1xf32>
    %29 = vector.broadcast %28 : vector<128x1xf32> to vector<128x512xf32>
    %30 = arith.addf %27, %29 : vector<128x512xf32>
    %cst_23 = arith.constant 0.000000e+00 : f32
    %31 = vector.broadcast %cst_23 : f32 to vector<128x512xf32>
    %32 = arith.maximumf %30, %31 : vector<128x512xf32>
    %33 = arith.truncf %32 : vector<128x512xf32> to vector<128x512xbf16>
    %c0_24 = arith.constant 0 : index
    %c0_25 = arith.constant 0 : index
    %34 = vector.load %arg10[%c0_24, %c0_25] : memref<128x128xbf16, #tpu.memory_space<vmem>>, vector<128x128xbf16>
    %cst_26 = arith.constant dense<0.000000e+00> : vector<128x512xf32>
    %35 = tpu.matmul %34, %33, %cst_26 {dimension_numbers = #tpu.dot_dimension_numbers<[1], [0], [0], [1], [0, 0, 1, 1], [], []>} : vector<128x128xbf16>, vector<128x512xbf16>, vector<128x512xf32> -> vector<128x512xf32>
    %c0_27 = arith.constant 0 : index
    %c0_28 = arith.constant 0 : index
    %36 = vector.load %arg11[%c0_27, %c0_28] : memref<128x1xf32, #tpu.memory_space<vmem>>, vector<128x1xf32>
    %37 = vector.broadcast %36 : vector<128x1xf32> to vector<128x512xf32>
    %38 = arith.addf %35, %37 : vector<128x512xf32>
    %cst_29 = arith.constant 0.000000e+00 : f32
    %39 = vector.broadcast %cst_29 : f32 to vector<128x512xf32>
    %40 = arith.maximumf %38, %39 : vector<128x512xf32>
    %41 = arith.truncf %40 : vector<128x512xf32> to vector<128x512xbf16>
    %42 = arith.extf %41 : vector<128x512xbf16> to vector<128x512xf32>
    %43 = vector.shape_cast %42 : vector<128x512xf32> to vector<128x8x64xf32>
    %cst_30 = arith.constant dense<0xFF800000> : vector<128x8xf32>
    %44 = vector.multi_reduction <maximumf>, %43, %cst_30 [2] : vector<128x8x64xf32> to vector<128x8xf32>
    %45 = tpu.transpose %44, [1, 0] : vector<128x8xf32> -> vector<8x128xf32>
    %46 = arith.truncf %45 : vector<8x128xf32> to vector<8x128xbf16>
    %c0_31 = arith.constant 0 : index
    %c0_32 = arith.constant 0 : index
    %47 = vector.load %arg12[%c0_31, %c0_32] : memref<128x512xbf16, #tpu.memory_space<vmem>>, vector<128x512xbf16>
    %cst_33 = arith.constant dense<0.000000e+00> : vector<8x512xf32>
    %48 = tpu.matmul %46, %47, %cst_33 {dimension_numbers = #tpu.dot_dimension_numbers<[1], [0], [0], [1], [0, 0, 1, 1], [], []>} : vector<8x128xbf16>, vector<128x512xbf16>, vector<8x512xf32> -> vector<8x512xf32>
    %c0_34 = arith.constant 0 : index
    %c0_35 = arith.constant 0 : index
    %49 = vector.load %arg13[%c0_34, %c0_35] : memref<1x512xf32, #tpu.memory_space<vmem>>, vector<1x512xf32>
    %50 = vector.broadcast %49 : vector<1x512xf32> to vector<8x512xf32>
    %51 = arith.addf %48, %50 : vector<8x512xf32>
    %cst_36 = arith.constant 0.000000e+00 : f32
    %52 = vector.broadcast %cst_36 : f32 to vector<8x512xf32>
    %53 = arith.maximumf %51, %52 : vector<8x512xf32>
    %54 = arith.truncf %53 : vector<8x512xf32> to vector<8x512xbf16>
    %c0_37 = arith.constant 0 : index
    %c0_38 = arith.constant 0 : index
    %55 = vector.load %arg14[%c0_37, %c0_38] : memref<512x128xbf16, #tpu.memory_space<vmem>>, vector<512x128xbf16>
    %cst_39 = arith.constant dense<0.000000e+00> : vector<8x128xf32>
    %56 = tpu.matmul %54, %55, %cst_39 {dimension_numbers = #tpu.dot_dimension_numbers<[1], [0], [0], [1], [0, 0, 1, 1], [], []>} : vector<8x512xbf16>, vector<512x128xbf16>, vector<8x128xf32> -> vector<8x128xf32>
    %c0_40 = arith.constant 0 : index
    %c0_41 = arith.constant 0 : index
    %57 = vector.load %arg15[%c0_40, %c0_41] : memref<1x128xf32, #tpu.memory_space<vmem>>, vector<1x128xf32>
    %58 = vector.broadcast %57 : vector<1x128xf32> to vector<8x128xf32>
    %59 = arith.addf %56, %58 : vector<8x128xf32>
    %c0_42 = arith.constant 0 : index
    %c0_43 = arith.constant 0 : index
    %60 = vector.load %arg16[%c0_42, %c0_43] : memref<8x128xf32, #tpu.memory_space<vmem>>, vector<8x128xf32>
    tpu.vector_store %arg16[%c0_42, %c0_43], %59 {strides = array<i32>} : memref<8x128xf32, #tpu.memory_space<vmem>>, vector<8x128xf32>,
    return
  }
  func.func @transform_0(%arg0: i32) -> (i32, i32) {
    %c0_i32 = arith.constant 0 : i32
    %c0_i32_0 = arith.constant 0 : i32
    return %c0_i32, %arg0 : i32, i32
  }
  func.func @transform_1(%arg0: i32) -> (i32, i32) {
    %c0_i32 = arith.constant 0 : i32
    %c0_i32_0 = arith.constant 0 : i32
    %c0_i32_1 = arith.constant 0 : i32
    return %c0_i32, %c0_i32_0 : i32, i32
  }
  func.func @transform_2(%arg0: i32) -> (i32, i32) {
    %c0_i32 = arith.constant 0 : i32
    %c0_i32_0 = arith.constant 0 : i32
    %c0_i32_1 = arith.constant 0 : i32
    return %c0_i32, %c0_i32_0 : i32, i32
  }
  func.func @transform_3(%arg0: i32) -> (i32, i32) {
    %c0_i32 = arith.constant 0 : i32
    %c0_i32_0 = arith.constant 0 : i32
    %c0_i32_1 = arith.constant 0 : i32
    return %c0_i32, %c0_i32_0 : i32, i32
  }
  func.func @transform_4(%arg0: i32) -> (i32, i32) {
    %c0_i32 = arith.constant 0 : i32
    %c0_i32_0 = arith.constant 0 : i32
    %c0_i32_1 = arith.constant 0 : i32
    return %c0_i32, %c0_i32_0 : i32, i32
  }
  func.func @transform_5(%arg0: i32) -> (i32, i32) {
    %c0_i32 = arith.constant 0 : i32
    %c0_i32_0 = arith.constant 0 : i32
    %c0_i32_1 = arith.constant 0 : i32
    return %c0_i32, %c0_i32_0 : i32, i32
  }
  func.func @transform_6(%arg0: i32) -> (i32, i32) {
    %c0_i32 = arith.constant 0 : i32
    %c0_i32_0 = arith.constant 0 : i32
    %c0_i32_1 = arith.constant 0 : i32
    return %c0_i32, %c0_i32_0 : i32, i32
  }
  func.func @transform_7(%arg0: i32) -> (i32, i32) {
    %c0_i32 = arith.constant 0 : i32
    %c0_i32_0 = arith.constant 0 : i32
    %c0_i32_1 = arith.constant 0 : i32
    return %c0_i32, %c0_i32_0 : i32, i32
  }
  func.func @transform_8(%arg0: i32) -> (i32, i32) {
    %c0_i32 = arith.constant 0 : i32
    %c0_i32_0 = arith.constant 0 : i32
    %c0_i32_1 = arith.constant 0 : i32
    return %c0_i32, %c0_i32_0 : i32, i32
  }
  func.func @transform_9(%arg0: i32) -> (i32, i32) {
    %c0_i32 = arith.constant 0 : i32
    %c0_i32_0 = arith.constant 0 : i32
    %c0_i32_1 = arith.constant 0 : i32
    return %c0_i32, %c0_i32_0 : i32, i32
  }
  func.func @transform_10(%arg0: i32) -> (i32, i32) {
    %c0_i32 = arith.constant 0 : i32
    %c0_i32_0 = arith.constant 0 : i32
    %c0_i32_1 = arith.constant 0 : i32
    return %c0_i32, %c0_i32_0 : i32, i32
  }
  func.func @transform_11(%arg0: i32) -> (i32, i32) {
    %c0_i32 = arith.constant 0 : i32
    %c0_i32_0 = arith.constant 0 : i32
    %c0_i32_1 = arith.constant 0 : i32
    return %c0_i32, %c0_i32_0 : i32, i32
  }
  func.func @transform_12(%arg0: i32) -> (i32, i32) {
    %c0_i32 = arith.constant 0 : i32
    %c0_i32_0 = arith.constant 0 : i32
    %c0_i32_1 = arith.constant 0 : i32
    return %c0_i32, %c0_i32_0 : i32, i32
  }
  func.func @transform_13(%arg0: i32) -> (i32, i32) {
    %c0_i32 = arith.constant 0 : i32
    %c0_i32_0 = arith.constant 0 : i32
    %c0_i32_1 = arith.constant 0 : i32
    return %c0_i32, %c0_i32_0 : i32, i32
  }
  func.func @transform_14(%arg0: i32) -> (i32, i32) {
    %c0_i32 = arith.constant 0 : i32
    %c0_i32_0 = arith.constant 0 : i32
    %c0_i32_1 = arith.constant 0 : i32
    return %c0_i32, %c0_i32_0 : i32, i32
  }
  func.func @transform_15(%arg0: i32) -> (i32, i32) {
    %c0_i32 = arith.constant 0 : i32
    %c0_i32_0 = arith.constant 0 : i32
    return %arg0, %c0_i32 : i32, i32
  }
}

</mosaic_0001>

<llo_original>
// kernel: tpu_custom_call.1
$region0: #{tpu_custom_call.1}
  #allocation0 [shape = 'u32[]', space=smem, size = 0x4, offset = 0x4, fixed_abs, tag = 'smem constant byte address 0x4 - core index']
  #allocation1 [shape = 'u32[72,128]{1,0:T(1,128)}', space=vmem, size = 0x9000, scoped, tag = 'internal scratch']
  %s0 = inlined_call_operand.vmem [shape: f32[3,1024], index: 0, kind: input, shape index: {}]
  %s1 = inlined_call_operand.vmem [shape: bf16[64,3], index: 1, kind: input, shape index: {}]
  %s2 = inlined_call_operand.vmem [shape: f32[64,1], index: 2, kind: input, shape index: {}]
  %s3 = inlined_call_operand.vmem [shape: bf16[64,64], index: 3, kind: input, shape index: {}]
  %s4 = inlined_call_operand.vmem [shape: f32[64,1], index: 4, kind: input, shape index: {}]
  %s5 = inlined_call_operand.vmem [shape: bf16[64,64], index: 5, kind: input, shape index: {}]
  %s6 = inlined_call_operand.vmem [shape: f32[64,1], index: 6, kind: input, shape index: {}]
  %s7 = inlined_call_operand.vmem [shape: bf16[128,64], index: 7, kind: input, shape index: {}]
  %s8 = inlined_call_operand.vmem [shape: f32[128,1], index: 8, kind: input, shape index: {}]
  %s9 = inlined_call_operand.vmem [shape: bf16[128,128], index: 9, kind: input, shape index: {}]
  %s10 = inlined_call_operand.vmem [shape: f32[128,1], index: 10, kind: input, shape index: {}]
  %s11 = inlined_call_operand.vmem [shape: bf16[128,512], index: 11, kind: input, shape index: {}]
  %s12 = inlined_call_operand.vmem [shape: f32[1,512], index: 12, kind: input, shape index: {}]
  %s13 = inlined_call_operand.hbm [shape: bf16[512,128], index: 13, kind: input, shape index: {}]
  %s14 = inlined_call_operand.vmem [shape: f32[1,128], index: 14, kind: input, shape index: {}]
  %s15 = inlined_call_operand.hbm [shape: f32[16,128], index: 15, kind: output, shape index: {}]
  %s16 = sld [smem:[#allocation0]]
  $region97: #{tpu_custom_call.1} parent=0
    _
  %s18 = ssub.s32 1, %s16
  %s19 = scalar_select 0, %s18, %s16
  $region1: #{tpu_custom_call.1} parent=0
    #allocation2 [shape = 'u8[131072]{0}', space=vmem, size = 0x20000, scoped, tag = 'input window, operand 13, single buffered']
    #allocation3 [shape = 's32[2]{0}', space=sflag, size = 0x8, scoped, tag = 'scoped memory for tpu_custom_call.1']
    #allocation4 [shape = 's32[2]{0}', space=sflag, size = 0x8, scoped, tag = 'scoped memory for tpu_custom_call.1']
    #allocation5 [shape = 'u8[8192]{0}', space=vmem, size = 0x2000, scoped, tag = 'output window, operand 0']
    %20 = vsyncpa [#allocation3], 0
    %21 = vsyncpa [#allocation4], 0
    %s22 = scalar_lea.sflag [#allocation4], 1
    %23 = vsyncpa %s22, 0
    loop: start=0, step=1, limit=4
    $region2: #{tpu_custom_call.1} parent=1 // loop_pre_header
      _
    $region3: #{tpu_custom_call.1} parent=1 // loop_header
      %s25 = sphi 0, %s29
      %p26 = scmp.ge.s32.totalorder %s25, 4
      %s35 = sphi 0, %s37
      %s38 = sphi 0, %s35
      %s39 = sphi 0, %s38
      %s55 = sphi 0, %s39
      %s59 = sphi 0, %s59
      %s61 = sphi 0, %s59
      %s62 = sphi 0, %s61
      %s76 = sphi 0, %s62
      %s80 = sphi 0, %s80
      %s82 = sphi 0, %s80
      %s83 = sphi 0, %s82
      %s97 = sphi 0, %s83
      %s101 = sphi 0, %s101
      %s103 = sphi 0, %s101
      %s104 = sphi 0, %s103
      %s118 = sphi 0, %s104
      %s122 = sphi 0, %s122
      %s124 = sphi 0, %s122
      %s125 = sphi 0, %s124
      %s139 = sphi 0, %s125
      %s143 = sphi 0, %s143
      %s145 = sphi 0, %s143
      %s146 = sphi 0, %s145
      %s160 = sphi 0, %s146
      %s164 = sphi 0, %s164
      %s166 = sphi 0, %s164
      %s167 = sphi 0, %s166
      %s181 = sphi 0, %s167
      %s185 = sphi 0, %s185
      %s187 = sphi 0, %s185
      %s188 = sphi 0, %s187
      %s202 = sphi 0, %s188
      %s206 = sphi 0, %s206
      %s208 = sphi 0, %s206
      %s209 = sphi 0, %s208
      %s223 = sphi 0, %s209
      %s227 = sphi 0, %s227
      %s229 = sphi 0, %s227
      %s230 = sphi 0, %s229
      %s244 = sphi 0, %s230
      %s248 = sphi 0, %s248
      %s250 = sphi 0, %s248
      %s251 = sphi 0, %s250
      %s265 = sphi 0, %s251
      %s269 = sphi 0, %s269
      %s271 = sphi 0, %s269
      %s272 = sphi 0, %s271
      %s286 = sphi 0, %s272
      %s290 = sphi 0, %s290
      %s292 = sphi 0, %s290
      %s293 = sphi 0, %s292
      %s307 = sphi 0, %s293
      %s311 = sphi 0, %s311
      %s313 = sphi 0, %s311
      %s314 = sphi 0, %s313
      %s328 = sphi 0, %s314
      %s332 = sphi 0, %s332
      %s334 = sphi 0, %s332
      %s335 = sphi 0, %s334
      %s349 = sphi 0, %s335
      %s355 = sphi 0, %s357
      %s358 = sphi 0, %s355
      %s359 = sphi 0, %s358
      %s375 = sphi 0, %s359
    $region4: #{tpu_custom_call.1} parent=1 // loop_header_branch
      %28 = sbr.rel (%p26) target = $region8
    $region5: #{tpu_custom_call.1} parent=1 // loop_body
      %s30 = ssub.s32 %s25, 1
      %s31 = ssub.s32 %s25, 2
      %s32 = sadd.s32 %s25, 1
      %s33 = ssub.s32 %s25, %s32
      %p34 = scmp.eq.s32.totalorder %s33, 0
      %s36 = sadd.s32 %s35, 1
      %s37 = scalar_select %p34, %s35, %s36
      %p40 = pneg %p34
      %p41 = scmp.eq.s32.totalorder %s25, 1
      %p42 = por %p40, %p41
      %p43 = scmp.ne.s32.totalorder %s35, %s38
      %p44 = scmp.eq.s32.totalorder %s25, 0
      %p45 = por %p43, %p44
      %p46 = scmp.ne.s32.totalorder %s35, %s38
      %p47 = scmp.eq.s32.totalorder %s30, 1
      %p48 = por %p46, %p47
      %p49 = scmp.ne.s32.totalorder %s38, %s39
      %p50 = scmp.eq.s32.totalorder %s30, 0
      %p51 = por %p49, %p50
      %p52 = scmp.ne.s32.totalorder %s38, %s39
      %p53 = scmp.eq.s32.totalorder %s31, 1
      %p54 = por %p52, %p53
      %p56 = scmp.ne.s32.totalorder %s39, %s55
      %p57 = scmp.eq.s32.totalorder %s31, 0
      %p58 = por %p56, %p57
      %s60 = sadd.s32 %s59, 1
      %p63 = scmp.eq.s32.totalorder %s25, 1
      %p64 = scmp.ne.s32.totalorder %s59, %s61
      %p65 = scmp.eq.s32.totalorder %s25, 0
      %p66 = por %p64, %p65
      %p67 = scmp.ne.s32.totalorder %s59, %s61
      %p68 = scmp.eq.s32.totalorder %s30, 1
      %p69 = por %p67, %p68
      %p70 = scmp.ne.s32.totalorder %s61, %s62
      %p71 = scmp.eq.s32.totalorder %s30, 0
      %p72 = por %p70, %p71
      %p73 = scmp.ne.s32.totalorder %s61, %s62
      %p74 = scmp.eq.s32.totalorder %s31, 1
      %p75 = por %p73, %p74
      %p77 = scmp.ne.s32.totalorder %s62, %s76
      %p78 = scmp.eq.s32.totalorder %s31, 0
      %p79 = por %p77, %p78
      %s81 = sadd.s32 %s80, 1
      %p84 = scmp.eq.s32.totalorder %s25, 1
      %p85 = scmp.ne.s32.totalorder %s80, %s82
      %p86 = scmp.eq.s32.totalorder %s25, 0
      %p87 = por %p85, %p86
      %p88 = scmp.ne.s32.totalorder %s80, %s82
      %p89 = scmp.eq.s32.totalorder %s30, 1
      %p90 = por %p88, %p89
      %p91 = scmp.ne.s32.totalorder %s82, %s83
      %p92 = scmp.eq.s32.totalorder %s30, 0
      %p93 = por %p91, %p92
      %p94 = scmp.ne.s32.totalorder %s82, %s83
      %p95 = scmp.eq.s32.totalorder %s31, 1
      %p96 = por %p94, %p95
      %p98 = scmp.ne.s32.totalorder %s83, %s97
      %p99 = scmp.eq.s32.totalorder %s31, 0
      %p100 = por %p98, %p99
      %s102 = sadd.s32 %s101, 1
      %p105 = scmp.eq.s32.totalorder %s25, 1
      %p106 = scmp.ne.s32.totalorder %s101, %s103
      %p107 = scmp.eq.s32.totalorder %s25, 0
      %p108 = por %p106, %p107
      %p109 = scmp.ne.s32.totalorder %s101, %s103
      %p110 = scmp.eq.s32.totalorder %s30, 1
      %p111 = por %p109, %p110
      %p112 = scmp.ne.s32.totalorder %s103, %s104
      %p113 = scmp.eq.s32.totalorder %s30, 0
      %p114 = por %p112, %p113
      %p115 = scmp.ne.s32.totalorder %s103, %s104
      %p116 = scmp.eq.s32.totalorder %s31, 1
      %p117 = por %p115, %p116
      %p119 = scmp.ne.s32.totalorder %s104, %s118
      %p120 = scmp.eq.s32.totalorder %s31, 0
      %p121 = por %p119, %p120
      %s123 = sadd.s32 %s122, 1
      %p126 = scmp.eq.s32.totalorder %s25, 1
      %p127 = scmp.ne.s32.totalorder %s122, %s124
      %p128 = scmp.eq.s32.totalorder %s25, 0
      %p129 = por %p127, %p128
      %p130 = scmp.ne.s32.totalorder %s122, %s124
      %p131 = scmp.eq.s32.totalorder %s30, 1
      %p132 = por %p130, %p131
      %p133 = scmp.ne.s32.totalorder %s124, %s125
      %p134 = scmp.eq.s32.totalorder %s30, 0
      %p135 = por %p133, %p134
      %p136 = scmp.ne.s32.totalorder %s124, %s125
      %p137 = scmp.eq.s32.totalorder %s31, 1
      %p138 = por %p136, %p137
      %p140 = scmp.ne.s32.totalorder %s125, %s139
      %p141 = scmp.eq.s32.totalorder %s31, 0
      %p142 = por %p140, %p141
      %s144 = sadd.s32 %s143, 1
      %p147 = scmp.eq.s32.totalorder %s25, 1
      %p148 = scmp.ne.s32.totalorder %s143, %s145
      %p149 = scmp.eq.s32.totalorder %s25, 0
      %p150 = por %p148, %p149
      %p151 = scmp.ne.s32.totalorder %s143, %s145
      %p152 = scmp.eq.s32.totalorder %s30, 1
      %p153 = por %p151, %p152
      %p154 = scmp.ne.s32.totalorder %s145, %s146
      %p155 = scmp.eq.s32.totalorder %s30, 0
      %p156 = por %p154, %p155
      %p157 = scmp.ne.s32.totalorder %s145, %s146
      %p158 = scmp.eq.s32.totalorder %s31, 1
      %p159 = por %p157, %p158
      %p161 = scmp.ne.s32.totalorder %s146, %s160
      %p162 = scmp.eq.s32.totalorder %s31, 0
      %p163 = por %p161, %p162
      %s165 = sadd.s32 %s164, 1
      %p168 = scmp.eq.s32.totalorder %s25, 1
      %p169 = scmp.ne.s32.totalorder %s164, %s166
      %p170 = scmp.eq.s32.totalorder %s25, 0
      %p171 = por %p169, %p170
      %p172 = scmp.ne.s32.totalorder %s164, %s166
      %p173 = scmp.eq.s32.totalorder %s30, 1
      %p174 = por %p172, %p173
      %p175 = scmp.ne.s32.totalorder %s166, %s167
      %p176 = scmp.eq.s32.totalorder %s30, 0
      %p177 = por %p175, %p176
      %p178 = scmp.ne.s32.totalorder %s166, %s167
      %p179 = scmp.eq.s32.totalorder %s31, 1
      %p180 = por %p178, %p179
      %p182 = scmp.ne.s32.totalorder %s167, %s181
      %p183 = scmp.eq.s32.totalorder %s31, 0
      %p184 = por %p182, %p183
      %s186 = sadd.s32 %s185, 1
      %p189 = scmp.eq.s32.totalorder %s25, 1
      %p190 = scmp.ne.s32.totalorder %s185, %s187
      %p191 = scmp.eq.s32.totalorder %s25, 0
      %p192 = por %p190, %p191
      %p193 = scmp.ne.s32.totalorder %s185, %s187
      %p194 = scmp.eq.s32.totalorder %s30, 1
      %p195 = por %p193, %p194
      %p196 = scmp.ne.s32.totalorder %s187, %s188
      %p197 = scmp.eq.s32.totalorder %s30, 0
      %p198 = por %p196, %p197
      %p199 = scmp.ne.s32.totalorder %s187, %s188
      %p200 = scmp.eq.s32.totalorder %s31, 1
      %p201 = por %p199, %p200
      %p203 = scmp.ne.s32.totalorder %s188, %s202
      %p204 = scmp.eq.s32.totalorder %s31, 0
      %p205 = por %p203, %p204
      %s207 = sadd.s32 %s206, 1
      %p210 = scmp.eq.s32.totalorder %s25, 1
      %p211 = scmp.ne.s32.totalorder %s206, %s208
      %p212 = scmp.eq.s32.totalorder %s25, 0
      %p213 = por %p211, %p212
      %p214 = scmp.ne.s32.totalorder %s206, %s208
      %p215 = scmp.eq.s32.totalorder %s30, 1
      %p216 = por %p214, %p215
      %p217 = scmp.ne.s32.totalorder %s208, %s209
      %p218 = scmp.eq.s32.totalorder %s30, 0
      %p219 = por %p217, %p218
      %p220 = scmp.ne.s32.totalorder %s208, %s209
      %p221 = scmp.eq.s32.totalorder %s31, 1
      %p222 = por %p220, %p221
      %p224 = scmp.ne.s32.totalorder %s209, %s223
      %p225 = scmp.eq.s32.totalorder %s31, 0
      %p226 = por %p224, %p225
      %s228 = sadd.s32 %s227, 1
      %p231 = scmp.eq.s32.totalorder %s25, 1
      %p232 = scmp.ne.s32.totalorder %s227, %s229
      %p233 = scmp.eq.s32.totalorder %s25, 0
      %p234 = por %p232, %p233
      %p235 = scmp.ne.s32.totalorder %s227, %s229
      %p236 = scmp.eq.s32.totalorder %s30, 1
      %p237 = por %p235, %p236
      %p238 = scmp.ne.s32.totalorder %s229, %s230
      %p239 = scmp.eq.s32.totalorder %s30, 0
      %p240 = por %p238, %p239
      %p241 = scmp.ne.s32.totalorder %s229, %s230
      %p242 = scmp.eq.s32.totalorder %s31, 1
      %p243 = por %p241, %p242
      %p245 = scmp.ne.s32.totalorder %s230, %s244
      %p246 = scmp.eq.s32.totalorder %s31, 0
      %p247 = por %p245, %p246
      %s249 = sadd.s32 %s248, 1
      %p252 = scmp.eq.s32.totalorder %s25, 1
      %p253 = scmp.ne.s32.totalorder %s248, %s250
      %p254 = scmp.eq.s32.totalorder %s25, 0
      %p255 = por %p253, %p254
      %p256 = scmp.ne.s32.totalorder %s248, %s250
      %p257 = scmp.eq.s32.totalorder %s30, 1
      %p258 = por %p256, %p257
      %p259 = scmp.ne.s32.totalorder %s250, %s251
      %p260 = scmp.eq.s32.totalorder %s30, 0
      %p261 = por %p259, %p260
      %p262 = scmp.ne.s32.totalorder %s250, %s251
      %p263 = scmp.eq.s32.totalorder %s31, 1
      %p264 = por %p262, %p263
      %p266 = scmp.ne.s32.totalorder %s251, %s265
      %p267 = scmp.eq.s32.totalorder %s31, 0
      %p268 = por %p266, %p267
      %s270 = sadd.s32 %s269, 1
      %p273 = scmp.eq.s32.totalorder %s25, 1
      %p274 = scmp.ne.s32.totalorder %s269, %s271
      %p275 = scmp.eq.s32.totalorder %s25, 0
      %p276 = por %p274, %p275
      %p277 = scmp.ne.s32.totalorder %s269, %s271
      %p278 = scmp.eq.s32.totalorder %s30, 1
      %p279 = por %p277, %p278
      %p280 = scmp.ne.s32.totalorder %s271, %s272
      %p281 = scmp.eq.s32.totalorder %s30, 0
      %p282 = por %p280, %p281
      %p283 = scmp.ne.s32.totalorder %s271, %s272
      %p284 = scmp.eq.s32.totalorder %s31, 1
      %p285 = por %p283, %p284
      %p287 = scmp.ne.s32.totalorder %s272, %s286
      %p288 = scmp.eq.s32.totalorder %s31, 0
      %p289 = por %p287, %p288
      %s291 = sadd.s32 %s290, 1
      %p294 = scmp.eq.s32.totalorder %s25, 1
      %p295 = scmp.ne.s32.totalorder %s290, %s292
      %p296 = scmp.eq.s32.totalorder %s25, 0
      %p297 = por %p295, %p296
      %p298 = scmp.ne.s32.totalorder %s290, %s292
      %p299 = scmp.eq.s32.totalorder %s30, 1
      %p300 = por %p298, %p299
      %p301 = scmp.ne.s32.totalorder %s292, %s293
      %p302 = scmp.eq.s32.totalorder %s30, 0
      %p303 = por %p301, %p302
      %p304 = scmp.ne.s32.totalorder %s292, %s293
      %p305 = scmp.eq.s32.totalorder %s31, 1
      %p306 = por %p304, %p305
      %p308 = scmp.ne.s32.totalorder %s293, %s307
      %p309 = scmp.eq.s32.totalorder %s31, 0
      %p310 = por %p308, %p309
      %s312 = sadd.s32 %s311, 1
      %p315 = scmp.eq.s32.totalorder %s25, 1
      %p316 = scmp.ne.s32.totalorder %s311, %s313
      %p317 = scmp.eq.s32.totalorder %s25, 0
      %p318 = por %p316, %p317
      %p319 = scmp.ne.s32.totalorder %s311, %s313
      %p320 = scmp.eq.s32.totalorder %s30, 1
      %p321 = por %p319, %p320
      %p322 = scmp.ne.s32.totalorder %s313, %s314
      %p323 = scmp.eq.s32.totalorder %s30, 0
      %p324 = por %p322, %p323
      %p325 = scmp.ne.s32.totalorder %s313, %s314
      %p326 = scmp.eq.s32.totalorder %s31, 1
      %p327 = por %p325, %p326
      %p329 = scmp.ne.s32.totalorder %s314, %s328
      %p330 = scmp.eq.s32.totalorder %s31, 0
      %p331 = por %p329, %p330
      %s333 = sadd.s32 %s332, 1
      %p336 = scmp.eq.s32.totalorder %s25, 1
      %p337 = scmp.ne.s32.totalorder %s332, %s334
      %p338 = scmp.eq.s32.totalorder %s25, 0
      %p339 = por %p337, %p338
      %p340 = scmp.ne.s32.totalorder %s332, %s334
      %p341 = scmp.eq.s32.totalorder %s30, 1
      %p342 = por %p340, %p341
      %p343 = scmp.ne.s32.totalorder %s334, %s335
      %p344 = scmp.eq.s32.totalorder %s30, 0
      %p345 = por %p343, %p344
      %p346 = scmp.ne.s32.totalorder %s334, %s335
      %p347 = scmp.eq.s32.totalorder %s31, 1
      %p348 = por %p346, %p347
      %p350 = scmp.ne.s32.totalorder %s335, %s349
      %p351 = scmp.eq.s32.totalorder %s31, 0
      %p352 = por %p350, %p351
      %s353 = ssub.s32 %s25, %s32
      %p354 = scmp.eq.s32.totalorder %s353, 0
      %s356 = sadd.s32 %s355, 1
      %s357 = scalar_select %p354, %s355, %s356
      %p360 = pneg %p354
      %p361 = scmp.eq.s32.totalorder %s25, 1
      %p362 = por %p360, %p361
      %p363 = scmp.ne.s32.totalorder %s355, %s358
      %p364 = scmp.eq.s32.totalorder %s25, 0
      %p365 = por %p363, %p364
      %p366 = scmp.ne.s32.totalorder %s355, %s358
      %p367 = scmp.eq.s32.totalorder %s30, 1
      %p368 = por %p366, %p367
      %p369 = scmp.ne.s32.totalorder %s358, %s359
      %p370 = scmp.eq.s32.totalorder %s30, 0
      %p371 = por %p369, %p370
      %p372 = scmp.ne.s32.totalorder %s358, %s359
      %p373 = scmp.eq.s32.totalorder %s31, 1
      %p374 = por %p372, %p373
      %p376 = scmp.ne.s32.totalorder %s359, %s375
      %p377 = scmp.eq.s32.totalorder %s31, 0
      %p378 = por %p376, %p377
      %p379 = scmp.le.s32.totalorder 1, %s25
      %p380 = scmp.lt.s32.totalorder %s25, 3
      %p381 = pnand %p379, %p380
      %p382 = pneg %p381
      // Predicated region
      $region9: #{tpu_custom_call.1} parent=5 // pred_check
        _
      $region10: #{tpu_custom_call.1} parent=5 // pred_check_branch
        %384 = sbr.rel (%p381) target = $region12
      $region11: #{tpu_custom_call.1} parent=5 // pred_region
        %s385 = ssub.s32 %s25, 1
        // Predicated region
        $region13: #{tpu_custom_call.1} parent=11 // pred_check
          %p386 = pneg %p72
        $region14: #{tpu_custom_call.1} parent=11 // pred_check_branch
          %388 = sbr.rel (%p386) target = $region16
        $region15: #{tpu_custom_call.1} parent=11 // pred_region
          _
        $region16: #{tpu_custom_call.1} parent=11 // pred_fallthru
          _
        // Predicated region
        $region17: #{tpu_custom_call.1} parent=11 // pred_check
          %p389 = pneg %p93
        $region18: #{tpu_custom_call.1} parent=11 // pred_check_branch
          %391 = sbr.rel (%p389) target = $region20
        $region19: #{tpu_custom_call.1} parent=11 // pred_region
          _
        $region20: #{tpu_custom_call.1} parent=11 // pred_fallthru
          _
        // Predicated region
        $region21: #{tpu_custom_call.1} parent=11 // pred_check
          %p392 = pneg %p114
        $region22: #{tpu_custom_call.1} parent=11 // pred_check_branch
          %394 = sbr.rel (%p392) target = $region24
        $region23: #{tpu_custom_call.1} parent=11 // pred_region
          _
        $region24: #{tpu_custom_call.1} parent=11 // pred_fallthru
          _
        // Predicated region
        $region25: #{tpu_custom_call.1} parent=11 // pred_check
          %p395 = pneg %p135
        $region26: #{tpu_custom_call.1} parent=11 // pred_check_branch
          %397 = sbr.rel (%p395) target = $region28
        $region27: #{tpu_custom_call.1} parent=11 // pred_region
          _
        $region28: #{tpu_custom_call.1} parent=11 // pred_fallthru
          _
        // Predicated region
        $region29: #{tpu_custom_call.1} parent=11 // pred_check
          %p398 = pneg %p156
        $region30: #{tpu_custom_call.1} parent=11 // pred_check_branch
          %400 = sbr.rel (%p398) target = $region32
        $region31: #{tpu_custom_call.1} parent=11 // pred_region
          _
        $region32: #{tpu_custom_call.1} parent=11 // pred_fallthru
          _
        // Predicated region
        $region33: #{tpu_custom_call.1} parent=11 // pred_check
          %p401 = pneg %p177
        $region34: #{tpu_custom_call.1} parent=11 // pred_check_branch
          %403 = sbr.rel (%p401) target = $region36
        $region35: #{tpu_custom_call.1} parent=11 // pred_region
          _
        $region36: #{tpu_custom_call.1} parent=11 // pred_fallthru
          _
        // Predicated region
        $region37: #{tpu_custom_call.1} parent=11 // pred_check
          %p404 = pneg %p198
        $region38: #{tpu_custom_call.1} parent=11 // pred_check_branch
          %406 = sbr.rel (%p404) target = $region40
        $region39: #{tpu_custom_call.1} parent=11 // pred_region
          _
        $region40: #{tpu_custom_call.1} parent=11 // pred_fallthru
          _
        // Predicated region
        $region41: #{tpu_custom_call.1} parent=11 // pred_check
          %p407 = pneg %p219
        $region42: #{tpu_custom_call.1} parent=11 // pred_check_branch
          %409 = sbr.rel (%p407) target = $region44
        $region43: #{tpu_custom_call.1} parent=11 // pred_region
          _
        $region44: #{tpu_custom_call.1} parent=11 // pred_fallthru
          _
        // Predicated region
        $region45: #{tpu_custom_call.1} parent=11 // pred_check
          %p410 = pneg %p240
        $region46: #{tpu_custom_call.1} parent=11 // pred_check_branch
          %412 = sbr.rel (%p410) target = $region48
        $region47: #{tpu_custom_call.1} parent=11 // pred_region
          _
        $region48: #{tpu_custom_call.1} parent=11 // pred_fallthru
          _
        // Predicated region
        $region49: #{tpu_custom_call.1} parent=11 // pred_check
          %p413 = pneg %p261
        $region50: #{tpu_custom_call.1} parent=11 // pred_check_branch
          %415 = sbr.rel (%p413) target = $region52
        $region51: #{tpu_custom_call.1} parent=11 // pred_region
          _
        $region52: #{tpu_custom_call.1} parent=11 // pred_fallthru
          _
        // Predicated region
        $region53: #{tpu_custom_call.1} parent=11 // pred_check
          %p416 = pneg %p282
        $region54: #{tpu_custom_call.1} parent=11 // pred_check_branch
          %418 = sbr.rel (%p416) target = $region56
        $region55: #{tpu_custom_call.1} parent=11 // pred_region
          _
        $region56: #{tpu_custom_call.1} parent=11 // pred_fallthru
          _
        // Predicated region
        $region57: #{tpu_custom_call.1} parent=11 // pred_check
          %p419 = pneg %p303
        $region58: #{tpu_custom_call.1} parent=11 // pred_check_branch
          %421 = sbr.rel (%p419) target = $region60
        $region59: #{tpu_custom_call.1} parent=11 // pred_region
          _
        $region60: #{tpu_custom_call.1} parent=11 // pred_fallthru
          _
        // Predicated region
        $region61: #{tpu_custom_call.1} parent=11 // pred_check
          %p422 = pneg %p324
        $region62: #{tpu_custom_call.1} parent=11 // pred_check_branch
          %424 = sbr.rel (%p422) target = $region64
        $region63: #{tpu_custom_call.1} parent=11 // pred_region
          %426 = vsyncadd [#allocation3], 0
          %s427 = sshll.u32 %s13, 4
          %s428 = int_to_ptr.hbm [resolvable:$true] %s427
          %s429 = sshll.u32 [#allocation2], 4
          %s430 = int_to_ptr.vmem [resolvable:$true] %s429
          %435 = dma.hbm_to_vmem [thread:$0]  %s428, 4096, %s430, [#allocation3], 64, 64, 4
        $region64: #{tpu_custom_call.1} parent=11 // pred_fallthru
          _
        // Predicated region
        $region65: #{tpu_custom_call.1} parent=11 // pred_check
          %p436 = pneg %p345
        $region66: #{tpu_custom_call.1} parent=11 // pred_check_branch
          %438 = sbr.rel (%p436) target = $region68
        $region67: #{tpu_custom_call.1} parent=11 // pred_region
          _
        $region68: #{tpu_custom_call.1} parent=11 // pred_fallthru
          _
      $region12: #{tpu_custom_call.1} parent=5 // pred_fallthru
        _
      %p439 = scmp.lt.s32.totalorder %s25, 2
      // Predicated region
      $region69: #{tpu_custom_call.1} parent=5 // pred_check
        %p440 = pneg %p439
      $region70: #{tpu_custom_call.1} parent=5 // pred_check_branch
        %442 = sbr.rel (%p440) target = $region72
      $region71: #{tpu_custom_call.1} parent=5 // pred_region
        // Predicated region
        $region73: #{tpu_custom_call.1} parent=71 // pred_check
          %p443 = pneg %p45
        $region74: #{tpu_custom_call.1} parent=71 // pred_check_branch
          %445 = sbr.rel (%p443) target = $region76
        $region75: #{tpu_custom_call.1} parent=71 // pred_region
          %s446 = smul.u32 4, %s25
          %p447 = scmp.lt.s32.totalorder %s446, 7
          %s448 = scalar_select %p447, %s446, 7
          %s449 = smul.addr %s448, 4
          %s450 = scalar_lea.vmem %s0, %s449
          %s451 = smul.u32 4, %s25
        $region76: #{tpu_custom_call.1} parent=71 // pred_fallthru
          _
      $region72: #{tpu_custom_call.1} parent=5 // pred_fallthru
        _
      %p452 = scmp.le.s32.totalorder 1, %s25
      %p453 = scmp.lt.s32.totalorder %s25, 3
      %p454 = pnand %p452, %p453
      %p455 = pneg %p454
      // Predicated region
      $region77: #{tpu_custom_call.1} parent=5 // pred_check
        _
      $region78: #{tpu_custom_call.1} parent=5 // pred_check_branch
        %457 = sbr.rel (%p454) target = $region80
      $region79: #{tpu_custom_call.1} parent=5 // pred_region
        %s458 = ssub.s32 %s25, 1
        // Predicated region
        $region81: #{tpu_custom_call.1} parent=79 // pred_check
          %p459 = pneg %p324
        $region82: #{tpu_custom_call.1} parent=79 // pred_check_branch
          %461 = sbr.rel (%p459) target = $region84
        $region83: #{tpu_custom_call.1} parent=79 // pred_region
          %463 = dma.done [#allocation3], 4096
        $region84: #{tpu_custom_call.1} parent=79 // pred_fallthru
          _
        %s464 = smul.u32 4, %s30
        %p465 = scmp.lt.s32.totalorder %s464, 7
        %s466 = scalar_select %p465, %s464, 7
        %s467 = smul.addr %s466, 4
        %s468 = scalar_lea.vmem %s0, %s467
        %p469 = pneg %p51
        %p470 = pneg %p48
        %p471 = pneg %p72
        %p472 = pneg %p69
        %p473 = pneg %p93
        %p474 = pneg %p90
        %p475 = pneg %p114
        %p476 = pneg %p111
        %p477 = pneg %p135
        %p478 = pneg %p132
        %p479 = pneg %p156
        %p480 = pneg %p153
        %p481 = pneg %p177
        %p482 = pneg %p174
        %p483 = pneg %p198
        %p484 = pneg %p195
        %p485 = pneg %p219
        %p486 = pneg %p216
        %p487 = pneg %p240
        %p488 = pneg %p237
        %p489 = pneg %p261
        %p490 = pneg %p258
        %p491 = pneg %p282
        %p492 = pneg %p279
        %p493 = pneg %p303
        %p494 = pneg %p300
        %p495 = pneg %p324
        %p496 = pneg %p321
        %p497 = pneg %p345
        %p498 = pneg %p342
        %p499 = pneg %p371
        %p500 = pneg %p368
        %s501 = sand.u32 %s358, 1
        %s502 = scalar_lea.sflag [#allocation4], %s501
        %s503 = sand.u32 %s358, 1
        %s504 = smul.addr %s503, 8
        %s505 = scalar_lea.vmem [#allocation5], %s504
        %s506 = smul.u32 4, %s30
        %p507 = scmp.lt.s32.totalorder %s506, 7
        %s508 = scalar_select %p507, %s506, 7
        %s509 = smul.addr %s508, 4
        %s510 = scalar_lea.vmem %s0, %s509
        %s511 = smul.u32 4, %s30
        %v513 = vld [vmem:[%s510] sm:$0x77]
        %v514 = vld [vmem:[%s510 + $0x8] sm:$0x77]
        %517 = vst [vmem:[#allocation1] ss:$2 sm:$0xff] %v513
        %s518 = scalar_lea.vmem [#allocation1], 16
        %519 = vst [vmem:[%s518] ss:$2 sm:$0xff] %v514
        %v520 = vld.sshfl [vmem:[#allocation1] sm:$0xff pattern:$0x75316420]
        %v521 = vld.sshfl [vmem:[#allocation1 + $0x8] sm:$0xff pattern:$0x75316420]
        %v522 = vld.sshfl [vmem:[#allocation1 + $0x10] sm:$0xff pattern:$0x75316420]
        %v523 = vld.sshfl [vmem:[#allocation1 + $0x18] sm:$0xff pattern:$0x75316420]
        %v528 = vpack.c.bf16 %v520, %v520
        %v529 = vpack.c.bf16 %v521, %v521
        %v530 = vpack.c.bf16 %v522, %v522
        %v531 = vpack.c.bf16 %v523, %v523
        %v532 = vld [vmem:[%s1] sm:$0xf]
        %v533 = vld [vmem:[%s1 + $0x4] sm:$0xf]
        %v534 = vld [vmem:[%s1 + $0x8] sm:$0xf]
        %v535 = vld [vmem:[%s1 + $0xc] sm:$0xf]
        %v536 = vld [vmem:[%s1 + $0x10] sm:$0xf]
        %v537 = vld [vmem:[%s1 + $0x14] sm:$0xf]
        %v538 = vld [vmem:[%s1 + $0x18] sm:$0xf]
        %v539 = vld [vmem:[%s1 + $0x1c] sm:$0xf]
        %v540 = vld [vmem:[%s2] sm:$0xff]
        %v541 = vld [vmem:[%s2 + $0x8] sm:$0xff]
        %v542 = vld [vmem:[%s2 + $0x10] sm:$0xff]
        %v543 = vld [vmem:[%s2 + $0x18] sm:$0xff]
        %v544 = vld [vmem:[%s2 + $0x20] sm:$0xff]
        %v545 = vld [vmem:[%s2 + $0x28] sm:$0xff]
        %v546 = vld [vmem:[%s2 + $0x30] sm:$0xff]
        %v547 = vld [vmem:[%s2 + $0x38] sm:$0xff]
        %549 = vset.pattern.permute.xlu0 0
        %550 = vperm.xlu0 %549, %v540
        %v551 = vpop.permute.xlu0 %550
        %554 = vset.pattern.permute.xlu0 0
        %555 = vperm.xlu0 %554, %v541
        %v556 = vpop.permute.xlu0 %555
        %559 = vset.pattern.permute.xlu0 0
        %560 = vperm.xlu0 %559, %v542
        %v561 = vpop.permute.xlu0 %560
        %564 = vset.pattern.permute.xlu0 0
        %565 = vperm.xlu0 %564, %v543
        %v566 = vpop.permute.xlu0 %565
        %569 = vset.pattern.permute.xlu0 0
        %570 = vperm.xlu0 %569, %v544
        %v571 = vpop.permute.xlu0 %570
        %574 = vset.pattern.permute.xlu0 0
        %575 = vperm.xlu0 %574, %v545
        %v576 = vpop.permute.xlu0 %575
        %579 = vset.pattern.permute.xlu0 0
        %580 = vperm.xlu0 %579, %v546
        %v581 = vpop.permute.xlu0 %580
        %584 = vset.pattern.permute.xlu0 0
        %585 = vperm.xlu0 %584, %v547
        %v586 = vpop.permute.xlu0 %585
        %v596 = vunpack.c.l.b16 %v532
        %v597 = vunpack.c.l.b16 %v533
        %v598 = vunpack.c.l.b16 %v534
        %v599 = vunpack.c.l.b16 %v535
        %v600 = vunpack.c.l.b16 %v536
        %v601 = vunpack.c.l.b16 %v537
        %v602 = vunpack.c.l.b16 %v538
        %v603 = vunpack.c.l.b16 %v539
        %v604 = vpack.c.b16 %v597, %v596
        %v605 = vpack.c.b16 %v599, %v598
        %v606 = vpack.c.b16 %v601, %v600
        %v607 = vpack.c.b16 %v603, %v602
        %vm608 = vcmask 23552
        %v610 = vsel %vm608, %v604, 0
        %v613 = vsel %vm608, %v605, 0
        %v616 = vsel %vm608, %v606, 0
        %v619 = vsel %vm608, %v607, 0
        %vm621 = vcmask 1040384
        %vm622 = vcmask 1041408
        %v623 = vsel %vm621, 4294967295, 65535
        %v624 = vsel %vm622, %v623, 0
        %v626 = vand.u32 %v528, %v624
        %v629 = vand.u32 %v529, %v624
        %v632 = vand.u32 %v530, %v624
        %v635 = vand.u32 %v531, %v624
        %637 = vmatpush.bf16.msra.mxu0 0
        %638 = vmatpush.bf16.msra.mxu0 0
        %639 = vmatpush.bf16.msra.mxu0 0
        %640 = vmatpush.bf16.msra.mxu0 0
        %641 = vmatpush.bf16.msra.mxu0 0
        %642 = vmatpush.bf16.msra.mxu0 0
        %643 = vmatpush.bf16.msra.mxu0 0
        %644 = vmatpush.bf16.msra.mxu0 %v626
        %645 = vmatmul.bf16.gmra.mxu0 %v610
        %v646 = vpop.f32.mrf.mxu0
        %v647 = vadd.f32 %v551, %v646
        %v648 = vpop.f32.mrf.mxu0
        %v649 = vadd.f32 %v556, %v648
        %650 = vmatmul.bf16.gmra.mxu0 %v613
        %v651 = vpop.f32.mrf.mxu0
        %v652 = vadd.f32 %v561, %v651
        %v653 = vpop.f32.mrf.mxu0
        %v654 = vadd.f32 %v566, %v653
        %655 = vmatmul.bf16.gmra.mxu0 %v616
        %v656 = vpop.f32.mrf.mxu0
        %v657 = vadd.f32 %v571, %v656
        %v658 = vpop.f32.mrf.mxu0
        %v659 = vadd.f32 %v576, %v658
        %660 = vmatmul.bf16.gmra.mxu0 %v619
        %v661 = vpop.f32.mrf.mxu0
        %v662 = vadd.f32 %v581, %v661
        %v663 = vpop.f32.mrf.mxu0
        %v664 = vadd.f32 %v586, %v663
        %665 = vdwg.mxu0
        %666 = vmatpush.bf16.msra.mxu0 0
        %667 = vmatpush.bf16.msra.mxu0 0
        %668 = vmatpush.bf16.msra.mxu0 0
        %669 = vmatpush.bf16.msra.mxu0 0
        %670 = vmatpush.bf16.msra.mxu0 0
        %671 = vmatpush.bf16.msra.mxu0 0
        %672 = vmatpush.bf16.msra.mxu0 0
        %673 = vmatpush.bf16.msra.mxu0 %v629
        %674 = vmatmul.bf16.gmra.mxu0 %v610
        %v675 = vpop.f32.mrf.mxu0
        %v676 = vadd.f32 %v551, %v675
        %v677 = vpop.f32.mrf.mxu0
        %v678 = vadd.f32 %v556, %v677
        %679 = vmatmul.bf16.gmra.mxu0 %v613
        %v680 = vpop.f32.mrf.mxu0
        %v681 = vadd.f32 %v561, %v680
        %v682 = vpop.f32.mrf.mxu0
        %v683 = vadd.f32 %v566, %v682
        %684 = vmatmul.bf16.gmra.mxu0 %v616
        %v685 = vpop.f32.mrf.mxu0
        %v686 = vadd.f32 %v571, %v685
        %v687 = vpop.f32.mrf.mxu0
        %v688 = vadd.f32 %v576, %v687
        %689 = vmatmul.bf16.gmra.mxu0 %v619
        %v690 = vpop.f32.mrf.mxu0
        %v691 = vadd.f32 %v581, %v690
        %v692 = vpop.f32.mrf.mxu0
        %v693 = vadd.f32 %v586, %v692
        %694 = vdwg.mxu0
        %695 = vmatpush.bf16.msra.mxu0 0
        %696 = vmatpush.bf16.msra.mxu0 0
        %697 = vmatpush.bf16.msra.mxu0 0
        %698 = vmatpush.bf16.msra.mxu0 0
        %699 = vmatpush.bf16.msra.mxu0 0
        %700 = vmatpush.bf16.msra.mxu0 0
        %701 = vmatpush.bf16.msra.mxu0 0
        %702 = vmatpush.bf16.msra.mxu0 %v632
        %703 = vmatmul.bf16.gmra.mxu0 %v610
        %v704 = vpop.f32.mrf.mxu0
        %v705 = vadd.f32 %v551, %v704
        %v706 = vpop.f32.mrf.mxu0
        %v707 = vadd.f32 %v556, %v706
        %708 = vmatmul.bf16.gmra.mxu0 %v613
        %v709 = vpop.f32.mrf.mxu0
        %v710 = vadd.f32 %v561, %v709
        %v711 = vpop.f32.mrf.mxu0
        %v712 = vadd.f32 %v566, %v711
        %713 = vmatmul.bf16.gmra.mxu0 %v616
        %v714 = vpop.f32.mrf.mxu0
        %v715 = vadd.f32 %v571, %v714
        %v716 = vpop.f32.mrf.mxu0
        %v717 = vadd.f32 %v576, %v716
        %718 = vmatmul.bf16.gmra.mxu0 %v619
        %v719 = vpop.f32.mrf.mxu0
        %v720 = vadd.f32 %v581, %v719
        %v721 = vpop.f32.mrf.mxu0
        %v722 = vadd.f32 %v586, %v721
        %723 = vdwg.mxu0
        %724 = vmatpush.bf16.msra.mxu0 0
        %725 = vmatpush.bf16.msra.mxu0 0
        %726 = vmatpush.bf16.msra.mxu0 0
        %727 = vmatpush.bf16.msra.mxu0 0
        %728 = vmatpush.bf16.msra.mxu0 0
        %729 = vmatpush.bf16.msra.mxu0 0
        %730 = vmatpush.bf16.msra.mxu0 0
        %731 = vmatpush.bf16.msra.mxu0 %v635
        %732 = vmatmul.bf16.gmra.mxu0 %v610
        %v733 = vpop.f32.mrf.mxu0
        %v734 = vadd.f32 %v551, %v733
        %v735 = vpop.f32.mrf.mxu0
        %v736 = vadd.f32 %v556, %v735
        %737 = vmatmul.bf16.gmra.mxu0 %v613
        %v738 = vpop.f32.mrf.mxu0
        %v739 = vadd.f32 %v561, %v738
        %v740 = vpop.f32.mrf.mxu0
        %v741 = vadd.f32 %v566, %v740
        %742 = vmatmul.bf16.gmra.mxu0 %v616
        %v743 = vpop.f32.mrf.mxu0
        %v744 = vadd.f32 %v571, %v743
        %v745 = vpop.f32.mrf.mxu0
        %v746 = vadd.f32 %v576, %v745
        %747 = vmatmul.bf16.gmra.mxu0 %v619
        %v748 = vpop.f32.mrf.mxu0
        %v749 = vadd.f32 %v581, %v748
        %v750 = vpop.f32.mrf.mxu0
        %v751 = vadd.f32 %v586, %v750
        %752 = vdwg.mxu0
        %v753 = vmax.f32 %v647, 0.0
        %v754 = vmax.f32 %v676, 0.0
        %v755 = vmax.f32 %v705, 0.0
        %v756 = vmax.f32 %v734, 0.0
        %v757 = vmax.f32 %v649, 0.0
        %v758 = vmax.f32 %v678, 0.0
        %v759 = vmax.f32 %v707, 0.0
        %v760 = vmax.f32 %v736, 0.0
        %v761 = vmax.f32 %v652, 0.0
        %v762 = vmax.f32 %v681, 0.0
        %v763 = vmax.f32 %v710, 0.0
        %v764 = vmax.f32 %v739, 0.0
        %v765 = vmax.f32 %v654, 0.0
        %v766 = vmax.f32 %v683, 0.0
        %v767 = vmax.f32 %v712, 0.0
        %v768 = vmax.f32 %v741, 0.0
        %v769 = vmax.f32 %v657, 0.0
        %v770 = vmax.f32 %v686, 0.0
        %v771 = vmax.f32 %v715, 0.0
        %v772 = vmax.f32 %v744, 0.0
        %v773 = vmax.f32 %v659, 0.0
        %v774 = vmax.f32 %v688, 0.0
        %v775 = vmax.f32 %v717, 0.0
        %v776 = vmax.f32 %v746, 0.0
        %v777 = vmax.f32 %v662, 0.0
        %v778 = vmax.f32 %v691, 0.0
        %v779 = vmax.f32 %v720, 0.0
        %v780 = vmax.f32 %v749, 0.0
        %v781 = vmax.f32 %v664, 0.0
        %v782 = vmax.f32 %v693, 0.0
        %v783 = vmax.f32 %v722, 0.0
        %v784 = vmax.f32 %v751, 0.0
        %v785 = vpack.c.bf16 %v757, %v753
        %v786 = vpack.c.bf16 %v758, %v754
        %v787 = vpack.c.bf16 %v759, %v755
        %v788 = vpack.c.bf16 %v760, %v756
        %v789 = vpack.c.bf16 %v765, %v761
        %v790 = vpack.c.bf16 %v766, %v762
        %v791 = vpack.c.bf16 %v767, %v763
        %v792 = vpack.c.bf16 %v768, %v764
        %v793 = vpack.c.bf16 %v773, %v769
        %v794 = vpack.c.bf16 %v774, %v770
        %v795 = vpack.c.bf16 %v775, %v771
        %v796 = vpack.c.bf16 %v776, %v772
        %v797 = vpack.c.bf16 %v781, %v777
        %v798 = vpack.c.bf16 %v782, %v778
        %v799 = vpack.c.bf16 %v783, %v779
        %v800 = vpack.c.bf16 %v784, %v780
        %v801 = vld [vmem:[%s3] sm:$0xf]
        %v802 = vld [vmem:[%s3 + $0x4] sm:$0xf]
        %v803 = vld [vmem:[%s3 + $0x8] sm:$0xf]
        %v804 = vld [vmem:[%s3 + $0xc] sm:$0xf]
        %v805 = vld [vmem:[%s3 + $0x10] sm:$0xf]
        %v806 = vld [vmem:[%s3 + $0x14] sm:$0xf]
        %v807 = vld [vmem:[%s3 + $0x18] sm:$0xf]
        %v808 = vld [vmem:[%s3 + $0x1c] sm:$0xf]
        %v809 = vld [vmem:[%s4] sm:$0xff]
        %v810 = vld [vmem:[%s4 + $0x8] sm:$0xff]
        %v811 = vld [vmem:[%s4 + $0x10] sm:$0xff]
        %v812 = vld [vmem:[%s4 + $0x18] sm:$0xff]
        %v813 = vld [vmem:[%s4 + $0x20] sm:$0xff]
        %v814 = vld [vmem:[%s4 + $0x28] sm:$0xff]
        %v815 = vld [vmem:[%s4 + $0x30] sm:$0xff]
        %v816 = vld [vmem:[%s4 + $0x38] sm:$0xff]
        %818 = vset.pattern.permute.xlu0 0
        %819 = vperm.xlu0 %818, %v809
        %v820 = vpop.permute.xlu0 %819
        %823 = vset.pattern.permute.xlu0 0
        %824 = vperm.xlu0 %823, %v810
        %v825 = vpop.permute.xlu0 %824
        %828 = vset.pattern.permute.xlu0 0
        %829 = vperm.xlu0 %828, %v811
        %v830 = vpop.permute.xlu0 %829
        %833 = vset.pattern.permute.xlu0 0
        %834 = vperm.xlu0 %833, %v812
        %v835 = vpop.permute.xlu0 %834
        %838 = vset.pattern.permute.xlu0 0
        %839 = vperm.xlu0 %838, %v813
        %v840 = vpop.permute.xlu0 %839
        %843 = vset.pattern.permute.xlu0 0
        %844 = vperm.xlu0 %843, %v814
        %v845 = vpop.permute.xlu0 %844
        %848 = vset.pattern.permute.xlu0 0
        %849 = vperm.xlu0 %848, %v815
        %v850 = vpop.permute.xlu0 %849
        %853 = vset.pattern.permute.xlu0 0
        %854 = vperm.xlu0 %853, %v816
        %v855 = vpop.permute.xlu0 %854
        %v865 = vunpack.c.l.b16 %v801
        %v866 = vunpack.c.l.b16 %v802
        %v867 = vunpack.c.l.b16 %v803
        %v868 = vunpack.c.l.b16 %v804
        %v869 = vunpack.c.l.b16 %v805
        %v870 = vunpack.c.l.b16 %v806
        %v871 = vunpack.c.l.b16 %v807
        %v872 = vunpack.c.l.b16 %v808
        %v873 = vpack.c.b16 %v866, %v865
        %v874 = vpack.c.b16 %v868, %v867
        %v875 = vpack.c.b16 %v870, %v869
        %v876 = vpack.c.b16 %v872, %v871
        %vm877 = vcmask 523264
        %v879 = vsel %vm877, %v873, 0
        %v882 = vsel %vm877, %v874, 0
        %v885 = vsel %vm877, %v875, 0
        %v888 = vsel %vm877, %v876, 0
        %890 = vmatpush.bf16.msra.mxu0 0
        %891 = vmatpush.bf16.msra.mxu0 0
        %892 = vmatpush.bf16.msra.mxu0 0
        %893 = vmatpush.bf16.msra.mxu0 0
        %894 = vmatpush.bf16.msra.mxu0 %v797
        %895 = vmatpush.bf16.msra.mxu0 %v793
        %896 = vmatpush.bf16.msra.mxu0 %v789
        %897 = vmatpush.bf16.msra.mxu0 %v785
        %898 = vmatmul.bf16.gmra.mxu0 %v879
        %v899 = vpop.f32.mrf.mxu0
        %v900 = vadd.f32 %v820, %v899
        %v901 = vpop.f32.mrf.mxu0
        %v902 = vadd.f32 %v825, %v901
        %903 = vmatmul.bf16.gmra.mxu0 %v882
        %v904 = vpop.f32.mrf.mxu0
        %v905 = vadd.f32 %v830, %v904
        %v906 = vpop.f32.mrf.mxu0
        %v907 = vadd.f32 %v835, %v906
        %908 = vmatmul.bf16.gmra.mxu0 %v885
        %v909 = vpop.f32.mrf.mxu0
        %v910 = vadd.f32 %v840, %v909
        %v911 = vpop.f32.mrf.mxu0
        %v912 = vadd.f32 %v845, %v911
        %913 = vmatmul.bf16.gmra.mxu0 %v888
        %v914 = vpop.f32.mrf.mxu0
        %v915 = vadd.f32 %v850, %v914
        %v916 = vpop.f32.mrf.mxu0
        %v917 = vadd.f32 %v855, %v916
        %918 = vdwg.mxu0
        %919 = vmatpush.bf16.msra.mxu0 0
        %920 = vmatpush.bf16.msra.mxu0 0
        %921 = vmatpush.bf16.msra.mxu0 0
        %922 = vmatpush.bf16.msra.mxu0 0
        %923 = vmatpush.bf16.msra.mxu0 %v798
        %924 = vmatpush.bf16.msra.mxu0 %v794
        %925 = vmatpush.bf16.msra.mxu0 %v790
        %926 = vmatpush.bf16.msra.mxu0 %v786
        %927 = vmatmul.bf16.gmra.mxu0 %v879
        %v928 = vpop.f32.mrf.mxu0
        %v929 = vadd.f32 %v820, %v928
        %v930 = vpop.f32.mrf.mxu0
        %v931 = vadd.f32 %v825, %v930
        %932 = vmatmul.bf16.gmra.mxu0 %v882
        %v933 = vpop.f32.mrf.mxu0
        %v934 = vadd.f32 %v830, %v933
        %v935 = vpop.f32.mrf.mxu0
        %v936 = vadd.f32 %v835, %v935
        %937 = vmatmul.bf16.gmra.mxu0 %v885
        %v938 = vpop.f32.mrf.mxu0
        %v939 = vadd.f32 %v840, %v938
        %v940 = vpop.f32.mrf.mxu0
        %v941 = vadd.f32 %v845, %v940
        %942 = vmatmul.bf16.gmra.mxu0 %v888
        %v943 = vpop.f32.mrf.mxu0
        %v944 = vadd.f32 %v850, %v943
        %v945 = vpop.f32.mrf.mxu0
        %v946 = vadd.f32 %v855, %v945
        %947 = vdwg.mxu0
        %948 = vmatpush.bf16.msra.mxu0 0
        %949 = vmatpush.bf16.msra.mxu0 0
        %950 = vmatpush.bf16.msra.mxu0 0
        %951 = vmatpush.bf16.msra.mxu0 0
        %952 = vmatpush.bf16.msra.mxu0 %v799
        %953 = vmatpush.bf16.msra.mxu0 %v795
        %954 = vmatpush.bf16.msra.mxu0 %v791
        %955 = vmatpush.bf16.msra.mxu0 %v787
        %956 = vmatmul.bf16.gmra.mxu0 %v879
        %v957 = vpop.f32.mrf.mxu0
        %v958 = vadd.f32 %v820, %v957
        %v959 = vpop.f32.mrf.mxu0
        %v960 = vadd.f32 %v825, %v959
        %961 = vmatmul.bf16.gmra.mxu0 %v882
        %v962 = vpop.f32.mrf.mxu0
        %v963 = vadd.f32 %v830, %v962
        %v964 = vpop.f32.mrf.mxu0
        %v965 = vadd.f32 %v835, %v964
        %966 = vmatmul.bf16.gmra.mxu0 %v885
        %v967 = vpop.f32.mrf.mxu0
        %v968 = vadd.f32 %v840, %v967
        %v969 = vpop.f32.mrf.mxu0
        %v970 = vadd.f32 %v845, %v969
        %971 = vmatmul.bf16.gmra.mxu0 %v888
        %v972 = vpop.f32.mrf.mxu0
        %v973 = vadd.f32 %v850, %v972
        %v974 = vpop.f32.mrf.mxu0
        %v975 = vadd.f32 %v855, %v974
        %976 = vdwg.mxu0
        %977 = vmatpush.bf16.msra.mxu0 0
        %978 = vmatpush.bf16.msra.mxu0 0
        %979 = vmatpush.bf16.msra.mxu0 0
        %980 = vmatpush.bf16.msra.mxu0 0
        %981 = vmatpush.bf16.msra.mxu0 %v800
        %982 = vmatpush.bf16.msra.mxu0 %v796
        %983 = vmatpush.bf16.msra.mxu0 %v792
        %984 = vmatpush.bf16.msra.mxu0 %v788
        %985 = vmatmul.bf16.gmra.mxu0 %v879
        %v986 = vpop.f32.mrf.mxu0
        %v987 = vadd.f32 %v820, %v986
        %v988 = vpop.f32.mrf.mxu0
        %v989 = vadd.f32 %v825, %v988
        %990 = vmatmul.bf16.gmra.mxu0 %v882
        %v991 = vpop.f32.mrf.mxu0
        %v992 = vadd.f32 %v830, %v991
        %v993 = vpop.f32.mrf.mxu0
        %v994 = vadd.f32 %v835, %v993
        %995 = vmatmul.bf16.gmra.mxu0 %v885
        %v996 = vpop.f32.mrf.mxu0
        %v997 = vadd.f32 %v840, %v996
        %v998 = vpop.f32.mrf.mxu0
        %v999 = vadd.f32 %v845, %v998
        %1000 = vmatmul.bf16.gmra.mxu0 %v888
        %v1001 = vpop.f32.mrf.mxu0
        %v1002 = vadd.f32 %v850, %v1001
        %v1003 = vpop.f32.mrf.mxu0
        %v1004 = vadd.f32 %v855, %v1003
        %1005 = vdwg.mxu0
        %v1006 = vmax.f32 %v900, 0.0
        %v1007 = vmax.f32 %v929, 0.0
        %v1008 = vmax.f32 %v958, 0.0
        %v1009 = vmax.f32 %v987, 0.0
        %v1010 = vmax.f32 %v902, 0.0
        %v1011 = vmax.f32 %v931, 0.0
        %v1012 = vmax.f32 %v960, 0.0
        %v1013 = vmax.f32 %v989, 0.0
        %v1014 = vmax.f32 %v905, 0.0
        %v1015 = vmax.f32 %v934, 0.0
        %v1016 = vmax.f32 %v963, 0.0
        %v1017 = vmax.f32 %v992, 0.0
        %v1018 = vmax.f32 %v907, 0.0
        %v1019 = vmax.f32 %v936, 0.0
        %v1020 = vmax.f32 %v965, 0.0
        %v1021 = vmax.f32 %v994, 0.0
        %v1022 = vmax.f32 %v910, 0.0
        %v1023 = vmax.f32 %v939, 0.0
        %v1024 = vmax.f32 %v968, 0.0
        %v1025 = vmax.f32 %v997, 0.0
        %v1026 = vmax.f32 %v912, 0.0
        %v1027 = vmax.f32 %v941, 0.0
        %v1028 = vmax.f32 %v970, 0.0
        %v1029 = vmax.f32 %v999, 0.0
        %v1030 = vmax.f32 %v915, 0.0
        %v1031 = vmax.f32 %v944, 0.0
        %v1032 = vmax.f32 %v973, 0.0
        %v1033 = vmax.f32 %v1002, 0.0
        %v1034 = vmax.f32 %v917, 0.0
        %v1035 = vmax.f32 %v946, 0.0
        %v1036 = vmax.f32 %v975, 0.0
        %v1037 = vmax.f32 %v1004, 0.0
        %v1038 = vpack.c.bf16 %v1010, %v1006
        %v1039 = vpack.c.bf16 %v1011, %v1007
        %v1040 = vpack.c.bf16 %v1012, %v1008
        %v1041 = vpack.c.bf16 %v1013, %v1009
        %v1042 = vpack.c.bf16 %v1018, %v1014
        %v1043 = vpack.c.bf16 %v1019, %v1015
        %v1044 = vpack.c.bf16 %v1020, %v1016
        %v1045 = vpack.c.bf16 %v1021, %v1017
        %v1046 = vpack.c.bf16 %v1026, %v1022
        %v1047 = vpack.c.bf16 %v1027, %v1023
        %v1048 = vpack.c.bf16 %v1028, %v1024
        %v1049 = vpack.c.bf16 %v1029, %v1025
        %v1050 = vpack.c.bf16 %v1034, %v1030
        %v1051 = vpack.c.bf16 %v1035, %v1031
        %v1052 = vpack.c.bf16 %v1036, %v1032
        %v1053 = vpack.c.bf16 %v1037, %v1033
        %v1054 = vld [vmem:[%s5] sm:$0xf]
        %v1055 = vld [vmem:[%s5 + $0x4] sm:$0xf]
        %v1056 = vld [vmem:[%s5 + $0x8] sm:$0xf]
        %v1057 = vld [vmem:[%s5 + $0xc] sm:$0xf]
        %v1058 = vld [vmem:[%s5 + $0x10] sm:$0xf]
        %v1059 = vld [vmem:[%s5 + $0x14] sm:$0xf]
        %v1060 = vld [vmem:[%s5 + $0x18] sm:$0xf]
        %v1061 = vld [vmem:[%s5 + $0x1c] sm:$0xf]
        %v1062 = vld [vmem:[%s6] sm:$0xff]
        %v1063 = vld [vmem:[%s6 + $0x8] sm:$0xff]
        %v1064 = vld [vmem:[%s6 + $0x10] sm:$0xff]
        %v1065 = vld [vmem:[%s6 + $0x18] sm:$0xff]
        %v1066 = vld [vmem:[%s6 + $0x20] sm:$0xff]
        %v1067 = vld [vmem:[%s6 + $0x28] sm:$0xff]
        %v1068 = vld [vmem:[%s6 + $0x30] sm:$0xff]
        %v1069 = vld [vmem:[%s6 + $0x38] sm:$0xff]
        %1071 = vset.pattern.permute.xlu0 0
        %1072 = vperm.xlu0 %1071, %v1062
        %v1073 = vpop.permute.xlu0 %1072
        %1076 = vset.pattern.permute.xlu0 0
        %1077 = vperm.xlu0 %1076, %v1063
        %v1078 = vpop.permute.xlu0 %1077
        %1081 = vset.pattern.permute.xlu0 0
        %1082 = vperm.xlu0 %1081, %v1064
        %v1083 = vpop.permute.xlu0 %1082
        %1086 = vset.pattern.permute.xlu0 0
        %1087 = vperm.xlu0 %1086, %v1065
        %v1088 = vpop.permute.xlu0 %1087
        %1091 = vset.pattern.permute.xlu0 0
        %1092 = vperm.xlu0 %1091, %v1066
        %v1093 = vpop.permute.xlu0 %1092
        %1096 = vset.pattern.permute.xlu0 0
        %1097 = vperm.xlu0 %1096, %v1067
        %v1098 = vpop.permute.xlu0 %1097
        %1101 = vset.pattern.permute.xlu0 0
        %1102 = vperm.xlu0 %1101, %v1068
        %v1103 = vpop.permute.xlu0 %1102
        %1106 = vset.pattern.permute.xlu0 0
        %1107 = vperm.xlu0 %1106, %v1069
        %v1108 = vpop.permute.xlu0 %1107
        %v1118 = vunpack.c.l.b16 %v1054
        %v1119 = vunpack.c.l.b16 %v1055
        %v1120 = vunpack.c.l.b16 %v1056
        %v1121 = vunpack.c.l.b16 %v1057
        %v1122 = vunpack.c.l.b16 %v1058
        %v1123 = vunpack.c.l.b16 %v1059
        %v1124 = vunpack.c.l.b16 %v1060
        %v1125 = vunpack.c.l.b16 %v1061
        %v1126 = vpack.c.b16 %v1119, %v1118
        %v1127 = vpack.c.b16 %v1121, %v1120
        %v1128 = vpack.c.b16 %v1123, %v1122
        %v1129 = vpack.c.b16 %v1125, %v1124
        %v1131 = vsel %vm877, %v1126, 0
        %v1134 = vsel %vm877, %v1127, 0
        %v1137 = vsel %vm877, %v1128, 0
        %v1140 = vsel %vm877, %v1129, 0
        %1142 = vmatpush.bf16.msra.mxu0 0
        %1143 = vmatpush.bf16.msra.mxu0 0
        %1144 = vmatpush.bf16.msra.mxu0 0
        %1145 = vmatpush.bf16.msra.mxu0 0
        %1146 = vmatpush.bf16.msra.mxu0 %v1050
        %1147 = vmatpush.bf16.msra.mxu0 %v1046
        %1148 = vmatpush.bf16.msra.mxu0 %v1042
        %1149 = vmatpush.bf16.msra.mxu0 %v1038
        %1150 = vmatmul.bf16.gmra.mxu0 %v1131
        %v1151 = vpop.f32.mrf.mxu0
        %v1152 = vadd.f32 %v1073, %v1151
        %v1153 = vpop.f32.mrf.mxu0
        %v1154 = vadd.f32 %v1078, %v1153
        %1155 = vmatmul.bf16.gmra.mxu0 %v1134
        %v1156 = vpop.f32.mrf.mxu0
        %v1157 = vadd.f32 %v1083, %v1156
        %v1158 = vpop.f32.mrf.mxu0
        %v1159 = vadd.f32 %v1088, %v1158
        %1160 = vmatmul.bf16.gmra.mxu0 %v1137
        %v1161 = vpop.f32.mrf.mxu0
        %v1162 = vadd.f32 %v1093, %v1161
        %v1163 = vpop.f32.mrf.mxu0
        %v1164 = vadd.f32 %v1098, %v1163
        %1165 = vmatmul.bf16.gmra.mxu0 %v1140
        %v1166 = vpop.f32.mrf.mxu0
        %v1167 = vadd.f32 %v1103, %v1166
        %v1168 = vpop.f32.mrf.mxu0
        %v1169 = vadd.f32 %v1108, %v1168
        %1170 = vdwg.mxu0
        %1171 = vmatpush.bf16.msra.mxu0 0
        %1172 = vmatpush.bf16.msra.mxu0 0
        %1173 = vmatpush.bf16.msra.mxu0 0
        %1174 = vmatpush.bf16.msra.mxu0 0
        %1175 = vmatpush.bf16.msra.mxu0 %v1051
        %1176 = vmatpush.bf16.msra.mxu0 %v1047
        %1177 = vmatpush.bf16.msra.mxu0 %v1043
        %1178 = vmatpush.bf16.msra.mxu0 %v1039
        %1179 = vmatmul.bf16.gmra.mxu0 %v1131
        %v1180 = vpop.f32.mrf.mxu0
        %v1181 = vadd.f32 %v1073, %v1180
        %v1182 = vpop.f32.mrf.mxu0
        %v1183 = vadd.f32 %v1078, %v1182
        %1184 = vmatmul.bf16.gmra.mxu0 %v1134
        %v1185 = vpop.f32.mrf.mxu0
        %v1186 = vadd.f32 %v1083, %v1185
        %v1187 = vpop.f32.mrf.mxu0
        %v1188 = vadd.f32 %v1088, %v1187
        %1189 = vmatmul.bf16.gmra.mxu0 %v1137
        %v1190 = vpop.f32.mrf.mxu0
        %v1191 = vadd.f32 %v1093, %v1190
        %v1192 = vpop.f32.mrf.mxu0
        %v1193 = vadd.f32 %v1098, %v1192
        %1194 = vmatmul.bf16.gmra.mxu0 %v1140
        %v1195 = vpop.f32.mrf.mxu0
        %v1196 = vadd.f32 %v1103, %v1195
        %v1197 = vpop.f32.mrf.mxu0
        %v1198 = vadd.f32 %v1108, %v1197
        %1199 = vdwg.mxu0
        %1200 = vmatpush.bf16.msra.mxu0 0
        %1201 = vmatpush.bf16.msra.mxu0 0
        %1202 = vmatpush.bf16.msra.mxu0 0
        %1203 = vmatpush.bf16.msra.mxu0 0
        %1204 = vmatpush.bf16.msra.mxu0 %v1052
        %1205 = vmatpush.bf16.msra.mxu0 %v1048
        %1206 = vmatpush.bf16.msra.mxu0 %v1044
        %1207 = vmatpush.bf16.msra.mxu0 %v1040
        %1208 = vmatmul.bf16.gmra.mxu0 %v1131
        %v1209 = vpop.f32.mrf.mxu0
        %v1210 = vadd.f32 %v1073, %v1209
        %v1211 = vpop.f32.mrf.mxu0
        %v1212 = vadd.f32 %v1078, %v1211
        %1213 = vmatmul.bf16.gmra.mxu0 %v1134
        %v1214 = vpop.f32.mrf.mxu0
        %v1215 = vadd.f32 %v1083, %v1214
        %v1216 = vpop.f32.mrf.mxu0
        %v1217 = vadd.f32 %v1088, %v1216
        %1218 = vmatmul.bf16.gmra.mxu0 %v1137
        %v1219 = vpop.f32.mrf.mxu0
        %v1220 = vadd.f32 %v1093, %v1219
        %v1221 = vpop.f32.mrf.mxu0
        %v1222 = vadd.f32 %v1098, %v1221
        %1223 = vmatmul.bf16.gmra.mxu0 %v1140
        %v1224 = vpop.f32.mrf.mxu0
        %v1225 = vadd.f32 %v1103, %v1224
        %v1226 = vpop.f32.mrf.mxu0
        %v1227 = vadd.f32 %v1108, %v1226
        %1228 = vdwg.mxu0
        %1229 = vmatpush.bf16.msra.mxu0 0
        %1230 = vmatpush.bf16.msra.mxu0 0
        %1231 = vmatpush.bf16.msra.mxu0 0
        %1232 = vmatpush.bf16.msra.mxu0 0
        %1233 = vmatpush.bf16.msra.mxu0 %v1053
        %1234 = vmatpush.bf16.msra.mxu0 %v1049
        %1235 = vmatpush.bf16.msra.mxu0 %v1045
        %1236 = vmatpush.bf16.msra.mxu0 %v1041
        %1237 = vmatmul.bf16.gmra.mxu0 %v1131
        %v1238 = vpop.f32.mrf.mxu0
        %v1239 = vadd.f32 %v1073, %v1238
        %v1240 = vpop.f32.mrf.mxu0
        %v1241 = vadd.f32 %v1078, %v1240
        %1242 = vmatmul.bf16.gmra.mxu0 %v1134
        %v1243 = vpop.f32.mrf.mxu0
        %v1244 = vadd.f32 %v1083, %v1243
        %v1245 = vpop.f32.mrf.mxu0
        %v1246 = vadd.f32 %v1088, %v1245
        %1247 = vmatmul.bf16.gmra.mxu0 %v1137
        %v1248 = vpop.f32.mrf.mxu0
        %v1249 = vadd.f32 %v1093, %v1248
        %v1250 = vpop.f32.mrf.mxu0
        %v1251 = vadd.f32 %v1098, %v1250
        %1252 = vmatmul.bf16.gmra.mxu0 %v1140
        %v1253 = vpop.f32.mrf.mxu0
        %v1254 = vadd.f32 %v1103, %v1253
        %v1255 = vpop.f32.mrf.mxu0
        %v1256 = vadd.f32 %v1108, %v1255
        %1257 = vdwg.mxu0
        %v1258 = vmax.f32 %v1152, 0.0
        %v1259 = vmax.f32 %v1181, 0.0
        %v1260 = vmax.f32 %v1210, 0.0
        %v1261 = vmax.f32 %v1239, 0.0
        %v1262 = vmax.f32 %v1154, 0.0
        %v1263 = vmax.f32 %v1183, 0.0
        %v1264 = vmax.f32 %v1212, 0.0
        %v1265 = vmax.f32 %v1241, 0.0
        %v1266 = vmax.f32 %v1157, 0.0
        %v1267 = vmax.f32 %v1186, 0.0
        %v1268 = vmax.f32 %v1215, 0.0
        %v1269 = vmax.f32 %v1244, 0.0
        %v1270 = vmax.f32 %v1159, 0.0
        %v1271 = vmax.f32 %v1188, 0.0
        %v1272 = vmax.f32 %v1217, 0.0
        %v1273 = vmax.f32 %v1246, 0.0
        %v1274 = vmax.f32 %v1162, 0.0
        %v1275 = vmax.f32 %v1191, 0.0
        %v1276 = vmax.f32 %v1220, 0.0
        %v1277 = vmax.f32 %v1249, 0.0
        %v1278 = vmax.f32 %v1164, 0.0
        %v1279 = vmax.f32 %v1193, 0.0
        %v1280 = vmax.f32 %v1222, 0.0
        %v1281 = vmax.f32 %v1251, 0.0
        %v1282 = vmax.f32 %v1167, 0.0
        %v1283 = vmax.f32 %v1196, 0.0
        %v1284 = vmax.f32 %v1225, 0.0
        %v1285 = vmax.f32 %v1254, 0.0
        %v1286 = vmax.f32 %v1169, 0.0
        %v1287 = vmax.f32 %v1198, 0.0
        %v1288 = vmax.f32 %v1227, 0.0
        %v1289 = vmax.f32 %v1256, 0.0
        %v1290 = vpack.c.bf16 %v1262, %v1258
        %v1291 = vpack.c.bf16 %v1263, %v1259
        %v1292 = vpack.c.bf16 %v1264, %v1260
        %v1293 = vpack.c.bf16 %v1265, %v1261
        %v1294 = vpack.c.bf16 %v1270, %v1266
        %v1295 = vpack.c.bf16 %v1271, %v1267
        %v1296 = vpack.c.bf16 %v1272, %v1268
        %v1297 = vpack.c.bf16 %v1273, %v1269
        %v1298 = vpack.c.bf16 %v1278, %v1274
        %v1299 = vpack.c.bf16 %v1279, %v1275
        %v1300 = vpack.c.bf16 %v1280, %v1276
        %v1301 = vpack.c.bf16 %v1281, %v1277
        %v1302 = vpack.c.bf16 %v1286, %v1282
        %v1303 = vpack.c.bf16 %v1287, %v1283
        %v1304 = vpack.c.bf16 %v1288, %v1284
        %v1305 = vpack.c.bf16 %v1289, %v1285
        %v1306 = vld [vmem:[%s7] sm:$0xf]
        %v1307 = vld [vmem:[%s7 + $0x4] sm:$0xf]
        %v1308 = vld [vmem:[%s7 + $0x8] sm:$0xf]
        %v1309 = vld [vmem:[%s7 + $0xc] sm:$0xf]
        %v1310 = vld [vmem:[%s7 + $0x10] sm:$0xf]
        %v1311 = vld [vmem:[%s7 + $0x14] sm:$0xf]
        %v1312 = vld [vmem:[%s7 + $0x18] sm:$0xf]
        %v1313 = vld [vmem:[%s7 + $0x1c] sm:$0xf]
        %v1314 = vld [vmem:[%s7 + $0x20] sm:$0xf]
        %v1315 = vld [vmem:[%s7 + $0x24] sm:$0xf]
        %v1316 = vld [vmem:[%s7 + $0x28] sm:$0xf]
        %v1317 = vld [vmem:[%s7 + $0x2c] sm:$0xf]
        %v1318 = vld [vmem:[%s7 + $0x30] sm:$0xf]
        %v1319 = vld [vmem:[%s7 + $0x34] sm:$0xf]
        %v1320 = vld [vmem:[%s7 + $0x38] sm:$0xf]
        %v1321 = vld [vmem:[%s7 + $0x3c] sm:$0xf]
        %v1322 = vld [vmem:[%s8] sm:$0xff]
        %v1323 = vld [vmem:[%s8 + $0x8] sm:$0xff]
        %v1324 = vld [vmem:[%s8 + $0x10] sm:$0xff]
        %v1325 = vld [vmem:[%s8 + $0x18] sm:$0xff]
        %v1326 = vld [vmem:[%s8 + $0x20] sm:$0xff]
        %v1327 = vld [vmem:[%s8 + $0x28] sm:$0xff]
        %v1328 = vld [vmem:[%s8 + $0x30] sm:$0xff]
        %v1329 = vld [vmem:[%s8 + $0x38] sm:$0xff]
        %v1330 = vld [vmem:[%s8 + $0x40] sm:$0xff]
        %v1331 = vld [vmem:[%s8 + $0x48] sm:$0xff]
        %v1332 = vld [vmem:[%s8 + $0x50] sm:$0xff]
        %v1333 = vld [vmem:[%s8 + $0x58] sm:$0xff]
        %v1334 = vld [vmem:[%s8 + $0x60] sm:$0xff]
        %v1335 = vld [vmem:[%s8 + $0x68] sm:$0xff]
        %v1336 = vld [vmem:[%s8 + $0x70] sm:$0xff]
        %v1337 = vld [vmem:[%s8 + $0x78] sm:$0xff]
        %1339 = vset.pattern.permute.xlu0 0
        %1340 = vperm.xlu0 %1339, %v1322
        %v1341 = vpop.permute.xlu0 %1340
        %1344 = vset.pattern.permute.xlu0 0
        %1345 = vperm.xlu0 %1344, %v1323
        %v1346 = vpop.permute.xlu0 %1345
        %1349 = vset.pattern.permute.xlu0 0
        %1350 = vperm.xlu0 %1349, %v1324
        %v1351 = vpop.permute.xlu0 %1350
        %1354 = vset.pattern.permute.xlu0 0
        %1355 = vperm.xlu0 %1354, %v1325
        %v1356 = vpop.permute.xlu0 %1355
        %1359 = vset.pattern.permute.xlu0 0
        %1360 = vperm.xlu0 %1359, %v1326
        %v1361 = vpop.permute.xlu0 %1360
        %1364 = vset.pattern.permute.xlu0 0
        %1365 = vperm.xlu0 %1364, %v1327
        %v1366 = vpop.permute.xlu0 %1365
        %1369 = vset.pattern.permute.xlu0 0
        %1370 = vperm.xlu0 %1369, %v1328
        %v1371 = vpop.permute.xlu0 %1370
        %1374 = vset.pattern.permute.xlu0 0
        %1375 = vperm.xlu0 %1374, %v1329
        %v1376 = vpop.permute.xlu0 %1375
        %1379 = vset.pattern.permute.xlu0 0
        %1380 = vperm.xlu0 %1379, %v1330
        %v1381 = vpop.permute.xlu0 %1380
        %1384 = vset.pattern.permute.xlu0 0
        %1385 = vperm.xlu0 %1384, %v1331
        %v1386 = vpop.permute.xlu0 %1385
        %1389 = vset.pattern.permute.xlu0 0
        %1390 = vperm.xlu0 %1389, %v1332
        %v1391 = vpop.permute.xlu0 %1390
        %1394 = vset.pattern.permute.xlu0 0
        %1395 = vperm.xlu0 %1394, %v1333
        %v1396 = vpop.permute.xlu0 %1395
        %1399 = vset.pattern.permute.xlu0 0
        %1400 = vperm.xlu0 %1399, %v1334
        %v1401 = vpop.permute.xlu0 %1400
        %1404 = vset.pattern.permute.xlu0 0
        %1405 = vperm.xlu0 %1404, %v1335
        %v1406 = vpop.permute.xlu0 %1405
        %1409 = vset.pattern.permute.xlu0 0
        %1410 = vperm.xlu0 %1409, %v1336
        %v1411 = vpop.permute.xlu0 %1410
        %1414 = vset.pattern.permute.xlu0 0
        %1415 = vperm.xlu0 %1414, %v1337
        %v1416 = vpop.permute.xlu0 %1415
        %v1434 = vunpack.c.l.b16 %v1306
        %v1435 = vunpack.c.l.b16 %v1307
        %v1436 = vunpack.c.l.b16 %v1308
        %v1437 = vunpack.c.l.b16 %v1309
        %v1438 = vunpack.c.l.b16 %v1310
        %v1439 = vunpack.c.l.b16 %v1311
        %v1440 = vunpack.c.l.b16 %v1312
        %v1441 = vunpack.c.l.b16 %v1313
        %v1442 = vunpack.c.l.b16 %v1314
        %v1443 = vunpack.c.l.b16 %v1315
        %v1444 = vunpack.c.l.b16 %v1316
        %v1445 = vunpack.c.l.b16 %v1317
        %v1446 = vunpack.c.l.b16 %v1318
        %v1447 = vunpack.c.l.b16 %v1319
        %v1448 = vunpack.c.l.b16 %v1320
        %v1449 = vunpack.c.l.b16 %v1321
        %v1450 = vpack.c.b16 %v1435, %v1434
        %v1451 = vpack.c.b16 %v1437, %v1436
        %v1452 = vpack.c.b16 %v1439, %v1438
        %v1453 = vpack.c.b16 %v1441, %v1440
        %v1454 = vpack.c.b16 %v1443, %v1442
        %v1455 = vpack.c.b16 %v1445, %v1444
        %v1456 = vpack.c.b16 %v1447, %v1446
        %v1457 = vpack.c.b16 %v1449, %v1448
        %v1459 = vsel %vm877, %v1450, 0
        %v1462 = vsel %vm877, %v1451, 0
        %v1465 = vsel %vm877, %v1452, 0
        %v1468 = vsel %vm877, %v1453, 0
        %v1471 = vsel %vm877, %v1454, 0
        %v1474 = vsel %vm877, %v1455, 0
        %v1477 = vsel %vm877, %v1456, 0
        %v1480 = vsel %vm877, %v1457, 0
        %1482 = vmatpush.bf16.msra.mxu0 0
        %1483 = vmatpush.bf16.msra.mxu0 0
        %1484 = vmatpush.bf16.msra.mxu0 0
        %1485 = vmatpush.bf16.msra.mxu0 0
        %1486 = vmatpush.bf16.msra.mxu0 %v1302
        %1487 = vmatpush.bf16.msra.mxu0 %v1298
        %1488 = vmatpush.bf16.msra.mxu0 %v1294
        %1489 = vmatpush.bf16.msra.mxu0 %v1290
        %1490 = vmatmul.bf16.gmra.mxu0 %v1459
        %v1491 = vpop.f32.mrf.mxu0
        %v1492 = vadd.f32 %v1341, %v1491
        %v1493 = vpop.f32.mrf.mxu0
        %v1494 = vadd.f32 %v1346, %v1493
        %1495 = vmatmul.bf16.gmra.mxu0 %v1462
        %v1496 = vpop.f32.mrf.mxu0
        %v1497 = vadd.f32 %v1351, %v1496
        %v1498 = vpop.f32.mrf.mxu0
        %v1499 = vadd.f32 %v1356, %v1498
        %1500 = vmatmul.bf16.gmra.mxu0 %v1465
        %v1501 = vpop.f32.mrf.mxu0
        %v1502 = vadd.f32 %v1361, %v1501
        %v1503 = vpop.f32.mrf.mxu0
        %v1504 = vadd.f32 %v1366, %v1503
        %1505 = vmatmul.bf16.gmra.mxu0 %v1468
        %v1506 = vpop.f32.mrf.mxu0
        %v1507 = vadd.f32 %v1371, %v1506
        %v1508 = vpop.f32.mrf.mxu0
        %v1509 = vadd.f32 %v1376, %v1508
        %1510 = vmatmul.bf16.gmra.mxu0 %v1471
        %v1511 = vpop.f32.mrf.mxu0
        %v1512 = vadd.f32 %v1381, %v1511
        %v1513 = vpop.f32.mrf.mxu0
        %v1514 = vadd.f32 %v1386, %v1513
        %1515 = vmatmul.bf16.gmra.mxu0 %v1474
        %v1516 = vpop.f32.mrf.mxu0
        %v1517 = vadd.f32 %v1391, %v1516
        %v1518 = vpop.f32.mrf.mxu0
        %v1519 = vadd.f32 %v1396, %v1518
        %1520 = vmatmul.bf16.gmra.mxu0 %v1477
        %v1521 = vpop.f32.mrf.mxu0
        %v1522 = vadd.f32 %v1401, %v1521
        %v1523 = vpop.f32.mrf.mxu0
        %v1524 = vadd.f32 %v1406, %v1523
        %1525 = vmatmul.bf16.gmra.mxu0 %v1480
        %v1526 = vpop.f32.mrf.mxu0
        %v1527 = vadd.f32 %v1411, %v1526
        %v1528 = vpop.f32.mrf.mxu0
        %v1529 = vadd.f32 %v1416, %v1528
        %1530 = vdwg.mxu0
        %1531 = vmatpush.bf16.msra.mxu0 0
        %1532 = vmatpush.bf16.msra.mxu0 0
        %1533 = vmatpush.bf16.msra.mxu0 0
        %1534 = vmatpush.bf16.msra.mxu0 0
        %1535 = vmatpush.bf16.msra.mxu0 %v1303
        %1536 = vmatpush.bf16.msra.mxu0 %v1299
        %1537 = vmatpush.bf16.msra.mxu0 %v1295
        %1538 = vmatpush.bf16.msra.mxu0 %v1291
        %1539 = vmatmul.bf16.gmra.mxu0 %v1459
        %v1540 = vpop.f32.mrf.mxu0
        %v1541 = vadd.f32 %v1341, %v1540
        %v1542 = vpop.f32.mrf.mxu0
        %v1543 = vadd.f32 %v1346, %v1542
        %1544 = vmatmul.bf16.gmra.mxu0 %v1462
        %v1545 = vpop.f32.mrf.mxu0
        %v1546 = vadd.f32 %v1351, %v1545
        %v1547 = vpop.f32.mrf.mxu0
        %v1548 = vadd.f32 %v1356, %v1547
        %1549 = vmatmul.bf16.gmra.mxu0 %v1465
        %v1550 = vpop.f32.mrf.mxu0
        %v1551 = vadd.f32 %v1361, %v1550
        %v1552 = vpop.f32.mrf.mxu0
        %v1553 = vadd.f32 %v1366, %v1552
        %1554 = vmatmul.bf16.gmra.mxu0 %v1468
        %v1555 = vpop.f32.mrf.mxu0
        %v1556 = vadd.f32 %v1371, %v1555
        %v1557 = vpop.f32.mrf.mxu0
        %v1558 = vadd.f32 %v1376, %v1557
        %1559 = vmatmul.bf16.gmra.mxu0 %v1471
        %v1560 = vpop.f32.mrf.mxu0
        %v1561 = vadd.f32 %v1381, %v1560
        %v1562 = vpop.f32.mrf.mxu0
        %v1563 = vadd.f32 %v1386, %v1562
        %1564 = vmatmul.bf16.gmra.mxu0 %v1474
        %v1565 = vpop.f32.mrf.mxu0
        %v1566 = vadd.f32 %v1391, %v1565
        %v1567 = vpop.f32.mrf.mxu0
        %v1568 = vadd.f32 %v1396, %v1567
        %1569 = vmatmul.bf16.gmra.mxu0 %v1477
        %v1570 = vpop.f32.mrf.mxu0
        %v1571 = vadd.f32 %v1401, %v1570
        %v1572 = vpop.f32.mrf.mxu0
        %v1573 = vadd.f32 %v1406, %v1572
        %1574 = vmatmul.bf16.gmra.mxu0 %v1480
        %v1575 = vpop.f32.mrf.mxu0
        %v1576 = vadd.f32 %v1411, %v1575
        %v1577 = vpop.f32.mrf.mxu0
        %v1578 = vadd.f32 %v1416, %v1577
        %1579 = vdwg.mxu0
        %1580 = vmatpush.bf16.msra.mxu0 0
        %1581 = vmatpush.bf16.msra.mxu0 0
        %1582 = vmatpush.bf16.msra.mxu0 0
        %1583 = vmatpush.bf16.msra.mxu0 0
        %1584 = vmatpush.bf16.msra.mxu0 %v1304
        %1585 = vmatpush.bf16.msra.mxu0 %v1300
        %1586 = vmatpush.bf16.msra.mxu0 %v1296
        %1587 = vmatpush.bf16.msra.mxu0 %v1292
        %1588 = vmatmul.bf16.gmra.mxu0 %v1459
        %v1589 = vpop.f32.mrf.mxu0
        %v1590 = vadd.f32 %v1341, %v1589
        %v1591 = vpop.f32.mrf.mxu0
        %v1592 = vadd.f32 %v1346, %v1591
        %1593 = vmatmul.bf16.gmra.mxu0 %v1462
        %v1594 = vpop.f32.mrf.mxu0
        %v1595 = vadd.f32 %v1351, %v1594
        %v1596 = vpop.f32.mrf.mxu0
        %v1597 = vadd.f32 %v1356, %v1596
        %1598 = vmatmul.bf16.gmra.mxu0 %v1465
        %v1599 = vpop.f32.mrf.mxu0
        %v1600 = vadd.f32 %v1361, %v1599
        %v1601 = vpop.f32.mrf.mxu0
        %v1602 = vadd.f32 %v1366, %v1601
        %1603 = vmatmul.bf16.gmra.mxu0 %v1468
        %v1604 = vpop.f32.mrf.mxu0
        %v1605 = vadd.f32 %v1371, %v1604
        %v1606 = vpop.f32.mrf.mxu0
        %v1607 = vadd.f32 %v1376, %v1606
        %1608 = vmatmul.bf16.gmra.mxu0 %v1471
        %v1609 = vpop.f32.mrf.mxu0
        %v1610 = vadd.f32 %v1381, %v1609
        %v1611 = vpop.f32.mrf.mxu0
        %v1612 = vadd.f32 %v1386, %v1611
        %1613 = vmatmul.bf16.gmra.mxu0 %v1474
        %v1614 = vpop.f32.mrf.mxu0
        %v1615 = vadd.f32 %v1391, %v1614
        %v1616 = vpop.f32.mrf.mxu0
        %v1617 = vadd.f32 %v1396, %v1616
        %1618 = vmatmul.bf16.gmra.mxu0 %v1477
        %v1619 = vpop.f32.mrf.mxu0
        %v1620 = vadd.f32 %v1401, %v1619
        %v1621 = vpop.f32.mrf.mxu0
        %v1622 = vadd.f32 %v1406, %v1621
        %1623 = vmatmul.bf16.gmra.mxu0 %v1480
        %v1624 = vpop.f32.mrf.mxu0
        %v1625 = vadd.f32 %v1411, %v1624
        %v1626 = vpop.f32.mrf.mxu0
        %v1627 = vadd.f32 %v1416, %v1626
        %1628 = vdwg.mxu0
        %1629 = vmatpush.bf16.msra.mxu0 0
        %1630 = vmatpush.bf16.msra.mxu0 0
        %1631 = vmatpush.bf16.msra.mxu0 0
        %1632 = vmatpush.bf16.msra.mxu0 0
        %1633 = vmatpush.bf16.msra.mxu0 %v1305
        %1634 = vmatpush.bf16.msra.mxu0 %v1301
        %1635 = vmatpush.bf16.msra.mxu0 %v1297
        %1636 = vmatpush.bf16.msra.mxu0 %v1293
        %1637 = vmatmul.bf16.gmra.mxu0 %v1459
        %v1638 = vpop.f32.mrf.mxu0
        %v1639 = vadd.f32 %v1341, %v1638
        %v1640 = vpop.f32.mrf.mxu0
        %v1641 = vadd.f32 %v1346, %v1640
        %1642 = vmatmul.bf16.gmra.mxu0 %v1462
        %v1643 = vpop.f32.mrf.mxu0
        %v1644 = vadd.f32 %v1351, %v1643
        %v1645 = vpop.f32.mrf.mxu0
        %v1646 = vadd.f32 %v1356, %v1645
        %1647 = vmatmul.bf16.gmra.mxu0 %v1465
        %v1648 = vpop.f32.mrf.mxu0
        %v1649 = vadd.f32 %v1361, %v1648
        %v1650 = vpop.f32.mrf.mxu0
        %v1651 = vadd.f32 %v1366, %v1650
        %1652 = vmatmul.bf16.gmra.mxu0 %v1468
        %v1653 = vpop.f32.mrf.mxu0
        %v1654 = vadd.f32 %v1371, %v1653
        %v1655 = vpop.f32.mrf.mxu0
        %v1656 = vadd.f32 %v1376, %v1655
        %1657 = vmatmul.bf16.gmra.mxu0 %v1471
        %v1658 = vpop.f32.mrf.mxu0
        %v1659 = vadd.f32 %v1381, %v1658
        %v1660 = vpop.f32.mrf.mxu0
        %v1661 = vadd.f32 %v1386, %v1660
        %1662 = vmatmul.bf16.gmra.mxu0 %v1474
        %v1663 = vpop.f32.mrf.mxu0
        %v1664 = vadd.f32 %v1391, %v1663
        %v1665 = vpop.f32.mrf.mxu0
        %v1666 = vadd.f32 %v1396, %v1665
        %1667 = vmatmul.bf16.gmra.mxu0 %v1477
        %v1668 = vpop.f32.mrf.mxu0
        %v1669 = vadd.f32 %v1401, %v1668
        %v1670 = vpop.f32.mrf.mxu0
        %v1671 = vadd.f32 %v1406, %v1670
        %1672 = vmatmul.bf16.gmra.mxu0 %v1480
        %v1673 = vpop.f32.mrf.mxu0
        %v1674 = vadd.f32 %v1411, %v1673
        %v1675 = vpop.f32.mrf.mxu0
        %v1676 = vadd.f32 %v1416, %v1675
        %1677 = vdwg.mxu0
        %v1678 = vmax.f32 %v1492, 0.0
        %v1679 = vmax.f32 %v1541, 0.0
        %v1680 = vmax.f32 %v1590, 0.0
        %v1681 = vmax.f32 %v1639, 0.0
        %v1682 = vmax.f32 %v1494, 0.0
        %v1683 = vmax.f32 %v1543, 0.0
        %v1684 = vmax.f32 %v1592, 0.0
        %v1685 = vmax.f32 %v1641, 0.0
        %v1686 = vmax.f32 %v1497, 0.0
        %v1687 = vmax.f32 %v1546, 0.0
        %v1688 = vmax.f32 %v1595, 0.0
        %v1689 = vmax.f32 %v1644, 0.0
        %v1690 = vmax.f32 %v1499, 0.0
        %v1691 = vmax.f32 %v1548, 0.0
        %v1692 = vmax.f32 %v1597, 0.0
        %v1693 = vmax.f32 %v1646, 0.0
        %v1694 = vmax.f32 %v1502, 0.0
        %v1695 = vmax.f32 %v1551, 0.0
        %v1696 = vmax.f32 %v1600, 0.0
        %v1697 = vmax.f32 %v1649, 0.0
        %v1698 = vmax.f32 %v1504, 0.0
        %v1699 = vmax.f32 %v1553, 0.0
        %v1700 = vmax.f32 %v1602, 0.0
        %v1701 = vmax.f32 %v1651, 0.0
        %v1702 = vmax.f32 %v1507, 0.0
        %v1703 = vmax.f32 %v1556, 0.0
        %v1704 = vmax.f32 %v1605, 0.0
        %v1705 = vmax.f32 %v1654, 0.0
        %v1706 = vmax.f32 %v1509, 0.0
        %v1707 = vmax.f32 %v1558, 0.0
        %v1708 = vmax.f32 %v1607, 0.0
        %v1709 = vmax.f32 %v1656, 0.0
        %v1710 = vmax.f32 %v1512, 0.0
        %v1711 = vmax.f32 %v1561, 0.0
        %v1712 = vmax.f32 %v1610, 0.0
        %v1713 = vmax.f32 %v1659, 0.0
        %v1714 = vmax.f32 %v1514, 0.0
        %v1715 = vmax.f32 %v1563, 0.0
        %v1716 = vmax.f32 %v1612, 0.0
        %v1717 = vmax.f32 %v1661, 0.0
        %v1718 = vmax.f32 %v1517, 0.0
        %v1719 = vmax.f32 %v1566, 0.0
        %v1720 = vmax.f32 %v1615, 0.0
        %v1721 = vmax.f32 %v1664, 0.0
        %v1722 = vmax.f32 %v1519, 0.0
        %v1723 = vmax.f32 %v1568, 0.0
        %v1724 = vmax.f32 %v1617, 0.0
        %v1725 = vmax.f32 %v1666, 0.0
        %v1726 = vmax.f32 %v1522, 0.0
        %v1727 = vmax.f32 %v1571, 0.0
        %v1728 = vmax.f32 %v1620, 0.0
        %v1729 = vmax.f32 %v1669, 0.0
        %v1730 = vmax.f32 %v1524, 0.0
        %v1731 = vmax.f32 %v1573, 0.0
        %v1732 = vmax.f32 %v1622, 0.0
        %v1733 = vmax.f32 %v1671, 0.0
        %v1734 = vmax.f32 %v1527, 0.0
        %v1735 = vmax.f32 %v1576, 0.0
        %v1736 = vmax.f32 %v1625, 0.0
        %v1737 = vmax.f32 %v1674, 0.0
        %v1738 = vmax.f32 %v1529, 0.0
        %v1739 = vmax.f32 %v1578, 0.0
        %v1740 = vmax.f32 %v1627, 0.0
        %v1741 = vmax.f32 %v1676, 0.0
        %v1742 = vpack.c.bf16 %v1682, %v1678
        %v1743 = vpack.c.bf16 %v1683, %v1679
        %v1744 = vpack.c.bf16 %v1684, %v1680
        %v1745 = vpack.c.bf16 %v1685, %v1681
        %v1746 = vpack.c.bf16 %v1690, %v1686
        %v1747 = vpack.c.bf16 %v1691, %v1687
        %v1748 = vpack.c.bf16 %v1692, %v1688
        %v1749 = vpack.c.bf16 %v1693, %v1689
        %v1750 = vpack.c.bf16 %v1698, %v1694
        %v1751 = vpack.c.bf16 %v1699, %v1695
        %v1752 = vpack.c.bf16 %v1700, %v1696
        %v1753 = vpack.c.bf16 %v1701, %v1697
        %v1754 = vpack.c.bf16 %v1706, %v1702
        %v1755 = vpack.c.bf16 %v1707, %v1703
        %v1756 = vpack.c.bf16 %v1708, %v1704
        %v1757 = vpack.c.bf16 %v1709, %v1705
        %v1758 = vpack.c.bf16 %v1714, %v1710
        %v1759 = vpack.c.bf16 %v1715, %v1711
        %v1760 = vpack.c.bf16 %v1716, %v1712
        %v1761 = vpack.c.bf16 %v1717, %v1713
        %v1762 = vpack.c.bf16 %v1722, %v1718
        %v1763 = vpack.c.bf16 %v1723, %v1719
        %v1764 = vpack.c.bf16 %v1724, %v1720
        %v1765 = vpack.c.bf16 %v1725, %v1721
        %v1766 = vpack.c.bf16 %v1730, %v1726
        %v1767 = vpack.c.bf16 %v1731, %v1727
        %v1768 = vpack.c.bf16 %v1732, %v1728
        %v1769 = vpack.c.bf16 %v1733, %v1729
        %v1770 = vpack.c.bf16 %v1738, %v1734
        %v1771 = vpack.c.bf16 %v1739, %v1735
        %v1772 = vpack.c.bf16 %v1740, %v1736
        %v1773 = vpack.c.bf16 %v1741, %v1737
        %v1774 = vld [vmem:[%s9] sm:$0xf]
        %v1775 = vld [vmem:[%s9 + $0x4] sm:$0xf]
        %v1776 = vld [vmem:[%s9 + $0x8] sm:$0xf]
        %v1777 = vld [vmem:[%s9 + $0xc] sm:$0xf]
        %v1778 = vld [vmem:[%s9 + $0x10] sm:$0xf]
        %v1779 = vld [vmem:[%s9 + $0x14] sm:$0xf]
        %v1780 = vld [vmem:[%s9 + $0x18] sm:$0xf]
        %v1781 = vld [vmem:[%s9 + $0x1c] sm:$0xf]
        %v1782 = vld [vmem:[%s9 + $0x20] sm:$0xf]
        %v1783 = vld [vmem:[%s9 + $0x24] sm:$0xf]
        %v1784 = vld [vmem:[%s9 + $0x28] sm:$0xf]
        %v1785 = vld [vmem:[%s9 + $0x2c] sm:$0xf]
        %v1786 = vld [vmem:[%s9 + $0x30] sm:$0xf]
        %v1787 = vld [vmem:[%s9 + $0x34] sm:$0xf]
        %v1788 = vld [vmem:[%s9 + $0x38] sm:$0xf]
        %v1789 = vld [vmem:[%s9 + $0x3c] sm:$0xf]
        %v1790 = vld [vmem:[%s10] sm:$0xff]
        %v1791 = vld [vmem:[%s10 + $0x8] sm:$0xff]
        %v1792 = vld [vmem:[%s10 + $0x10] sm:$0xff]
        %v1793 = vld [vmem:[%s10 + $0x18] sm:$0xff]
        %v1794 = vld [vmem:[%s10 + $0x20] sm:$0xff]
        %v1795 = vld [vmem:[%s10 + $0x28] sm:$0xff]
        %v1796 = vld [vmem:[%s10 + $0x30] sm:$0xff]
        %v1797 = vld [vmem:[%s10 + $0x38] sm:$0xff]
        %v1798 = vld [vmem:[%s10 + $0x40] sm:$0xff]
        %v1799 = vld [vmem:[%s10 + $0x48] sm:$0xff]
        %v1800 = vld [vmem:[%s10 + $0x50] sm:$0xff]
        %v1801 = vld [vmem:[%s10 + $0x58] sm:$0xff]
        %v1802 = vld [vmem:[%s10 + $0x60] sm:$0xff]
        %v1803 = vld [vmem:[%s10 + $0x68] sm:$0xff]
        %v1804 = vld [vmem:[%s10 + $0x70] sm:$0xff]
        %v1805 = vld [vmem:[%s10 + $0x78] sm:$0xff]
        %1807 = vset.pattern.permute.xlu0 0
        %1808 = vperm.xlu0 %1807, %v1790
        %v1809 = vpop.permute.xlu0 %1808
        %1812 = vset.pattern.permute.xlu0 0
        %1813 = vperm.xlu0 %1812, %v1791
        %v1814 = vpop.permute.xlu0 %1813
        %1817 = vset.pattern.permute.xlu0 0
        %1818 = vperm.xlu0 %1817, %v1792
        %v1819 = vpop.permute.xlu0 %1818
        %1822 = vset.pattern.permute.xlu0 0
        %1823 = vperm.xlu0 %1822, %v1793
        %v1824 = vpop.permute.xlu0 %1823
        %1827 = vset.pattern.permute.xlu0 0
        %1828 = vperm.xlu0 %1827, %v1794
        %v1829 = vpop.permute.xlu0 %1828
        %1832 = vset.pattern.permute.xlu0 0
        %1833 = vperm.xlu0 %1832, %v1795
        %v1834 = vpop.permute.xlu0 %1833
        %1837 = vset.pattern.permute.xlu0 0
        %1838 = vperm.xlu0 %1837, %v1796
        %v1839 = vpop.permute.xlu0 %1838
        %1842 = vset.pattern.permute.xlu0 0
        %1843 = vperm.xlu0 %1842, %v1797
        %v1844 = vpop.permute.xlu0 %1843
        %1847 = vset.pattern.permute.xlu0 0
        %1848 = vperm.xlu0 %1847, %v1798
        %v1849 = vpop.permute.xlu0 %1848
        %1852 = vset.pattern.permute.xlu0 0
        %1853 = vperm.xlu0 %1852, %v1799
        %v1854 = vpop.permute.xlu0 %1853
        %1857 = vset.pattern.permute.xlu0 0
        %1858 = vperm.xlu0 %1857, %v1800
        %v1859 = vpop.permute.xlu0 %1858
        %1862 = vset.pattern.permute.xlu0 0
        %1863 = vperm.xlu0 %1862, %v1801
        %v1864 = vpop.permute.xlu0 %1863
        %1867 = vset.pattern.permute.xlu0 0
        %1868 = vperm.xlu0 %1867, %v1802
        %v1869 = vpop.permute.xlu0 %1868
        %1872 = vset.pattern.permute.xlu0 0
        %1873 = vperm.xlu0 %1872, %v1803
        %v1874 = vpop.permute.xlu0 %1873
        %1877 = vset.pattern.permute.xlu0 0
        %1878 = vperm.xlu0 %1877, %v1804
        %v1879 = vpop.permute.xlu0 %1878
        %1882 = vset.pattern.permute.xlu0 0
        %1883 = vperm.xlu0 %1882, %v1805
        %v1884 = vpop.permute.xlu0 %1883
        %v1902 = vunpack.c.l.b16 %v1774
        %v1903 = vunpack.c.l.b16 %v1775
        %v1904 = vunpack.c.l.b16 %v1776
        %v1905 = vunpack.c.l.b16 %v1777
        %v1906 = vunpack.c.l.b16 %v1778
        %v1907 = vunpack.c.l.b16 %v1779
        %v1908 = vunpack.c.l.b16 %v1780
        %v1909 = vunpack.c.l.b16 %v1781
        %v1910 = vunpack.c.l.b16 %v1782
        %v1911 = vunpack.c.l.b16 %v1783
        %v1912 = vunpack.c.l.b16 %v1784
        %v1913 = vunpack.c.l.b16 %v1785
        %v1914 = vunpack.c.l.b16 %v1786
        %v1915 = vunpack.c.l.b16 %v1787
        %v1916 = vunpack.c.l.b16 %v1788
        %v1917 = vunpack.c.l.b16 %v1789
        %v1918 = vpack.c.b16 %v1903, %v1902
        %v1919 = vpack.c.b16 %v1905, %v1904
        %v1920 = vpack.c.b16 %v1907, %v1906
        %v1921 = vpack.c.b16 %v1909, %v1908
        %v1922 = vpack.c.b16 %v1911, %v1910
        %v1923 = vpack.c.b16 %v1913, %v1912
        %v1924 = vpack.c.b16 %v1915, %v1914
        %v1925 = vpack.c.b16 %v1917, %v1916
        %1934 = vmatpush.bf16.msra.mxu0 %v1770
        %1935 = vmatpush.bf16.msra.mxu0 %v1766
        %1936 = vmatpush.bf16.msra.mxu0 %v1762
        %1937 = vmatpush.bf16.msra.mxu0 %v1758
        %1938 = vmatpush.bf16.msra.mxu0 %v1754
        %1939 = vmatpush.bf16.msra.mxu0 %v1750
        %1940 = vmatpush.bf16.msra.mxu0 %v1746
        %1941 = vmatpush.bf16.msra.mxu0 %v1742
        %1942 = vmatmul.bf16.gmra.mxu0 %v1918
        %v1943 = vpop.f32.mrf.mxu0
        %v1944 = vadd.f32 %v1809, %v1943
        %v1945 = vpop.f32.mrf.mxu0
        %v1946 = vadd.f32 %v1814, %v1945
        %1947 = vmatmul.bf16.gmra.mxu0 %v1919
        %v1948 = vpop.f32.mrf.mxu0
        %v1949 = vadd.f32 %v1819, %v1948
        %v1950 = vpop.f32.mrf.mxu0
        %v1951 = vadd.f32 %v1824, %v1950
        %1952 = vmatmul.bf16.gmra.mxu0 %v1920
        %v1953 = vpop.f32.mrf.mxu0
        %v1954 = vadd.f32 %v1829, %v1953
        %v1955 = vpop.f32.mrf.mxu0
        %v1956 = vadd.f32 %v1834, %v1955
        %1957 = vmatmul.bf16.gmra.mxu0 %v1921
        %v1958 = vpop.f32.mrf.mxu0
        %v1959 = vadd.f32 %v1839, %v1958
        %v1960 = vpop.f32.mrf.mxu0
        %v1961 = vadd.f32 %v1844, %v1960
        %1962 = vmatmul.bf16.gmra.mxu0 %v1922
        %v1963 = vpop.f32.mrf.mxu0
        %v1964 = vadd.f32 %v1849, %v1963
        %v1965 = vpop.f32.mrf.mxu0
        %v1966 = vadd.f32 %v1854, %v1965
        %1967 = vmatmul.bf16.gmra.mxu0 %v1923
        %v1968 = vpop.f32.mrf.mxu0
        %v1969 = vadd.f32 %v1859, %v1968
        %v1970 = vpop.f32.mrf.mxu0
        %v1971 = vadd.f32 %v1864, %v1970
        %1972 = vmatmul.bf16.gmra.mxu0 %v1924
        %v1973 = vpop.f32.mrf.mxu0
        %v1974 = vadd.f32 %v1869, %v1973
        %v1975 = vpop.f32.mrf.mxu0
        %v1976 = vadd.f32 %v1874, %v1975
        %1977 = vmatmul.bf16.gmra.mxu0 %v1925
        %v1978 = vpop.f32.mrf.mxu0
        %v1979 = vadd.f32 %v1879, %v1978
        %v1980 = vpop.f32.mrf.mxu0
        %v1981 = vadd.f32 %v1884, %v1980
        %1982 = vdwg.mxu0
        %1983 = vmatpush.bf16.msra.mxu0 %v1771
        %1984 = vmatpush.bf16.msra.mxu0 %v1767
        %1985 = vmatpush.bf16.msra.mxu0 %v1763
        %1986 = vmatpush.bf16.msra.mxu0 %v1759
        %1987 = vmatpush.bf16.msra.mxu0 %v1755
        %1988 = vmatpush.bf16.msra.mxu0 %v1751
        %1989 = vmatpush.bf16.msra.mxu0 %v1747
        %1990 = vmatpush.bf16.msra.mxu0 %v1743
        %1991 = vmatmul.bf16.gmra.mxu0 %v1918
        %v1992 = vpop.f32.mrf.mxu0
        %v1993 = vadd.f32 %v1809, %v1992
        %v1994 = vpop.f32.mrf.mxu0
        %v1995 = vadd.f32 %v1814, %v1994
        %1996 = vmatmul.bf16.gmra.mxu0 %v1919
        %v1997 = vpop.f32.mrf.mxu0
        %v1998 = vadd.f32 %v1819, %v1997
        %v1999 = vpop.f32.mrf.mxu0
        %v2000 = vadd.f32 %v1824, %v1999
        %2001 = vmatmul.bf16.gmra.mxu0 %v1920
        %v2002 = vpop.f32.mrf.mxu0
        %v2003 = vadd.f32 %v1829, %v2002
        %v2004 = vpop.f32.mrf.mxu0
        %v2005 = vadd.f32 %v1834, %v2004
        %2006 = vmatmul.bf16.gmra.mxu0 %v1921
        %v2007 = vpop.f32.mrf.mxu0
        %v2008 = vadd.f32 %v1839, %v2007
        %v2009 = vpop.f32.mrf.mxu0
        %v2010 = vadd.f32 %v1844, %v2009
        %2011 = vmatmul.bf16.gmra.mxu0 %v1922
        %v2012 = vpop.f32.mrf.mxu0
        %v2013 = vadd.f32 %v1849, %v2012
        %v2014 = vpop.f32.mrf.mxu0
        %v2015 = vadd.f32 %v1854, %v2014
        %2016 = vmatmul.bf16.gmra.mxu0 %v1923
        %v2017 = vpop.f32.mrf.mxu0
        %v2018 = vadd.f32 %v1859, %v2017
        %v2019 = vpop.f32.mrf.mxu0
        %v2020 = vadd.f32 %v1864, %v2019
        %2021 = vmatmul.bf16.gmra.mxu0 %v1924
        %v2022 = vpop.f32.mrf.mxu0
        %v2023 = vadd.f32 %v1869, %v2022
        %v2024 = vpop.f32.mrf.mxu0
        %v2025 = vadd.f32 %v1874, %v2024
        %2026 = vmatmul.bf16.gmra.mxu0 %v1925
        %v2027 = vpop.f32.mrf.mxu0
        %v2028 = vadd.f32 %v1879, %v2027
        %v2029 = vpop.f32.mrf.mxu0
        %v2030 = vadd.f32 %v1884, %v2029
        %2031 = vdwg.mxu0
        %2032 = vmatpush.bf16.msra.mxu0 %v1772
        %2033 = vmatpush.bf16.msra.mxu0 %v1768
        %2034 = vmatpush.bf16.msra.mxu0 %v1764
        %2035 = vmatpush.bf16.msra.mxu0 %v1760
        %2036 = vmatpush.bf16.msra.mxu0 %v1756
        %2037 = vmatpush.bf16.msra.mxu0 %v1752
        %2038 = vmatpush.bf16.msra.mxu0 %v1748
        %2039 = vmatpush.bf16.msra.mxu0 %v1744
        %2040 = vmatmul.bf16.gmra.mxu0 %v1918
        %v2041 = vpop.f32.mrf.mxu0
        %v2042 = vadd.f32 %v1809, %v2041
        %v2043 = vpop.f32.mrf.mxu0
        %v2044 = vadd.f32 %v1814, %v2043
        %2045 = vmatmul.bf16.gmra.mxu0 %v1919
        %v2046 = vpop.f32.mrf.mxu0
        %v2047 = vadd.f32 %v1819, %v2046
        %v2048 = vpop.f32.mrf.mxu0
        %v2049 = vadd.f32 %v1824, %v2048
        %2050 = vmatmul.bf16.gmra.mxu0 %v1920
        %v2051 = vpop.f32.mrf.mxu0
        %v2052 = vadd.f32 %v1829, %v2051
        %v2053 = vpop.f32.mrf.mxu0
        %v2054 = vadd.f32 %v1834, %v2053
        %2055 = vmatmul.bf16.gmra.mxu0 %v1921
        %v2056 = vpop.f32.mrf.mxu0
        %v2057 = vadd.f32 %v1839, %v2056
        %v2058 = vpop.f32.mrf.mxu0
        %v2059 = vadd.f32 %v1844, %v2058
        %2060 = vmatmul.bf16.gmra.mxu0 %v1922
        %v2061 = vpop.f32.mrf.mxu0
        %v2062 = vadd.f32 %v1849, %v2061
        %v2063 = vpop.f32.mrf.mxu0
        %v2064 = vadd.f32 %v1854, %v2063
        %2065 = vmatmul.bf16.gmra.mxu0 %v1923
        %v2066 = vpop.f32.mrf.mxu0
        %v2067 = vadd.f32 %v1859, %v2066
        %v2068 = vpop.f32.mrf.mxu0
        %v2069 = vadd.f32 %v1864, %v2068
        %2070 = vmatmul.bf16.gmra.mxu0 %v1924
        %v2071 = vpop.f32.mrf.mxu0
        %v2072 = vadd.f32 %v1869, %v2071
        %v2073 = vpop.f32.mrf.mxu0
        %v2074 = vadd.f32 %v1874, %v2073
        %2075 = vmatmul.bf16.gmra.mxu0 %v1925
        %v2076 = vpop.f32.mrf.mxu0
        %v2077 = vadd.f32 %v1879, %v2076
        %v2078 = vpop.f32.mrf.mxu0
        %v2079 = vadd.f32 %v1884, %v2078
        %2080 = vdwg.mxu0
        %2081 = vmatpush.bf16.msra.mxu0 %v1773
        %2082 = vmatpush.bf16.msra.mxu0 %v1769
        %2083 = vmatpush.bf16.msra.mxu0 %v1765
        %2084 = vmatpush.bf16.msra.mxu0 %v1761
        %2085 = vmatpush.bf16.msra.mxu0 %v1757
        %2086 = vmatpush.bf16.msra.mxu0 %v1753
        %2087 = vmatpush.bf16.msra.mxu0 %v1749
        %2088 = vmatpush.bf16.msra.mxu0 %v1745
        %2089 = vmatmul.bf16.gmra.mxu0 %v1918
        %v2090 = vpop.f32.mrf.mxu0
        %v2091 = vadd.f32 %v1809, %v2090
        %v2092 = vpop.f32.mrf.mxu0
        %v2093 = vadd.f32 %v1814, %v2092
        %2094 = vmatmul.bf16.gmra.mxu0 %v1919
        %v2095 = vpop.f32.mrf.mxu0
        %v2096 = vadd.f32 %v1819, %v2095
        %v2097 = vpop.f32.mrf.mxu0
        %v2098 = vadd.f32 %v1824, %v2097
        %2099 = vmatmul.bf16.gmra.mxu0 %v1920
        %v2100 = vpop.f32.mrf.mxu0
        %v2101 = vadd.f32 %v1829, %v2100
        %v2102 = vpop.f32.mrf.mxu0
        %v2103 = vadd.f32 %v1834, %v2102
        %2104 = vmatmul.bf16.gmra.mxu0 %v1921
        %v2105 = vpop.f32.mrf.mxu0
        %v2106 = vadd.f32 %v1839, %v2105
        %v2107 = vpop.f32.mrf.mxu0
        %v2108 = vadd.f32 %v1844, %v2107
        %2109 = vmatmul.bf16.gmra.mxu0 %v1922
        %v2110 = vpop.f32.mrf.mxu0
        %v2111 = vadd.f32 %v1849, %v2110
        %v2112 = vpop.f32.mrf.mxu0
        %v2113 = vadd.f32 %v1854, %v2112
        %2114 = vmatmul.bf16.gmra.mxu0 %v1923
        %v2115 = vpop.f32.mrf.mxu0
        %v2116 = vadd.f32 %v1859, %v2115
        %v2117 = vpop.f32.mrf.mxu0
        %v2118 = vadd.f32 %v1864, %v2117
        %2119 = vmatmul.bf16.gmra.mxu0 %v1924
        %v2120 = vpop.f32.mrf.mxu0
        %v2121 = vadd.f32 %v1869, %v2120
        %v2122 = vpop.f32.mrf.mxu0
        %v2123 = vadd.f32 %v1874, %v2122
        %2124 = vmatmul.bf16.gmra.mxu0 %v1925
        %v2125 = vpop.f32.mrf.mxu0
        %v2126 = vadd.f32 %v1879, %v2125
        %v2127 = vpop.f32.mrf.mxu0
        %v2128 = vadd.f32 %v1884, %v2127
        %2129 = vdwg.mxu0
        %v2130 = vmax.f32 %v1944, 0.0
        %v2131 = vmax.f32 %v1993, 0.0
        %v2132 = vmax.f32 %v2042, 0.0
        %v2133 = vmax.f32 %v2091, 0.0
        %v2134 = vmax.f32 %v1946, 0.0
        %v2135 = vmax.f32 %v1995, 0.0
        %v2136 = vmax.f32 %v2044, 0.0
        %v2137 = vmax.f32 %v2093, 0.0
        %v2138 = vmax.f32 %v1949, 0.0
        %v2139 = vmax.f32 %v1998, 0.0
        %v2140 = vmax.f32 %v2047, 0.0
        %v2141 = vmax.f32 %v2096, 0.0
        %v2142 = vmax.f32 %v1951, 0.0
        %v2143 = vmax.f32 %v2000, 0.0
        %v2144 = vmax.f32 %v2049, 0.0
        %v2145 = vmax.f32 %v2098, 0.0
        %v2146 = vmax.f32 %v1954, 0.0
        %v2147 = vmax.f32 %v2003, 0.0
        %v2148 = vmax.f32 %v2052, 0.0
        %v2149 = vmax.f32 %v2101, 0.0
        %v2150 = vmax.f32 %v1956, 0.0
        %v2151 = vmax.f32 %v2005, 0.0
        %v2152 = vmax.f32 %v2054, 0.0
        %v2153 = vmax.f32 %v2103, 0.0
        %v2154 = vmax.f32 %v1959, 0.0
        %v2155 = vmax.f32 %v2008, 0.0
        %v2156 = vmax.f32 %v2057, 0.0
        %v2157 = vmax.f32 %v2106, 0.0
        %v2158 = vmax.f32 %v1961, 0.0
        %v2159 = vmax.f32 %v2010, 0.0
        %v2160 = vmax.f32 %v2059, 0.0
        %v2161 = vmax.f32 %v2108, 0.0
        %v2162 = vmax.f32 %v1964, 0.0
        %v2163 = vmax.f32 %v2013, 0.0
        %v2164 = vmax.f32 %v2062, 0.0
        %v2165 = vmax.f32 %v2111, 0.0
        %v2166 = vmax.f32 %v1966, 0.0
        %v2167 = vmax.f32 %v2015, 0.0
        %v2168 = vmax.f32 %v2064, 0.0
        %v2169 = vmax.f32 %v2113, 0.0
        %v2170 = vmax.f32 %v1969, 0.0
        %v2171 = vmax.f32 %v2018, 0.0
        %v2172 = vmax.f32 %v2067, 0.0
        %v2173 = vmax.f32 %v2116, 0.0
        %v2174 = vmax.f32 %v1971, 0.0
        %v2175 = vmax.f32 %v2020, 0.0
        %v2176 = vmax.f32 %v2069, 0.0
        %v2177 = vmax.f32 %v2118, 0.0
        %v2178 = vmax.f32 %v1974, 0.0
        %v2179 = vmax.f32 %v2023, 0.0
        %v2180 = vmax.f32 %v2072, 0.0
        %v2181 = vmax.f32 %v2121, 0.0
        %v2182 = vmax.f32 %v1976, 0.0
        %v2183 = vmax.f32 %v2025, 0.0
        %v2184 = vmax.f32 %v2074, 0.0
        %v2185 = vmax.f32 %v2123, 0.0
        %v2186 = vmax.f32 %v1979, 0.0
        %v2187 = vmax.f32 %v2028, 0.0
        %v2188 = vmax.f32 %v2077, 0.0
        %v2189 = vmax.f32 %v2126, 0.0
        %v2190 = vmax.f32 %v1981, 0.0
        %v2191 = vmax.f32 %v2030, 0.0
        %v2192 = vmax.f32 %v2079, 0.0
        %v2193 = vmax.f32 %v2128, 0.0
        %v2194 = vpack.c.bf16 %v2131, %v2130
        %v2195 = vpack.c.bf16 %v2133, %v2132
        %v2196 = vpack.c.bf16 %v2135, %v2134
        %v2197 = vpack.c.bf16 %v2137, %v2136
        %v2198 = vpack.c.bf16 %v2139, %v2138
        %v2199 = vpack.c.bf16 %v2141, %v2140
        %v2200 = vpack.c.bf16 %v2143, %v2142
        %v2201 = vpack.c.bf16 %v2145, %v2144
        %v2202 = vpack.c.bf16 %v2147, %v2146
        %v2203 = vpack.c.bf16 %v2149, %v2148
        %v2204 = vpack.c.bf16 %v2151, %v2150
        %v2205 = vpack.c.bf16 %v2153, %v2152
        %v2206 = vpack.c.bf16 %v2155, %v2154
        %v2207 = vpack.c.bf16 %v2157, %v2156
        %v2208 = vpack.c.bf16 %v2159, %v2158
        %v2209 = vpack.c.bf16 %v2161, %v2160
        %v2210 = vpack.c.bf16 %v2163, %v2162
        %v2211 = vpack.c.bf16 %v2165, %v2164
        %v2212 = vpack.c.bf16 %v2167, %v2166
        %v2213 = vpack.c.bf16 %v2169, %v2168
        %v2214 = vpack.c.bf16 %v2171, %v2170
        %v2215 = vpack.c.bf16 %v2173, %v2172
        %v2216 = vpack.c.bf16 %v2175, %v2174
        %v2217 = vpack.c.bf16 %v2177, %v2176
        %v2218 = vpack.c.bf16 %v2179, %v2178
        %v2219 = vpack.c.bf16 %v2181, %v2180
        %v2220 = vpack.c.bf16 %v2183, %v2182
        %v2221 = vpack.c.bf16 %v2185, %v2184
        %v2222 = vpack.c.bf16 %v2187, %v2186
        %v2223 = vpack.c.bf16 %v2189, %v2188
        %v2224 = vpack.c.bf16 %v2191, %v2190
        %v2225 = vpack.c.bf16 %v2193, %v2192
        %v2226 = vunpack.c.l.bf16 %v2194
        %v2227 = vunpack.c.h.bf16 %v2194
        %v2228 = vunpack.c.l.bf16 %v2195
        %v2229 = vunpack.c.h.bf16 %v2195
        %v2230 = vunpack.c.l.bf16 %v2196
        %v2231 = vunpack.c.h.bf16 %v2196
        %v2232 = vunpack.c.l.bf16 %v2197
        %v2233 = vunpack.c.h.bf16 %v2197
        %v2234 = vunpack.c.l.bf16 %v2198
        %v2235 = vunpack.c.h.bf16 %v2198
        %v2236 = vunpack.c.l.bf16 %v2199
        %v2237 = vunpack.c.h.bf16 %v2199
        %v2238 = vunpack.c.l.bf16 %v2200
        %v2239 = vunpack.c.h.bf16 %v2200
        %v2240 = vunpack.c.l.bf16 %v2201
        %v2241 = vunpack.c.h.bf16 %v2201
        %v2242 = vunpack.c.l.bf16 %v2202
        %v2243 = vunpack.c.h.bf16 %v2202
        %v2244 = vunpack.c.l.bf16 %v2203
        %v2245 = vunpack.c.h.bf16 %v2203
        %v2246 = vunpack.c.l.bf16 %v2204
        %v2247 = vunpack.c.h.bf16 %v2204
        %v2248 = vunpack.c.l.bf16 %v2205
        %v2249 = vunpack.c.h.bf16 %v2205
        %v2250 = vunpack.c.l.bf16 %v2206
        %v2251 = vunpack.c.h.bf16 %v2206
        %v2252 = vunpack.c.l.bf16 %v2207
        %v2253 = vunpack.c.h.bf16 %v2207
        %v2254 = vunpack.c.l.bf16 %v2208
        %v2255 = vunpack.c.h.bf16 %v2208
        %v2256 = vunpack.c.l.bf16 %v2209
        %v2257 = vunpack.c.h.bf16 %v2209
        %v2258 = vunpack.c.l.bf16 %v2210
        %v2259 = vunpack.c.h.bf16 %v2210
        %v2260 = vunpack.c.l.bf16 %v2211
        %v2261 = vunpack.c.h.bf16 %v2211
        %v2262 = vunpack.c.l.bf16 %v2212
        %v2263 = vunpack.c.h.bf16 %v2212
        %v2264 = vunpack.c.l.bf16 %v2213
        %v2265 = vunpack.c.h.bf16 %v2213
        %v2266 = vunpack.c.l.bf16 %v2214
        %v2267 = vunpack.c.h.bf16 %v2214
        %v2268 = vunpack.c.l.bf16 %v2215
        %v2269 = vunpack.c.h.bf16 %v2215
        %v2270 = vunpack.c.l.bf16 %v2216
        %v2271 = vunpack.c.h.bf16 %v2216
        %v2272 = vunpack.c.l.bf16 %v2217
        %v2273 = vunpack.c.h.bf16 %v2217
        %v2274 = vunpack.c.l.bf16 %v2218
        %v2275 = vunpack.c.h.bf16 %v2218
        %v2276 = vunpack.c.l.bf16 %v2219
        %v2277 = vunpack.c.h.bf16 %v2219
        %v2278 = vunpack.c.l.bf16 %v2220
        %v2279 = vunpack.c.h.bf16 %v2220
        %v2280 = vunpack.c.l.bf16 %v2221
        %v2281 = vunpack.c.h.bf16 %v2221
        %v2282 = vunpack.c.l.bf16 %v2222
        %v2283 = vunpack.c.h.bf16 %v2222
        %v2284 = vunpack.c.l.bf16 %v2223
        %v2285 = vunpack.c.h.bf16 %v2223
        %v2286 = vunpack.c.l.bf16 %v2224
        %v2287 = vunpack.c.h.bf16 %v2224
        %v2288 = vunpack.c.l.bf16 %v2225
        %v2289 = vunpack.c.h.bf16 %v2225
        %2306 = vrot.lane.b32.xlu0 %v2226, 64
        %v2307 = vpop.permute.xlu0 %2306
        %2308 = vrot.lane.b32.xlu0 %v2230, 64
        %v2309 = vpop.permute.xlu0 %2308
        %2310 = vrot.lane.b32.xlu0 %v2234, 64
        %v2311 = vpop.permute.xlu0 %2310
        %2312 = vrot.lane.b32.xlu0 %v2238, 64
        %v2313 = vpop.permute.xlu0 %2312
        %2314 = vrot.lane.b32.xlu0 %v2242, 64
        %v2315 = vpop.permute.xlu0 %2314
        %2316 = vrot.lane.b32.xlu0 %v2246, 64
        %v2317 = vpop.permute.xlu0 %2316
        %2318 = vrot.lane.b32.xlu0 %v2250, 64
        %v2319 = vpop.permute.xlu0 %2318
        %2320 = vrot.lane.b32.xlu0 %v2254, 64
        %v2321 = vpop.permute.xlu0 %2320
        %2322 = vrot.lane.b32.xlu0 %v2258, 64
        %v2323 = vpop.permute.xlu0 %2322
        %2324 = vrot.lane.b32.xlu0 %v2262, 64
        %v2325 = vpop.permute.xlu0 %2324
        %2326 = vrot.lane.b32.xlu0 %v2266, 64
        %v2327 = vpop.permute.xlu0 %2326
        %2328 = vrot.lane.b32.xlu0 %v2270, 64
        %v2329 = vpop.permute.xlu0 %2328
        %2330 = vrot.lane.b32.xlu0 %v2274, 64
        %v2331 = vpop.permute.xlu0 %2330
        %2332 = vrot.lane.b32.xlu0 %v2278, 64
        %v2333 = vpop.permute.xlu0 %2332
        %2334 = vrot.lane.b32.xlu0 %v2282, 64
        %v2335 = vpop.permute.xlu0 %2334
        %2336 = vrot.lane.b32.xlu0 %v2286, 64
        %v2337 = vpop.permute.xlu0 %2336
        %2370 = vrot.lane.b32.xlu0 %v2227, 64
        %v2371 = vpop.permute.xlu0 %2370
        %2372 = vrot.lane.b32.xlu0 %v2231, 64
        %v2373 = vpop.permute.xlu0 %2372
        %2374 = vrot.lane.b32.xlu0 %v2235, 64
        %v2375 = vpop.permute.xlu0 %2374
        %2376 = vrot.lane.b32.xlu0 %v2239, 64
        %v2377 = vpop.permute.xlu0 %2376
        %2378 = vrot.lane.b32.xlu0 %v2243, 64
        %v2379 = vpop.permute.xlu0 %2378
        %2380 = vrot.lane.b32.xlu0 %v2247, 64
        %v2381 = vpop.permute.xlu0 %2380
        %2382 = vrot.lane.b32.xlu0 %v2251, 64
        %v2383 = vpop.permute.xlu0 %2382
        %2384 = vrot.lane.b32.xlu0 %v2255, 64
        %v2385 = vpop.permute.xlu0 %2384
        %2386 = vrot.lane.b32.xlu0 %v2259, 64
        %v2387 = vpop.permute.xlu0 %2386
        %2388 = vrot.lane.b32.xlu0 %v2263, 64
        %v2389 = vpop.permute.xlu0 %2388
        %2390 = vrot.lane.b32.xlu0 %v2267, 64
        %v2391 = vpop.permute.xlu0 %2390
        %2392 = vrot.lane.b32.xlu0 %v2271, 64
        %v2393 = vpop.permute.xlu0 %2392
        %2394 = vrot.lane.b32.xlu0 %v2275, 64
        %v2395 = vpop.permute.xlu0 %2394
        %2396 = vrot.lane.b32.xlu0 %v2279, 64
        %v2397 = vpop.permute.xlu0 %2396
        %2398 = vrot.lane.b32.xlu0 %v2283, 64
        %v2399 = vpop.permute.xlu0 %2398
        %2400 = vrot.lane.b32.xlu0 %v2287, 64
        %v2401 = vpop.permute.xlu0 %2400
        %2434 = vrot.lane.b32.xlu0 %v2228, 64
        %v2435 = vpop.permute.xlu0 %2434
        %2436 = vrot.lane.b32.xlu0 %v2232, 64
        %v2437 = vpop.permute.xlu0 %2436
        %2438 = vrot.lane.b32.xlu0 %v2236, 64
        %v2439 = vpop.permute.xlu0 %2438
        %2440 = vrot.lane.b32.xlu0 %v2240, 64
        %v2441 = vpop.permute.xlu0 %2440
        %2442 = vrot.lane.b32.xlu0 %v2244, 64
        %v2443 = vpop.permute.xlu0 %2442
        %2444 = vrot.lane.b32.xlu0 %v2248, 64
        %v2445 = vpop.permute.xlu0 %2444
        %2446 = vrot.lane.b32.xlu0 %v2252, 64
        %v2447 = vpop.permute.xlu0 %2446
        %2448 = vrot.lane.b32.xlu0 %v2256, 64
        %v2449 = vpop.permute.xlu0 %2448
        %2450 = vrot.lane.b32.xlu0 %v2260, 64
        %v2451 = vpop.permute.xlu0 %2450
        %2452 = vrot.lane.b32.xlu0 %v2264, 64
        %v2453 = vpop.permute.xlu0 %2452
        %2454 = vrot.lane.b32.xlu0 %v2268, 64
        %v2455 = vpop.permute.xlu0 %2454
        %2456 = vrot.lane.b32.xlu0 %v2272, 64
        %v2457 = vpop.permute.xlu0 %2456
        %2458 = vrot.lane.b32.xlu0 %v2276, 64
        %v2459 = vpop.permute.xlu0 %2458
        %2460 = vrot.lane.b32.xlu0 %v2280, 64
        %v2461 = vpop.permute.xlu0 %2460
        %2462 = vrot.lane.b32.xlu0 %v2284, 64
        %v2463 = vpop.permute.xlu0 %2462
        %2464 = vrot.lane.b32.xlu0 %v2288, 64
        %v2465 = vpop.permute.xlu0 %2464
        %2498 = vrot.lane.b32.xlu0 %v2229, 64
        %v2499 = vpop.permute.xlu0 %2498
        %2500 = vrot.lane.b32.xlu0 %v2233, 64
        %v2501 = vpop.permute.xlu0 %2500
        %2502 = vrot.lane.b32.xlu0 %v2237, 64
        %v2503 = vpop.permute.xlu0 %2502
        %2504 = vrot.lane.b32.xlu0 %v2241, 64
        %v2505 = vpop.permute.xlu0 %2504
        %2506 = vrot.lane.b32.xlu0 %v2245, 64
        %v2507 = vpop.permute.xlu0 %2506
        %2508 = vrot.lane.b32.xlu0 %v2249, 64
        %v2509 = vpop.permute.xlu0 %2508
        %2510 = vrot.lane.b32.xlu0 %v2253, 64
        %v2511 = vpop.permute.xlu0 %2510
        %2512 = vrot.lane.b32.xlu0 %v2257, 64
        %v2513 = vpop.permute.xlu0 %2512
        %2514 = vrot.lane.b32.xlu0 %v2261, 64
        %v2515 = vpop.permute.xlu0 %2514
        %2516 = vrot.lane.b32.xlu0 %v2265, 64
        %v2517 = vpop.permute.xlu0 %2516
        %2518 = vrot.lane.b32.xlu0 %v2269, 64
        %v2519 = vpop.permute.xlu0 %2518
        %2520 = vrot.lane.b32.xlu0 %v2273, 64
        %v2521 = vpop.permute.xlu0 %2520
        %2522 = vrot.lane.b32.xlu0 %v2277, 64
        %v2523 = vpop.permute.xlu0 %2522
        %2524 = vrot.lane.b32.xlu0 %v2281, 64
        %v2525 = vpop.permute.xlu0 %2524
        %2526 = vrot.lane.b32.xlu0 %v2285, 64
        %v2527 = vpop.permute.xlu0 %2526
        %2528 = vrot.lane.b32.xlu0 %v2289, 64
        %v2529 = vpop.permute.xlu0 %2528
        %v2546 = vrot.slane %v2227, 4
        %vm2547 = vcmask 1047556
        %v2548 = vsel %vm2547, %v2546, %v2226
        %v2549 = vrot.slane %v2226, 4
        %v2550 = vsel %vm2547, %v2227, %v2549
        %v2552 = vunpack.c.l.s4 1983009808
        %v2553 = vunpack.c.0.s8 %v2552
        %v2554 = vperm.slane %v2548, %v2553
        %v2556 = vunpack.c.l.s4 1983009808
        %v2557 = vunpack.c.0.s8 %v2556
        %v2558 = vperm.slane %v2550, %v2557
        %v2559 = vrot.slane %v2371, 4
        %v2560 = vsel %vm2547, %v2559, %v2307
        %v2561 = vrot.slane %v2307, 4
        %v2562 = vsel %vm2547, %v2371, %v2561
        %v2564 = vunpack.c.l.s4 1983009808
        %v2565 = vunpack.c.0.s8 %v2564
        %v2566 = vperm.slane %v2560, %v2565
        %v2568 = vunpack.c.l.s4 1983009808
        %v2569 = vunpack.c.0.s8 %v2568
        %v2570 = vperm.slane %v2562, %v2569
        %v2571 = vrot.slane %v2229, 4
        %v2572 = vsel %vm2547, %v2571, %v2228
        %v2573 = vrot.slane %v2228, 4
        %v2574 = vsel %vm2547, %v2229, %v2573
        %v2576 = vunpack.c.l.s4 1983009808
        %v2577 = vunpack.c.0.s8 %v2576
        %v2578 = vperm.slane %v2572, %v2577
        %v2580 = vunpack.c.l.s4 1983009808
        %v2581 = vunpack.c.0.s8 %v2580
        %v2582 = vperm.slane %v2574, %v2581
        %v2583 = vrot.slane %v2499, 4
        %v2584 = vsel %vm2547, %v2583, %v2435
        %v2585 = vrot.slane %v2435, 4
        %v2586 = vsel %vm2547, %v2499, %v2585
        %v2588 = vunpack.c.l.s4 1983009808
        %v2589 = vunpack.c.0.s8 %v2588
        %v2590 = vperm.slane %v2584, %v2589
        %v2592 = vunpack.c.l.s4 1983009808
        %v2593 = vunpack.c.0.s8 %v2592
        %v2594 = vperm.slane %v2586, %v2593
        %v2595 = vrot.slane %v2566, 4
        %v2596 = vsel %vm2547, %v2595, %v2554
        %v2597 = vrot.slane %v2554, 4
        %v2598 = vsel %vm2547, %v2566, %v2597
        %v2600 = vunpack.c.l.s4 1934713408
        %v2601 = vunpack.c.0.s8 %v2600
        %v2602 = vperm.slane %v2596, %v2601
        %v2604 = vunpack.c.l.s4 1934713408
        %v2605 = vunpack.c.0.s8 %v2604
        %v2606 = vperm.slane %v2598, %v2605
        %v2607 = vrot.slane %v2570, 4
        %v2608 = vsel %vm2547, %v2607, %v2558
        %v2609 = vrot.slane %v2558, 4
        %v2610 = vsel %vm2547, %v2570, %v2609
        %v2612 = vunpack.c.l.s4 1934713408
        %v2613 = vunpack.c.0.s8 %v2612
        %v2614 = vperm.slane %v2608, %v2613
        %v2616 = vunpack.c.l.s4 1934713408
        %v2617 = vunpack.c.0.s8 %v2616
        %v2618 = vperm.slane %v2610, %v2617
        %v2619 = vrot.slane %v2590, 4
        %v2620 = vsel %vm2547, %v2619, %v2578
        %v2621 = vrot.slane %v2578, 4
        %v2622 = vsel %vm2547, %v2590, %v2621
        %v2624 = vunpack.c.l.s4 1934713408
        %v2625 = vunpack.c.0.s8 %v2624
        %v2626 = vperm.slane %v2620, %v2625
        %v2628 = vunpack.c.l.s4 1934713408
        %v2629 = vunpack.c.0.s8 %v2628
        %v2630 = vperm.slane %v2622, %v2629
        %v2631 = vrot.slane %v2594, 4
        %v2632 = vsel %vm2547, %v2631, %v2582
        %v2633 = vrot.slane %v2582, 4
        %v2634 = vsel %vm2547, %v2594, %v2633
        %v2636 = vunpack.c.l.s4 1934713408
        %v2637 = vunpack.c.0.s8 %v2636
        %v2638 = vperm.slane %v2632, %v2637
        %v2640 = vunpack.c.l.s4 1934713408
        %v2641 = vunpack.c.0.s8 %v2640
        %v2642 = vperm.slane %v2634, %v2641
        %v2643 = vrot.slane %v2626, 4
        %v2644 = vsel %vm2547, %v2643, %v2602
        %v2645 = vrot.slane %v2602, 4
        %v2646 = vsel %vm2547, %v2626, %v2645
        %v2647 = vrot.slane %v2630, 4
        %v2648 = vsel %vm2547, %v2647, %v2606
        %v2649 = vrot.slane %v2606, 4
        %v2650 = vsel %vm2547, %v2630, %v2649
        %v2651 = vrot.slane %v2638, 4
        %v2652 = vsel %vm2547, %v2651, %v2614
        %v2653 = vrot.slane %v2614, 4
        %v2654 = vsel %vm2547, %v2638, %v2653
        %v2655 = vrot.slane %v2642, 4
        %v2656 = vsel %vm2547, %v2655, %v2618
        %v2657 = vrot.slane %v2618, 4
        %v2658 = vsel %vm2547, %v2642, %v2657
        %v2659 = vrot.slane %v2231, 4
        %v2660 = vsel %vm2547, %v2659, %v2230
        %v2661 = vrot.slane %v2230, 4
        %v2662 = vsel %vm2547, %v2231, %v2661
        %v2664 = vunpack.c.l.s4 1983009808
        %v2665 = vunpack.c.0.s8 %v2664
        %v2666 = vperm.slane %v2660, %v2665
        %v2668 = vunpack.c.l.s4 1983009808
        %v2669 = vunpack.c.0.s8 %v2668
        %v2670 = vperm.slane %v2662, %v2669
        %v2671 = vrot.slane %v2373, 4
        %v2672 = vsel %vm2547, %v2671, %v2309
        %v2673 = vrot.slane %v2309, 4
        %v2674 = vsel %vm2547, %v2373, %v2673
        %v2676 = vunpack.c.l.s4 1983009808
        %v2677 = vunpack.c.0.s8 %v2676
        %v2678 = vperm.slane %v2672, %v2677
        %v2680 = vunpack.c.l.s4 1983009808
        %v2681 = vunpack.c.0.s8 %v2680
        %v2682 = vperm.slane %v2674, %v2681
        %v2683 = vrot.slane %v2233, 4
        %v2684 = vsel %vm2547, %v2683, %v2232
        %v2685 = vrot.slane %v2232, 4
        %v2686 = vsel %vm2547, %v2233, %v2685
        %v2688 = vunpack.c.l.s4 1983009808
        %v2689 = vunpack.c.0.s8 %v2688
        %v2690 = vperm.slane %v2684, %v2689
        %v2692 = vunpack.c.l.s4 1983009808
        %v2693 = vunpack.c.0.s8 %v2692
        %v2694 = vperm.slane %v2686, %v2693
        %v2695 = vrot.slane %v2501, 4
        %v2696 = vsel %vm2547, %v2695, %v2437
        %v2697 = vrot.slane %v2437, 4
        %v2698 = vsel %vm2547, %v2501, %v2697
        %v2700 = vunpack.c.l.s4 1983009808
        %v2701 = vunpack.c.0.s8 %v2700
        %v2702 = vperm.slane %v2696, %v2701
        %v2704 = vunpack.c.l.s4 1983009808
        %v2705 = vunpack.c.0.s8 %v2704
        %v2706 = vperm.slane %v2698, %v2705
        %v2707 = vrot.slane %v2678, 4
        %v2708 = vsel %vm2547, %v2707, %v2666
        %v2709 = vrot.slane %v2666, 4
        %v2710 = vsel %vm2547, %v2678, %v2709
        %v2712 = vunpack.c.l.s4 1934713408
        %v2713 = vunpack.c.0.s8 %v2712
        %v2714 = vperm.slane %v2708, %v2713
        %v2716 = vunpack.c.l.s4 1934713408
        %v2717 = vunpack.c.0.s8 %v2716
        %v2718 = vperm.slane %v2710, %v2717
        %v2719 = vrot.slane %v2682, 4
        %v2720 = vsel %vm2547, %v2719, %v2670
        %v2721 = vrot.slane %v2670, 4
        %v2722 = vsel %vm2547, %v2682, %v2721
        %v2724 = vunpack.c.l.s4 1934713408
        %v2725 = vunpack.c.0.s8 %v2724
        %v2726 = vperm.slane %v2720, %v2725
        %v2728 = vunpack.c.l.s4 1934713408
        %v2729 = vunpack.c.0.s8 %v2728
        %v2730 = vperm.slane %v2722, %v2729
        %v2731 = vrot.slane %v2702, 4
        %v2732 = vsel %vm2547, %v2731, %v2690
        %v2733 = vrot.slane %v2690, 4
        %v2734 = vsel %vm2547, %v2702, %v2733
        %v2736 = vunpack.c.l.s4 1934713408
        %v2737 = vunpack.c.0.s8 %v2736
        %v2738 = vperm.slane %v2732, %v2737
        %v2740 = vunpack.c.l.s4 1934713408
        %v2741 = vunpack.c.0.s8 %v2740
        %v2742 = vperm.slane %v2734, %v2741
        %v2743 = vrot.slane %v2706, 4
        %v2744 = vsel %vm2547, %v2743, %v2694
        %v2745 = vrot.slane %v2694, 4
        %v2746 = vsel %vm2547, %v2706, %v2745
        %v2748 = vunpack.c.l.s4 1934713408
        %v2749 = vunpack.c.0.s8 %v2748
        %v2750 = vperm.slane %v2744, %v2749
        %v2752 = vunpack.c.l.s4 1934713408
        %v2753 = vunpack.c.0.s8 %v2752
        %v2754 = vperm.slane %v2746, %v2753
        %v2755 = vrot.slane %v2738, 4
        %v2756 = vsel %vm2547, %v2755, %v2714
        %v2757 = vrot.slane %v2714, 4
        %v2758 = vsel %vm2547, %v2738, %v2757
        %v2759 = vrot.slane %v2742, 4
        %v2760 = vsel %vm2547, %v2759, %v2718
        %v2761 = vrot.slane %v2718, 4
        %v2762 = vsel %vm2547, %v2742, %v2761
        %v2763 = vrot.slane %v2750, 4
        %v2764 = vsel %vm2547, %v2763, %v2726
        %v2765 = vrot.slane %v2726, 4
        %v2766 = vsel %vm2547, %v2750, %v2765
        %v2767 = vrot.slane %v2754, 4
        %v2768 = vsel %vm2547, %v2767, %v2730
        %v2769 = vrot.slane %v2730, 4
        %v2770 = vsel %vm2547, %v2754, %v2769
        %v2771 = vrot.slane %v2235, 4
        %v2772 = vsel %vm2547, %v2771, %v2234
        %v2773 = vrot.slane %v2234, 4
        %v2774 = vsel %vm2547, %v2235, %v2773
        %v2776 = vunpack.c.l.s4 1983009808
        %v2777 = vunpack.c.0.s8 %v2776
        %v2778 = vperm.slane %v2772, %v2777
        %v2780 = vunpack.c.l.s4 1983009808
        %v2781 = vunpack.c.0.s8 %v2780
        %v2782 = vperm.slane %v2774, %v2781
        %v2783 = vrot.slane %v2375, 4
        %v2784 = vsel %vm2547, %v2783, %v2311
        %v2785 = vrot.slane %v2311, 4
        %v2786 = vsel %vm2547, %v2375, %v2785
        %v2788 = vunpack.c.l.s4 1983009808
        %v2789 = vunpack.c.0.s8 %v2788
        %v2790 = vperm.slane %v2784, %v2789
        %v2792 = vunpack.c.l.s4 1983009808
        %v2793 = vunpack.c.0.s8 %v2792
        %v2794 = vperm.slane %v2786, %v2793
        %v2795 = vrot.slane %v2237, 4
        %v2796 = vsel %vm2547, %v2795, %v2236
        %v2797 = vrot.slane %v2236, 4
        %v2798 = vsel %vm2547, %v2237, %v2797
        %v2800 = vunpack.c.l.s4 1983009808
        %v2801 = vunpack.c.0.s8 %v2800
        %v2802 = vperm.slane %v2796, %v2801
        %v2804 = vunpack.c.l.s4 1983009808
        %v2805 = vunpack.c.0.s8 %v2804
        %v2806 = vperm.slane %v2798, %v2805
        %v2807 = vrot.slane %v2503, 4
        %v2808 = vsel %vm2547, %v2807, %v2439
        %v2809 = vrot.slane %v2439, 4
        %v2810 = vsel %vm2547, %v2503, %v2809
        %v2812 = vunpack.c.l.s4 1983009808
        %v2813 = vunpack.c.0.s8 %v2812
        %v2814 = vperm.slane %v2808, %v2813
        %v2816 = vunpack.c.l.s4 1983009808
        %v2817 = vunpack.c.0.s8 %v2816
        %v2818 = vperm.slane %v2810, %v2817
        %v2819 = vrot.slane %v2790, 4
        %v2820 = vsel %vm2547, %v2819, %v2778
        %v2821 = vrot.slane %v2778, 4
        %v2822 = vsel %vm2547, %v2790, %v2821
        %v2824 = vunpack.c.l.s4 1934713408
        %v2825 = vunpack.c.0.s8 %v2824
        %v2826 = vperm.slane %v2820, %v2825
        %v2828 = vunpack.c.l.s4 1934713408
        %v2829 = vunpack.c.0.s8 %v2828
        %v2830 = vperm.slane %v2822, %v2829
        %v2831 = vrot.slane %v2794, 4
        %v2832 = vsel %vm2547, %v2831, %v2782
        %v2833 = vrot.slane %v2782, 4
        %v2834 = vsel %vm2547, %v2794, %v2833
        %v2836 = vunpack.c.l.s4 1934713408
        %v2837 = vunpack.c.0.s8 %v2836
        %v2838 = vperm.slane %v2832, %v2837
        %v2840 = vunpack.c.l.s4 1934713408
        %v2841 = vunpack.c.0.s8 %v2840
        %v2842 = vperm.slane %v2834, %v2841
        %v2843 = vrot.slane %v2814, 4
        %v2844 = vsel %vm2547, %v2843, %v2802
        %v2845 = vrot.slane %v2802, 4
        %v2846 = vsel %vm2547, %v2814, %v2845
        %v2848 = vunpack.c.l.s4 1934713408
        %v2849 = vunpack.c.0.s8 %v2848
        %v2850 = vperm.slane %v2844, %v2849
        %v2852 = vunpack.c.l.s4 1934713408
        %v2853 = vunpack.c.0.s8 %v2852
        %v2854 = vperm.slane %v2846, %v2853
        %v2855 = vrot.slane %v2818, 4
        %v2856 = vsel %vm2547, %v2855, %v2806
        %v2857 = vrot.slane %v2806, 4
        %v2858 = vsel %vm2547, %v2818, %v2857
        %v2860 = vunpack.c.l.s4 1934713408
        %v2861 = vunpack.c.0.s8 %v2860
        %v2862 = vperm.slane %v2856, %v2861
        %v2864 = vunpack.c.l.s4 1934713408
        %v2865 = vunpack.c.0.s8 %v2864
        %v2866 = vperm.slane %v2858, %v2865
        %v2867 = vrot.slane %v2850, 4
        %v2868 = vsel %vm2547, %v2867, %v2826
        %v2869 = vrot.slane %v2826, 4
        %v2870 = vsel %vm2547, %v2850, %v2869
        %v2871 = vrot.slane %v2854, 4
        %v2872 = vsel %vm2547, %v2871, %v2830
        %v2873 = vrot.slane %v2830, 4
        %v2874 = vsel %vm2547, %v2854, %v2873
        %v2875 = vrot.slane %v2862, 4
        %v2876 = vsel %vm2547, %v2875, %v2838
        %v2877 = vrot.slane %v2838, 4
        %v2878 = vsel %vm2547, %v2862, %v2877
        %v2879 = vrot.slane %v2866, 4
        %v2880 = vsel %vm2547, %v2879, %v2842
        %v2881 = vrot.slane %v2842, 4
        %v2882 = vsel %vm2547, %v2866, %v2881
        %v2883 = vrot.slane %v2239, 4
        %v2884 = vsel %vm2547, %v2883, %v2238
        %v2885 = vrot.slane %v2238, 4
        %v2886 = vsel %vm2547, %v2239, %v2885
        %v2888 = vunpack.c.l.s4 1983009808
        %v2889 = vunpack.c.0.s8 %v2888
        %v2890 = vperm.slane %v2884, %v2889
        %v2892 = vunpack.c.l.s4 1983009808
        %v2893 = vunpack.c.0.s8 %v2892
        %v2894 = vperm.slane %v2886, %v2893
        %v2895 = vrot.slane %v2377, 4
        %v2896 = vsel %vm2547, %v2895, %v2313
        %v2897 = vrot.slane %v2313, 4
        %v2898 = vsel %vm2547, %v2377, %v2897
        %v2900 = vunpack.c.l.s4 1983009808
        %v2901 = vunpack.c.0.s8 %v2900
        %v2902 = vperm.slane %v2896, %v2901
        %v2904 = vunpack.c.l.s4 1983009808
        %v2905 = vunpack.c.0.s8 %v2904
        %v2906 = vperm.slane %v2898, %v2905
        %v2907 = vrot.slane %v2241, 4
        %v2908 = vsel %vm2547, %v2907, %v2240
        %v2909 = vrot.slane %v2240, 4
        %v2910 = vsel %vm2547, %v2241, %v2909
        %v2912 = vunpack.c.l.s4 1983009808
        %v2913 = vunpack.c.0.s8 %v2912
        %v2914 = vperm.slane %v2908, %v2913
        %v2916 = vunpack.c.l.s4 1983009808
        %v2917 = vunpack.c.0.s8 %v2916
        %v2918 = vperm.slane %v2910, %v2917
        %v2919 = vrot.slane %v2505, 4
        %v2920 = vsel %vm2547, %v2919, %v2441
        %v2921 = vrot.slane %v2441, 4
        %v2922 = vsel %vm2547, %v2505, %v2921
        %v2924 = vunpack.c.l.s4 1983009808
        %v2925 = vunpack.c.0.s8 %v2924
        %v2926 = vperm.slane %v2920, %v2925
        %v2928 = vunpack.c.l.s4 1983009808
        %v2929 = vunpack.c.0.s8 %v2928
        %v2930 = vperm.slane %v2922, %v2929
        %v2931 = vrot.slane %v2902, 4
        %v2932 = vsel %vm2547, %v2931, %v2890
        %v2933 = vrot.slane %v2890, 4
        %v2934 = vsel %vm2547, %v2902, %v2933
        %v2936 = vunpack.c.l.s4 1934713408
        %v2937 = vunpack.c.0.s8 %v2936
        %v2938 = vperm.slane %v2932, %v2937
        %v2940 = vunpack.c.l.s4 1934713408
        %v2941 = vunpack.c.0.s8 %v2940
        %v2942 = vperm.slane %v2934, %v2941
        %v2943 = vrot.slane %v2906, 4
        %v2944 = vsel %vm2547, %v2943, %v2894
        %v2945 = vrot.slane %v2894, 4
        %v2946 = vsel %vm2547, %v2906, %v2945
        %v2948 = vunpack.c.l.s4 1934713408
        %v2949 = vunpack.c.0.s8 %v2948
        %v2950 = vperm.slane %v2944, %v2949
        %v2952 = vunpack.c.l.s4 1934713408
        %v2953 = vunpack.c.0.s8 %v2952
        %v2954 = vperm.slane %v2946, %v2953
        %v2955 = vrot.slane %v2926, 4
        %v2956 = vsel %vm2547, %v2955, %v2914
        %v2957 = vrot.slane %v2914, 4
        %v2958 = vsel %vm2547, %v2926, %v2957
        %v2960 = vunpack.c.l.s4 1934713408
        %v2961 = vunpack.c.0.s8 %v2960
        %v2962 = vperm.slane %v2956, %v2961
        %v2964 = vunpack.c.l.s4 1934713408
        %v2965 = vunpack.c.0.s8 %v2964
        %v2966 = vperm.slane %v2958, %v2965
        %v2967 = vrot.slane %v2930, 4
        %v2968 = vsel %vm2547, %v2967, %v2918
        %v2969 = vrot.slane %v2918, 4
        %v2970 = vsel %vm2547, %v2930, %v2969
        %v2972 = vunpack.c.l.s4 1934713408
        %v2973 = vunpack.c.0.s8 %v2972
        %v2974 = vperm.slane %v2968, %v2973
        %v2976 = vunpack.c.l.s4 1934713408
        %v2977 = vunpack.c.0.s8 %v2976
        %v2978 = vperm.slane %v2970, %v2977
        %v2979 = vrot.slane %v2962, 4
        %v2980 = vsel %vm2547, %v2979, %v2938
        %v2981 = vrot.slane %v2938, 4
        %v2982 = vsel %vm2547, %v2962, %v2981
        %v2983 = vrot.slane %v2966, 4
        %v2984 = vsel %vm2547, %v2983, %v2942
        %v2985 = vrot.slane %v2942, 4
        %v2986 = vsel %vm2547, %v2966, %v2985
        %v2987 = vrot.slane %v2974, 4
        %v2988 = vsel %vm2547, %v2987, %v2950
        %v2989 = vrot.slane %v2950, 4
        %v2990 = vsel %vm2547, %v2974, %v2989
        %v2991 = vrot.slane %v2978, 4
        %v2992 = vsel %vm2547, %v2991, %v2954
        %v2993 = vrot.slane %v2954, 4
        %v2994 = vsel %vm2547, %v2978, %v2993
        %v2995 = vrot.slane %v2243, 4
        %v2996 = vsel %vm2547, %v2995, %v2242
        %v2997 = vrot.slane %v2242, 4
        %v2998 = vsel %vm2547, %v2243, %v2997
        %v3000 = vunpack.c.l.s4 1983009808
        %v3001 = vunpack.c.0.s8 %v3000
        %v3002 = vperm.slane %v2996, %v3001
        %v3004 = vunpack.c.l.s4 1983009808
        %v3005 = vunpack.c.0.s8 %v3004
        %v3006 = vperm.slane %v2998, %v3005
        %v3007 = vrot.slane %v2379, 4
        %v3008 = vsel %vm2547, %v3007, %v2315
        %v3009 = vrot.slane %v2315, 4
        %v3010 = vsel %vm2547, %v2379, %v3009
        %v3012 = vunpack.c.l.s4 1983009808
        %v3013 = vunpack.c.0.s8 %v3012
        %v3014 = vperm.slane %v3008, %v3013
        %v3016 = vunpack.c.l.s4 1983009808
        %v3017 = vunpack.c.0.s8 %v3016
        %v3018 = vperm.slane %v3010, %v3017
        %v3019 = vrot.slane %v2245, 4
        %v3020 = vsel %vm2547, %v3019, %v2244
        %v3021 = vrot.slane %v2244, 4
        %v3022 = vsel %vm2547, %v2245, %v3021
        %v3024 = vunpack.c.l.s4 1983009808
        %v3025 = vunpack.c.0.s8 %v3024
        %v3026 = vperm.slane %v3020, %v3025
        %v3028 = vunpack.c.l.s4 1983009808
        %v3029 = vunpack.c.0.s8 %v3028
        %v3030 = vperm.slane %v3022, %v3029
        %v3031 = vrot.slane %v2507, 4
        %v3032 = vsel %vm2547, %v3031, %v2443
        %v3033 = vrot.slane %v2443, 4
        %v3034 = vsel %vm2547, %v2507, %v3033
        %v3036 = vunpack.c.l.s4 1983009808
        %v3037 = vunpack.c.0.s8 %v3036
        %v3038 = vperm.slane %v3032, %v3037
        %v3040 = vunpack.c.l.s4 1983009808
        %v3041 = vunpack.c.0.s8 %v3040
        %v3042 = vperm.slane %v3034, %v3041
        %v3043 = vrot.slane %v3014, 4
        %v3044 = vsel %vm2547, %v3043, %v3002
        %v3045 = vrot.slane %v3002, 4
        %v3046 = vsel %vm2547, %v3014, %v3045
        %v3048 = vunpack.c.l.s4 1934713408
        %v3049 = vunpack.c.0.s8 %v3048
        %v3050 = vperm.slane %v3044, %v3049
        %v3052 = vunpack.c.l.s4 1934713408
        %v3053 = vunpack.c.0.s8 %v3052
        %v3054 = vperm.slane %v3046, %v3053
        %v3055 = vrot.slane %v3018, 4
        %v3056 = vsel %vm2547, %v3055, %v3006
        %v3057 = vrot.slane %v3006, 4
        %v3058 = vsel %vm2547, %v3018, %v3057
        %v3060 = vunpack.c.l.s4 1934713408
        %v3061 = vunpack.c.0.s8 %v3060
        %v3062 = vperm.slane %v3056, %v3061
        %v3064 = vunpack.c.l.s4 1934713408
        %v3065 = vunpack.c.0.s8 %v3064
        %v3066 = vperm.slane %v3058, %v3065
        %v3067 = vrot.slane %v3038, 4
        %v3068 = vsel %vm2547, %v3067, %v3026
        %v3069 = vrot.slane %v3026, 4
        %v3070 = vsel %vm2547, %v3038, %v3069
        %v3072 = vunpack.c.l.s4 1934713408
        %v3073 = vunpack.c.0.s8 %v3072
        %v3074 = vperm.slane %v3068, %v3073
        %v3076 = vunpack.c.l.s4 1934713408
        %v3077 = vunpack.c.0.s8 %v3076
        %v3078 = vperm.slane %v3070, %v3077
        %v3079 = vrot.slane %v3042, 4
        %v3080 = vsel %vm2547, %v3079, %v3030
        %v3081 = vrot.slane %v3030, 4
        %v3082 = vsel %vm2547, %v3042, %v3081
        %v3084 = vunpack.c.l.s4 1934713408
        %v3085 = vunpack.c.0.s8 %v3084
        %v3086 = vperm.slane %v3080, %v3085
        %v3088 = vunpack.c.l.s4 1934713408
        %v3089 = vunpack.c.0.s8 %v3088
        %v3090 = vperm.slane %v3082, %v3089
        %v3091 = vrot.slane %v3074, 4
        %v3092 = vsel %vm2547, %v3091, %v3050
        %v3093 = vrot.slane %v3050, 4
        %v3094 = vsel %vm2547, %v3074, %v3093
        %v3095 = vrot.slane %v3078, 4
        %v3096 = vsel %vm2547, %v3095, %v3054
        %v3097 = vrot.slane %v3054, 4
        %v3098 = vsel %vm2547, %v3078, %v3097
        %v3099 = vrot.slane %v3086, 4
        %v3100 = vsel %vm2547, %v3099, %v3062
        %v3101 = vrot.slane %v3062, 4
        %v3102 = vsel %vm2547, %v3086, %v3101
        %v3103 = vrot.slane %v3090, 4
        %v3104 = vsel %vm2547, %v3103, %v3066
        %v3105 = vrot.slane %v3066, 4
        %v3106 = vsel %vm2547, %v3090, %v3105
        %v3107 = vrot.slane %v2247, 4
        %v3108 = vsel %vm2547, %v3107, %v2246
        %v3109 = vrot.slane %v2246, 4
        %v3110 = vsel %vm2547, %v2247, %v3109
        %v3112 = vunpack.c.l.s4 1983009808
        %v3113 = vunpack.c.0.s8 %v3112
        %v3114 = vperm.slane %v3108, %v3113
        %v3116 = vunpack.c.l.s4 1983009808
        %v3117 = vunpack.c.0.s8 %v3116
        %v3118 = vperm.slane %v3110, %v3117
        %v3119 = vrot.slane %v2381, 4
        %v3120 = vsel %vm2547, %v3119, %v2317
        %v3121 = vrot.slane %v2317, 4
        %v3122 = vsel %vm2547, %v2381, %v3121
        %v3124 = vunpack.c.l.s4 1983009808
        %v3125 = vunpack.c.0.s8 %v3124
        %v3126 = vperm.slane %v3120, %v3125
        %v3128 = vunpack.c.l.s4 1983009808
        %v3129 = vunpack.c.0.s8 %v3128
        %v3130 = vperm.slane %v3122, %v3129
        %v3131 = vrot.slane %v2249, 4
        %v3132 = vsel %vm2547, %v3131, %v2248
        %v3133 = vrot.slane %v2248, 4
        %v3134 = vsel %vm2547, %v2249, %v3133
        %v3136 = vunpack.c.l.s4 1983009808
        %v3137 = vunpack.c.0.s8 %v3136
        %v3138 = vperm.slane %v3132, %v3137
        %v3140 = vunpack.c.l.s4 1983009808
        %v3141 = vunpack.c.0.s8 %v3140
        %v3142 = vperm.slane %v3134, %v3141
        %v3143 = vrot.slane %v2509, 4
        %v3144 = vsel %vm2547, %v3143, %v2445
        %v3145 = vrot.slane %v2445, 4
        %v3146 = vsel %vm2547, %v2509, %v3145
        %v3148 = vunpack.c.l.s4 1983009808
        %v3149 = vunpack.c.0.s8 %v3148
        %v3150 = vperm.slane %v3144, %v3149
        %v3152 = vunpack.c.l.s4 1983009808
        %v3153 = vunpack.c.0.s8 %v3152
        %v3154 = vperm.slane %v3146, %v3153
        %v3155 = vrot.slane %v3126, 4
        %v3156 = vsel %vm2547, %v3155, %v3114
        %v3157 = vrot.slane %v3114, 4
        %v3158 = vsel %vm2547, %v3126, %v3157
        %v3160 = vunpack.c.l.s4 1934713408
        %v3161 = vunpack.c.0.s8 %v3160
        %v3162 = vperm.slane %v3156, %v3161
        %v3164 = vunpack.c.l.s4 1934713408
        %v3165 = vunpack.c.0.s8 %v3164
        %v3166 = vperm.slane %v3158, %v3165
        %v3167 = vrot.slane %v3130, 4
        %v3168 = vsel %vm2547, %v3167, %v3118
        %v3169 = vrot.slane %v3118, 4
        %v3170 = vsel %vm2547, %v3130, %v3169
        %v3172 = vunpack.c.l.s4 1934713408
        %v3173 = vunpack.c.0.s8 %v3172
        %v3174 = vperm.slane %v3168, %v3173
        %v3176 = vunpack.c.l.s4 1934713408
        %v3177 = vunpack.c.0.s8 %v3176
        %v3178 = vperm.slane %v3170, %v3177
        %v3179 = vrot.slane %v3150, 4
        %v3180 = vsel %vm2547, %v3179, %v3138
        %v3181 = vrot.slane %v3138, 4
        %v3182 = vsel %vm2547, %v3150, %v3181
        %v3184 = vunpack.c.l.s4 1934713408
        %v3185 = vunpack.c.0.s8 %v3184
        %v3186 = vperm.slane %v3180, %v3185
        %v3188 = vunpack.c.l.s4 1934713408
        %v3189 = vunpack.c.0.s8 %v3188
        %v3190 = vperm.slane %v3182, %v3189
        %v3191 = vrot.slane %v3154, 4
        %v3192 = vsel %vm2547, %v3191, %v3142
        %v3193 = vrot.slane %v3142, 4
        %v3194 = vsel %vm2547, %v3154, %v3193
        %v3196 = vunpack.c.l.s4 1934713408
        %v3197 = vunpack.c.0.s8 %v3196
        %v3198 = vperm.slane %v3192, %v3197
        %v3200 = vunpack.c.l.s4 1934713408
        %v3201 = vunpack.c.0.s8 %v3200
        %v3202 = vperm.slane %v3194, %v3201
        %v3203 = vrot.slane %v3186, 4
        %v3204 = vsel %vm2547, %v3203, %v3162
        %v3205 = vrot.slane %v3162, 4
        %v3206 = vsel %vm2547, %v3186, %v3205
        %v3207 = vrot.slane %v3190, 4
        %v3208 = vsel %vm2547, %v3207, %v3166
        %v3209 = vrot.slane %v3166, 4
        %v3210 = vsel %vm2547, %v3190, %v3209
        %v3211 = vrot.slane %v3198, 4
        %v3212 = vsel %vm2547, %v3211, %v3174
        %v3213 = vrot.slane %v3174, 4
        %v3214 = vsel %vm2547, %v3198, %v3213
        %v3215 = vrot.slane %v3202, 4
        %v3216 = vsel %vm2547, %v3215, %v3178
        %v3217 = vrot.slane %v3178, 4
        %v3218 = vsel %vm2547, %v3202, %v3217
        %v3219 = vrot.slane %v2251, 4
        %v3220 = vsel %vm2547, %v3219, %v2250
        %v3221 = vrot.slane %v2250, 4
        %v3222 = vsel %vm2547, %v2251, %v3221
        %v3224 = vunpack.c.l.s4 1983009808
        %v3225 = vunpack.c.0.s8 %v3224
        %v3226 = vperm.slane %v3220, %v3225
        %v3228 = vunpack.c.l.s4 1983009808
        %v3229 = vunpack.c.0.s8 %v3228
        %v3230 = vperm.slane %v3222, %v3229
        %v3231 = vrot.slane %v2383, 4
        %v3232 = vsel %vm2547, %v3231, %v2319
        %v3233 = vrot.slane %v2319, 4
        %v3234 = vsel %vm2547, %v2383, %v3233
        %v3236 = vunpack.c.l.s4 1983009808
        %v3237 = vunpack.c.0.s8 %v3236
        %v3238 = vperm.slane %v3232, %v3237
        %v3240 = vunpack.c.l.s4 1983009808
        %v3241 = vunpack.c.0.s8 %v3240
        %v3242 = vperm.slane %v3234, %v3241
        %v3243 = vrot.slane %v2253, 4
        %v3244 = vsel %vm2547, %v3243, %v2252
        %v3245 = vrot.slane %v2252, 4
        %v3246 = vsel %vm2547, %v2253, %v3245
        %v3248 = vunpack.c.l.s4 1983009808
        %v3249 = vunpack.c.0.s8 %v3248
        %v3250 = vperm.slane %v3244, %v3249
        %v3252 = vunpack.c.l.s4 1983009808
        %v3253 = vunpack.c.0.s8 %v3252
        %v3254 = vperm.slane %v3246, %v3253
        %v3255 = vrot.slane %v2511, 4
        %v3256 = vsel %vm2547, %v3255, %v2447
        %v3257 = vrot.slane %v2447, 4
        %v3258 = vsel %vm2547, %v2511, %v3257
        %v3260 = vunpack.c.l.s4 1983009808
        %v3261 = vunpack.c.0.s8 %v3260
        %v3262 = vperm.slane %v3256, %v3261
        %v3264 = vunpack.c.l.s4 1983009808
        %v3265 = vunpack.c.0.s8 %v3264
        %v3266 = vperm.slane %v3258, %v3265
        %v3267 = vrot.slane %v3238, 4
        %v3268 = vsel %vm2547, %v3267, %v3226
        %v3269 = vrot.slane %v3226, 4
        %v3270 = vsel %vm2547, %v3238, %v3269
        %v3272 = vunpack.c.l.s4 1934713408
        %v3273 = vunpack.c.0.s8 %v3272
        %v3274 = vperm.slane %v3268, %v3273
        %v3276 = vunpack.c.l.s4 1934713408
        %v3277 = vunpack.c.0.s8 %v3276
        %v3278 = vperm.slane %v3270, %v3277
        %v3279 = vrot.slane %v3242, 4
        %v3280 = vsel %vm2547, %v3279, %v3230
        %v3281 = vrot.slane %v3230, 4
        %v3282 = vsel %vm2547, %v3242, %v3281
        %v3284 = vunpack.c.l.s4 1934713408
        %v3285 = vunpack.c.0.s8 %v3284
        %v3286 = vperm.slane %v3280, %v3285
        %v3288 = vunpack.c.l.s4 1934713408
        %v3289 = vunpack.c.0.s8 %v3288
        %v3290 = vperm.slane %v3282, %v3289
        %v3291 = vrot.slane %v3262, 4
        %v3292 = vsel %vm2547, %v3291, %v3250
        %v3293 = vrot.slane %v3250, 4
        %v3294 = vsel %vm2547, %v3262, %v3293
        %v3296 = vunpack.c.l.s4 1934713408
        %v3297 = vunpack.c.0.s8 %v3296
        %v3298 = vperm.slane %v3292, %v3297
        %v3300 = vunpack.c.l.s4 1934713408
        %v3301 = vunpack.c.0.s8 %v3300
        %v3302 = vperm.slane %v3294, %v3301
        %v3303 = vrot.slane %v3266, 4
        %v3304 = vsel %vm2547, %v3303, %v3254
        %v3305 = vrot.slane %v3254, 4
        %v3306 = vsel %vm2547, %v3266, %v3305
        %v3308 = vunpack.c.l.s4 1934713408
        %v3309 = vunpack.c.0.s8 %v3308
        %v3310 = vperm.slane %v3304, %v3309
        %v3312 = vunpack.c.l.s4 1934713408
        %v3313 = vunpack.c.0.s8 %v3312
        %v3314 = vperm.slane %v3306, %v3313
        %v3315 = vrot.slane %v3298, 4
        %v3316 = vsel %vm2547, %v3315, %v3274
        %v3317 = vrot.slane %v3274, 4
        %v3318 = vsel %vm2547, %v3298, %v3317
        %v3319 = vrot.slane %v3302, 4
        %v3320 = vsel %vm2547, %v3319, %v3278
        %v3321 = vrot.slane %v3278, 4
        %v3322 = vsel %vm2547, %v3302, %v3321
        %v3323 = vrot.slane %v3310, 4
        %v3324 = vsel %vm2547, %v3323, %v3286
        %v3325 = vrot.slane %v3286, 4
        %v3326 = vsel %vm2547, %v3310, %v3325
        %v3327 = vrot.slane %v3314, 4
        %v3328 = vsel %vm2547, %v3327, %v3290
        %v3329 = vrot.slane %v3290, 4
        %v3330 = vsel %vm2547, %v3314, %v3329
        %v3331 = vrot.slane %v2255, 4
        %v3332 = vsel %vm2547, %v3331, %v2254
        %v3333 = vrot.slane %v2254, 4
        %v3334 = vsel %vm2547, %v2255, %v3333
        %v3336 = vunpack.c.l.s4 1983009808
        %v3337 = vunpack.c.0.s8 %v3336
        %v3338 = vperm.slane %v3332, %v3337
        %v3340 = vunpack.c.l.s4 1983009808
        %v3341 = vunpack.c.0.s8 %v3340
        %v3342 = vperm.slane %v3334, %v3341
        %v3343 = vrot.slane %v2385, 4
        %v3344 = vsel %vm2547, %v3343, %v2321
        %v3345 = vrot.slane %v2321, 4
        %v3346 = vsel %vm2547, %v2385, %v3345
        %v3348 = vunpack.c.l.s4 1983009808
        %v3349 = vunpack.c.0.s8 %v3348
        %v3350 = vperm.slane %v3344, %v3349
        %v3352 = vunpack.c.l.s4 1983009808
        %v3353 = vunpack.c.0.s8 %v3352
        %v3354 = vperm.slane %v3346, %v3353
        %v3355 = vrot.slane %v2257, 4
        %v3356 = vsel %vm2547, %v3355, %v2256
        %v3357 = vrot.slane %v2256, 4
        %v3358 = vsel %vm2547, %v2257, %v3357
        %v3360 = vunpack.c.l.s4 1983009808
        %v3361 = vunpack.c.0.s8 %v3360
        %v3362 = vperm.slane %v3356, %v3361
        %v3364 = vunpack.c.l.s4 1983009808
        %v3365 = vunpack.c.0.s8 %v3364
        %v3366 = vperm.slane %v3358, %v3365
        %v3367 = vrot.slane %v2513, 4
        %v3368 = vsel %vm2547, %v3367, %v2449
        %v3369 = vrot.slane %v2449, 4
        %v3370 = vsel %vm2547, %v2513, %v3369
        %v3372 = vunpack.c.l.s4 1983009808
        %v3373 = vunpack.c.0.s8 %v3372
        %v3374 = vperm.slane %v3368, %v3373
        %v3376 = vunpack.c.l.s4 1983009808
        %v3377 = vunpack.c.0.s8 %v3376
        %v3378 = vperm.slane %v3370, %v3377
        %v3379 = vrot.slane %v3350, 4
        %v3380 = vsel %vm2547, %v3379, %v3338
        %v3381 = vrot.slane %v3338, 4
        %v3382 = vsel %vm2547, %v3350, %v3381
        %v3384 = vunpack.c.l.s4 1934713408
        %v3385 = vunpack.c.0.s8 %v3384
        %v3386 = vperm.slane %v3380, %v3385
        %v3388 = vunpack.c.l.s4 1934713408
        %v3389 = vunpack.c.0.s8 %v3388
        %v3390 = vperm.slane %v3382, %v3389
        %v3391 = vrot.slane %v3354, 4
        %v3392 = vsel %vm2547, %v3391, %v3342
        %v3393 = vrot.slane %v3342, 4
        %v3394 = vsel %vm2547, %v3354, %v3393
        %v3396 = vunpack.c.l.s4 1934713408
        %v3397 = vunpack.c.0.s8 %v3396
        %v3398 = vperm.slane %v3392, %v3397
        %v3400 = vunpack.c.l.s4 1934713408
        %v3401 = vunpack.c.0.s8 %v3400
        %v3402 = vperm.slane %v3394, %v3401
        %v3403 = vrot.slane %v3374, 4
        %v3404 = vsel %vm2547, %v3403, %v3362
        %v3405 = vrot.slane %v3362, 4
        %v3406 = vsel %vm2547, %v3374, %v3405
        %v3408 = vunpack.c.l.s4 1934713408
        %v3409 = vunpack.c.0.s8 %v3408
        %v3410 = vperm.slane %v3404, %v3409
        %v3412 = vunpack.c.l.s4 1934713408
        %v3413 = vunpack.c.0.s8 %v3412
        %v3414 = vperm.slane %v3406, %v3413
        %v3415 = vrot.slane %v3378, 4
        %v3416 = vsel %vm2547, %v3415, %v3366
        %v3417 = vrot.slane %v3366, 4
        %v3418 = vsel %vm2547, %v3378, %v3417
        %v3420 = vunpack.c.l.s4 1934713408
        %v3421 = vunpack.c.0.s8 %v3420
        %v3422 = vperm.slane %v3416, %v3421
        %v3424 = vunpack.c.l.s4 1934713408
        %v3425 = vunpack.c.0.s8 %v3424
        %v3426 = vperm.slane %v3418, %v3425
        %v3427 = vrot.slane %v3410, 4
        %v3428 = vsel %vm2547, %v3427, %v3386
        %v3429 = vrot.slane %v3386, 4
        %v3430 = vsel %vm2547, %v3410, %v3429
        %v3431 = vrot.slane %v3414, 4
        %v3432 = vsel %vm2547, %v3431, %v3390
        %v3433 = vrot.slane %v3390, 4
        %v3434 = vsel %vm2547, %v3414, %v3433
        %v3435 = vrot.slane %v3422, 4
        %v3436 = vsel %vm2547, %v3435, %v3398
        %v3437 = vrot.slane %v3398, 4
        %v3438 = vsel %vm2547, %v3422, %v3437
        %v3439 = vrot.slane %v3426, 4
        %v3440 = vsel %vm2547, %v3439, %v3402
        %v3441 = vrot.slane %v3402, 4
        %v3442 = vsel %vm2547, %v3426, %v3441
        %v3443 = vrot.slane %v2259, 4
        %v3444 = vsel %vm2547, %v3443, %v2258
        %v3445 = vrot.slane %v2258, 4
        %v3446 = vsel %vm2547, %v2259, %v3445
        %v3448 = vunpack.c.l.s4 1983009808
        %v3449 = vunpack.c.0.s8 %v3448
        %v3450 = vperm.slane %v3444, %v3449
        %v3452 = vunpack.c.l.s4 1983009808
        %v3453 = vunpack.c.0.s8 %v3452
        %v3454 = vperm.slane %v3446, %v3453
        %v3455 = vrot.slane %v2387, 4
        %v3456 = vsel %vm2547, %v3455, %v2323
        %v3457 = vrot.slane %v2323, 4
        %v3458 = vsel %vm2547, %v2387, %v3457
        %v3460 = vunpack.c.l.s4 1983009808
        %v3461 = vunpack.c.0.s8 %v3460
        %v3462 = vperm.slane %v3456, %v3461
        %v3464 = vunpack.c.l.s4 1983009808
        %v3465 = vunpack.c.0.s8 %v3464
        %v3466 = vperm.slane %v3458, %v3465
        %v3467 = vrot.slane %v2261, 4
        %v3468 = vsel %vm2547, %v3467, %v2260
        %v3469 = vrot.slane %v2260, 4
        %v3470 = vsel %vm2547, %v2261, %v3469
        %v3472 = vunpack.c.l.s4 1983009808
        %v3473 = vunpack.c.0.s8 %v3472
        %v3474 = vperm.slane %v3468, %v3473
        %v3476 = vunpack.c.l.s4 1983009808
        %v3477 = vunpack.c.0.s8 %v3476
        %v3478 = vperm.slane %v3470, %v3477
        %v3479 = vrot.slane %v2515, 4
        %v3480 = vsel %vm2547, %v3479, %v2451
        %v3481 = vrot.slane %v2451, 4
        %v3482 = vsel %vm2547, %v2515, %v3481
        %v3484 = vunpack.c.l.s4 1983009808
        %v3485 = vunpack.c.0.s8 %v3484
        %v3486 = vperm.slane %v3480, %v3485
        %v3488 = vunpack.c.l.s4 1983009808
        %v3489 = vunpack.c.0.s8 %v3488
        %v3490 = vperm.slane %v3482, %v3489
        %v3491 = vrot.slane %v3462, 4
        %v3492 = vsel %vm2547, %v3491, %v3450
        %v3493 = vrot.slane %v3450, 4
        %v3494 = vsel %vm2547, %v3462, %v3493
        %v3496 = vunpack.c.l.s4 1934713408
        %v3497 = vunpack.c.0.s8 %v3496
        %v3498 = vperm.slane %v3492, %v3497
        %v3500 = vunpack.c.l.s4 1934713408
        %v3501 = vunpack.c.0.s8 %v3500
        %v3502 = vperm.slane %v3494, %v3501
        %v3503 = vrot.slane %v3466, 4
        %v3504 = vsel %vm2547, %v3503, %v3454
        %v3505 = vrot.slane %v3454, 4
        %v3506 = vsel %vm2547, %v3466, %v3505
        %v3508 = vunpack.c.l.s4 1934713408
        %v3509 = vunpack.c.0.s8 %v3508
        %v3510 = vperm.slane %v3504, %v3509
        %v3512 = vunpack.c.l.s4 1934713408
        %v3513 = vunpack.c.0.s8 %v3512
        %v3514 = vperm.slane %v3506, %v3513
        %v3515 = vrot.slane %v3486, 4
        %v3516 = vsel %vm2547, %v3515, %v3474
        %v3517 = vrot.slane %v3474, 4
        %v3518 = vsel %vm2547, %v3486, %v3517
        %v3520 = vunpack.c.l.s4 1934713408
        %v3521 = vunpack.c.0.s8 %v3520
        %v3522 = vperm.slane %v3516, %v3521
        %v3524 = vunpack.c.l.s4 1934713408
        %v3525 = vunpack.c.0.s8 %v3524
        %v3526 = vperm.slane %v3518, %v3525
        %v3527 = vrot.slane %v3490, 4
        %v3528 = vsel %vm2547, %v3527, %v3478
        %v3529 = vrot.slane %v3478, 4
        %v3530 = vsel %vm2547, %v3490, %v3529
        %v3532 = vunpack.c.l.s4 1934713408
        %v3533 = vunpack.c.0.s8 %v3532
        %v3534 = vperm.slane %v3528, %v3533
        %v3536 = vunpack.c.l.s4 1934713408
        %v3537 = vunpack.c.0.s8 %v3536
        %v3538 = vperm.slane %v3530, %v3537
        %v3539 = vrot.slane %v3522, 4
        %v3540 = vsel %vm2547, %v3539, %v3498
        %v3541 = vrot.slane %v3498, 4
        %v3542 = vsel %vm2547, %v3522, %v3541
        %v3543 = vrot.slane %v3526, 4
        %v3544 = vsel %vm2547, %v3543, %v3502
        %v3545 = vrot.slane %v3502, 4
        %v3546 = vsel %vm2547, %v3526, %v3545
        %v3547 = vrot.slane %v3534, 4
        %v3548 = vsel %vm2547, %v3547, %v3510
        %v3549 = vrot.slane %v3510, 4
        %v3550 = vsel %vm2547, %v3534, %v3549
        %v3551 = vrot.slane %v3538, 4
        %v3552 = vsel %vm2547, %v3551, %v3514
        %v3553 = vrot.slane %v3514, 4
        %v3554 = vsel %vm2547, %v3538, %v3553
        %v3555 = vrot.slane %v2263, 4
        %v3556 = vsel %vm2547, %v3555, %v2262
        %v3557 = vrot.slane %v2262, 4
        %v3558 = vsel %vm2547, %v2263, %v3557
        %v3560 = vunpack.c.l.s4 1983009808
        %v3561 = vunpack.c.0.s8 %v3560
        %v3562 = vperm.slane %v3556, %v3561
        %v3564 = vunpack.c.l.s4 1983009808
        %v3565 = vunpack.c.0.s8 %v3564
        %v3566 = vperm.slane %v3558, %v3565
        %v3567 = vrot.slane %v2389, 4
        %v3568 = vsel %vm2547, %v3567, %v2325
        %v3569 = vrot.slane %v2325, 4
        %v3570 = vsel %vm2547, %v2389, %v3569
        %v3572 = vunpack.c.l.s4 1983009808
        %v3573 = vunpack.c.0.s8 %v3572
        %v3574 = vperm.slane %v3568, %v3573
        %v3576 = vunpack.c.l.s4 1983009808
        %v3577 = vunpack.c.0.s8 %v3576
        %v3578 = vperm.slane %v3570, %v3577
        %v3579 = vrot.slane %v2265, 4
        %v3580 = vsel %vm2547, %v3579, %v2264
        %v3581 = vrot.slane %v2264, 4
        %v3582 = vsel %vm2547, %v2265, %v3581
        %v3584 = vunpack.c.l.s4 1983009808
        %v3585 = vunpack.c.0.s8 %v3584
        %v3586 = vperm.slane %v3580, %v3585
        %v3588 = vunpack.c.l.s4 1983009808
        %v3589 = vunpack.c.0.s8 %v3588
        %v3590 = vperm.slane %v3582, %v3589
        %v3591 = vrot.slane %v2517, 4
        %v3592 = vsel %vm2547, %v3591, %v2453
        %v3593 = vrot.slane %v2453, 4
        %v3594 = vsel %vm2547, %v2517, %v3593
        %v3596 = vunpack.c.l.s4 1983009808
        %v3597 = vunpack.c.0.s8 %v3596
        %v3598 = vperm.slane %v3592, %v3597
        %v3600 = vunpack.c.l.s4 1983009808
        %v3601 = vunpack.c.0.s8 %v3600
        %v3602 = vperm.slane %v3594, %v3601
        %v3603 = vrot.slane %v3574, 4
        %v3604 = vsel %vm2547, %v3603, %v3562
        %v3605 = vrot.slane %v3562, 4
        %v3606 = vsel %vm2547, %v3574, %v3605
        %v3608 = vunpack.c.l.s4 1934713408
        %v3609 = vunpack.c.0.s8 %v3608
        %v3610 = vperm.slane %v3604, %v3609
        %v3612 = vunpack.c.l.s4 1934713408
        %v3613 = vunpack.c.0.s8 %v3612
        %v3614 = vperm.slane %v3606, %v3613
        %v3615 = vrot.slane %v3578, 4
        %v3616 = vsel %vm2547, %v3615, %v3566
        %v3617 = vrot.slane %v3566, 4
        %v3618 = vsel %vm2547, %v3578, %v3617
        %v3620 = vunpack.c.l.s4 1934713408
        %v3621 = vunpack.c.0.s8 %v3620
        %v3622 = vperm.slane %v3616, %v3621
        %v3624 = vunpack.c.l.s4 1934713408
        %v3625 = vunpack.c.0.s8 %v3624
        %v3626 = vperm.slane %v3618, %v3625
        %v3627 = vrot.slane %v3598, 4
        %v3628 = vsel %vm2547, %v3627, %v3586
        %v3629 = vrot.slane %v3586, 4
        %v3630 = vsel %vm2547, %v3598, %v3629
        %v3632 = vunpack.c.l.s4 1934713408
        %v3633 = vunpack.c.0.s8 %v3632
        %v3634 = vperm.slane %v3628, %v3633
        %v3636 = vunpack.c.l.s4 1934713408
        %v3637 = vunpack.c.0.s8 %v3636
        %v3638 = vperm.slane %v3630, %v3637
        %v3639 = vrot.slane %v3602, 4
        %v3640 = vsel %vm2547, %v3639, %v3590
        %v3641 = vrot.slane %v3590, 4
        %v3642 = vsel %vm2547, %v3602, %v3641
        %v3644 = vunpack.c.l.s4 1934713408
        %v3645 = vunpack.c.0.s8 %v3644
        %v3646 = vperm.slane %v3640, %v3645
        %v3648 = vunpack.c.l.s4 1934713408
        %v3649 = vunpack.c.0.s8 %v3648
        %v3650 = vperm.slane %v3642, %v3649
        %v3651 = vrot.slane %v3634, 4
        %v3652 = vsel %vm2547, %v3651, %v3610
        %v3653 = vrot.slane %v3610, 4
        %v3654 = vsel %vm2547, %v3634, %v3653
        %v3655 = vrot.slane %v3638, 4
        %v3656 = vsel %vm2547, %v3655, %v3614
        %v3657 = vrot.slane %v3614, 4
        %v3658 = vsel %vm2547, %v3638, %v3657
        %v3659 = vrot.slane %v3646, 4
        %v3660 = vsel %vm2547, %v3659, %v3622
        %v3661 = vrot.slane %v3622, 4
        %v3662 = vsel %vm2547, %v3646, %v3661
        %v3663 = vrot.slane %v3650, 4
        %v3664 = vsel %vm2547, %v3663, %v3626
        %v3665 = vrot.slane %v3626, 4
        %v3666 = vsel %vm2547, %v3650, %v3665
        %v3667 = vrot.slane %v2267, 4
        %v3668 = vsel %vm2547, %v3667, %v2266
        %v3669 = vrot.slane %v2266, 4
        %v3670 = vsel %vm2547, %v2267, %v3669
        %v3672 = vunpack.c.l.s4 1983009808
        %v3673 = vunpack.c.0.s8 %v3672
        %v3674 = vperm.slane %v3668, %v3673
        %v3676 = vunpack.c.l.s4 1983009808
        %v3677 = vunpack.c.0.s8 %v3676
        %v3678 = vperm.slane %v3670, %v3677
        %v3679 = vrot.slane %v2391, 4
        %v3680 = vsel %vm2547, %v3679, %v2327
        %v3681 = vrot.slane %v2327, 4
        %v3682 = vsel %vm2547, %v2391, %v3681
        %v3684 = vunpack.c.l.s4 1983009808
        %v3685 = vunpack.c.0.s8 %v3684
        %v3686 = vperm.slane %v3680, %v3685
        %v3688 = vunpack.c.l.s4 1983009808
        %v3689 = vunpack.c.0.s8 %v3688
        %v3690 = vperm.slane %v3682, %v3689
        %v3691 = vrot.slane %v2269, 4
        %v3692 = vsel %vm2547, %v3691, %v2268
        %v3693 = vrot.slane %v2268, 4
        %v3694 = vsel %vm2547, %v2269, %v3693
        %v3696 = vunpack.c.l.s4 1983009808
        %v3697 = vunpack.c.0.s8 %v3696
        %v3698 = vperm.slane %v3692, %v3697
        %v3700 = vunpack.c.l.s4 1983009808
        %v3701 = vunpack.c.0.s8 %v3700
        %v3702 = vperm.slane %v3694, %v3701
        %v3703 = vrot.slane %v2519, 4
        %v3704 = vsel %vm2547, %v3703, %v2455
        %v3705 = vrot.slane %v2455, 4
        %v3706 = vsel %vm2547, %v2519, %v3705
        %v3708 = vunpack.c.l.s4 1983009808
        %v3709 = vunpack.c.0.s8 %v3708
        %v3710 = vperm.slane %v3704, %v3709
        %v3712 = vunpack.c.l.s4 1983009808
        %v3713 = vunpack.c.0.s8 %v3712
        %v3714 = vperm.slane %v3706, %v3713
        %v3715 = vrot.slane %v3686, 4
        %v3716 = vsel %vm2547, %v3715, %v3674
        %v3717 = vrot.slane %v3674, 4
        %v3718 = vsel %vm2547, %v3686, %v3717
        %v3720 = vunpack.c.l.s4 1934713408
        %v3721 = vunpack.c.0.s8 %v3720
        %v3722 = vperm.slane %v3716, %v3721
        %v3724 = vunpack.c.l.s4 1934713408
        %v3725 = vunpack.c.0.s8 %v3724
        %v3726 = vperm.slane %v3718, %v3725
        %v3727 = vrot.slane %v3690, 4
        %v3728 = vsel %vm2547, %v3727, %v3678
        %v3729 = vrot.slane %v3678, 4
        %v3730 = vsel %vm2547, %v3690, %v3729
        %v3732 = vunpack.c.l.s4 1934713408
        %v3733 = vunpack.c.0.s8 %v3732
        %v3734 = vperm.slane %v3728, %v3733
        %v3736 = vunpack.c.l.s4 1934713408
        %v3737 = vunpack.c.0.s8 %v3736
        %v3738 = vperm.slane %v3730, %v3737
        %v3739 = vrot.slane %v3710, 4
        %v3740 = vsel %vm2547, %v3739, %v3698
        %v3741 = vrot.slane %v3698, 4
        %v3742 = vsel %vm2547, %v3710, %v3741
        %v3744 = vunpack.c.l.s4 1934713408
        %v3745 = vunpack.c.0.s8 %v3744
        %v3746 = vperm.slane %v3740, %v3745
        %v3748 = vunpack.c.l.s4 1934713408
        %v3749 = vunpack.c.0.s8 %v3748
        %v3750 = vperm.slane %v3742, %v3749
        %v3751 = vrot.slane %v3714, 4
        %v3752 = vsel %vm2547, %v3751, %v3702
        %v3753 = vrot.slane %v3702, 4
        %v3754 = vsel %vm2547, %v3714, %v3753
        %v3756 = vunpack.c.l.s4 1934713408
        %v3757 = vunpack.c.0.s8 %v3756
        %v3758 = vperm.slane %v3752, %v3757
        %v3760 = vunpack.c.l.s4 1934713408
        %v3761 = vunpack.c.0.s8 %v3760
        %v3762 = vperm.slane %v3754, %v3761
        %v3763 = vrot.slane %v3746, 4
        %v3764 = vsel %vm2547, %v3763, %v3722
        %v3765 = vrot.slane %v3722, 4
        %v3766 = vsel %vm2547, %v3746, %v3765
        %v3767 = vrot.slane %v3750, 4
        %v3768 = vsel %vm2547, %v3767, %v3726
        %v3769 = vrot.slane %v3726, 4
        %v3770 = vsel %vm2547, %v3750, %v3769
        %v3771 = vrot.slane %v3758, 4
        %v3772 = vsel %vm2547, %v3771, %v3734
        %v3773 = vrot.slane %v3734, 4
        %v3774 = vsel %vm2547, %v3758, %v3773
        %v3775 = vrot.slane %v3762, 4
        %v3776 = vsel %vm2547, %v3775, %v3738
        %v3777 = vrot.slane %v3738, 4
        %v3778 = vsel %vm2547, %v3762, %v3777
        %v3779 = vrot.slane %v2271, 4
        %v3780 = vsel %vm2547, %v3779, %v2270
        %v3781 = vrot.slane %v2270, 4
        %v3782 = vsel %vm2547, %v2271, %v3781
        %v3784 = vunpack.c.l.s4 1983009808
        %v3785 = vunpack.c.0.s8 %v3784
        %v3786 = vperm.slane %v3780, %v3785
        %v3788 = vunpack.c.l.s4 1983009808
        %v3789 = vunpack.c.0.s8 %v3788
        %v3790 = vperm.slane %v3782, %v3789
        %v3791 = vrot.slane %v2393, 4
        %v3792 = vsel %vm2547, %v3791, %v2329
        %v3793 = vrot.slane %v2329, 4
        %v3794 = vsel %vm2547, %v2393, %v3793
        %v3796 = vunpack.c.l.s4 1983009808
        %v3797 = vunpack.c.0.s8 %v3796
        %v3798 = vperm.slane %v3792, %v3797
        %v3800 = vunpack.c.l.s4 1983009808
        %v3801 = vunpack.c.0.s8 %v3800
        %v3802 = vperm.slane %v3794, %v3801
        %v3803 = vrot.slane %v2273, 4
        %v3804 = vsel %vm2547, %v3803, %v2272
        %v3805 = vrot.slane %v2272, 4
        %v3806 = vsel %vm2547, %v2273, %v3805
        %v3808 = vunpack.c.l.s4 1983009808
        %v3809 = vunpack.c.0.s8 %v3808
        %v3810 = vperm.slane %v3804, %v3809
        %v3812 = vunpack.c.l.s4 1983009808
        %v3813 = vunpack.c.0.s8 %v3812
        %v3814 = vperm.slane %v3806, %v3813
        %v3815 = vrot.slane %v2521, 4
        %v3816 = vsel %vm2547, %v3815, %v2457
        %v3817 = vrot.slane %v2457, 4
        %v3818 = vsel %vm2547, %v2521, %v3817
        %v3820 = vunpack.c.l.s4 1983009808
        %v3821 = vunpack.c.0.s8 %v3820
        %v3822 = vperm.slane %v3816, %v3821
        %v3824 = vunpack.c.l.s4 1983009808
        %v3825 = vunpack.c.0.s8 %v3824
        %v3826 = vperm.slane %v3818, %v3825
        %v3827 = vrot.slane %v3798, 4
        %v3828 = vsel %vm2547, %v3827, %v3786
        %v3829 = vrot.slane %v3786, 4
        %v3830 = vsel %vm2547, %v3798, %v3829
        %v3832 = vunpack.c.l.s4 1934713408
        %v3833 = vunpack.c.0.s8 %v3832
        %v3834 = vperm.slane %v3828, %v3833
        %v3836 = vunpack.c.l.s4 1934713408
        %v3837 = vunpack.c.0.s8 %v3836
        %v3838 = vperm.slane %v3830, %v3837
        %v3839 = vrot.slane %v3802, 4
        %v3840 = vsel %vm2547, %v3839, %v3790
        %v3841 = vrot.slane %v3790, 4
        %v3842 = vsel %vm2547, %v3802, %v3841
        %v3844 = vunpack.c.l.s4 1934713408
        %v3845 = vunpack.c.0.s8 %v3844
        %v3846 = vperm.slane %v3840, %v3845
        %v3848 = vunpack.c.l.s4 1934713408
        %v3849 = vunpack.c.0.s8 %v3848
        %v3850 = vperm.slane %v3842, %v3849
        %v3851 = vrot.slane %v3822, 4
        %v3852 = vsel %vm2547, %v3851, %v3810
        %v3853 = vrot.slane %v3810, 4
        %v3854 = vsel %vm2547, %v3822, %v3853
        %v3856 = vunpack.c.l.s4 1934713408
        %v3857 = vunpack.c.0.s8 %v3856
        %v3858 = vperm.slane %v3852, %v3857
        %v3860 = vunpack.c.l.s4 1934713408
        %v3861 = vunpack.c.0.s8 %v3860
        %v3862 = vperm.slane %v3854, %v3861
        %v3863 = vrot.slane %v3826, 4
        %v3864 = vsel %vm2547, %v3863, %v3814
        %v3865 = vrot.slane %v3814, 4
        %v3866 = vsel %vm2547, %v3826, %v3865
        %v3868 = vunpack.c.l.s4 1934713408
        %v3869 = vunpack.c.0.s8 %v3868
        %v3870 = vperm.slane %v3864, %v3869
        %v3872 = vunpack.c.l.s4 1934713408
        %v3873 = vunpack.c.0.s8 %v3872
        %v3874 = vperm.slane %v3866, %v3873
        %v3875 = vrot.slane %v3858, 4
        %v3876 = vsel %vm2547, %v3875, %v3834
        %v3877 = vrot.slane %v3834, 4
        %v3878 = vsel %vm2547, %v3858, %v3877
        %v3879 = vrot.slane %v3862, 4
        %v3880 = vsel %vm2547, %v3879, %v3838
        %v3881 = vrot.slane %v3838, 4
        %v3882 = vsel %vm2547, %v3862, %v3881
        %v3883 = vrot.slane %v3870, 4
        %v3884 = vsel %vm2547, %v3883, %v3846
        %v3885 = vrot.slane %v3846, 4
        %v3886 = vsel %vm2547, %v3870, %v3885
        %v3887 = vrot.slane %v3874, 4
        %v3888 = vsel %vm2547, %v3887, %v3850
        %v3889 = vrot.slane %v3850, 4
        %v3890 = vsel %vm2547, %v3874, %v3889
        %v3891 = vrot.slane %v2275, 4
        %v3892 = vsel %vm2547, %v3891, %v2274
        %v3893 = vrot.slane %v2274, 4
        %v3894 = vsel %vm2547, %v2275, %v3893
        %v3896 = vunpack.c.l.s4 1983009808
        %v3897 = vunpack.c.0.s8 %v3896
        %v3898 = vperm.slane %v3892, %v3897
        %v3900 = vunpack.c.l.s4 1983009808
        %v3901 = vunpack.c.0.s8 %v3900
        %v3902 = vperm.slane %v3894, %v3901
        %v3903 = vrot.slane %v2395, 4
        %v3904 = vsel %vm2547, %v3903, %v2331
        %v3905 = vrot.slane %v2331, 4
        %v3906 = vsel %vm2547, %v2395, %v3905
        %v3908 = vunpack.c.l.s4 1983009808
        %v3909 = vunpack.c.0.s8 %v3908
        %v3910 = vperm.slane %v3904, %v3909
        %v3912 = vunpack.c.l.s4 1983009808
        %v3913 = vunpack.c.0.s8 %v3912
        %v3914 = vperm.slane %v3906, %v3913
        %v3915 = vrot.slane %v2277, 4
        %v3916 = vsel %vm2547, %v3915, %v2276
        %v3917 = vrot.slane %v2276, 4
        %v3918 = vsel %vm2547, %v2277, %v3917
        %v3920 = vunpack.c.l.s4 1983009808
        %v3921 = vunpack.c.0.s8 %v3920
        %v3922 = vperm.slane %v3916, %v3921
        %v3924 = vunpack.c.l.s4 1983009808
        %v3925 = vunpack.c.0.s8 %v3924
        %v3926 = vperm.slane %v3918, %v3925
        %v3927 = vrot.slane %v2523, 4
        %v3928 = vsel %vm2547, %v3927, %v2459
        %v3929 = vrot.slane %v2459, 4
        %v3930 = vsel %vm2547, %v2523, %v3929
        %v3932 = vunpack.c.l.s4 1983009808
        %v3933 = vunpack.c.0.s8 %v3932
        %v3934 = vperm.slane %v3928, %v3933
        %v3936 = vunpack.c.l.s4 1983009808
        %v3937 = vunpack.c.0.s8 %v3936
        %v3938 = vperm.slane %v3930, %v3937
        %v3939 = vrot.slane %v3910, 4
        %v3940 = vsel %vm2547, %v3939, %v3898
        %v3941 = vrot.slane %v3898, 4
        %v3942 = vsel %vm2547, %v3910, %v3941
        %v3944 = vunpack.c.l.s4 1934713408
        %v3945 = vunpack.c.0.s8 %v3944
        %v3946 = vperm.slane %v3940, %v3945
        %v3948 = vunpack.c.l.s4 1934713408
        %v3949 = vunpack.c.0.s8 %v3948
        %v3950 = vperm.slane %v3942, %v3949
        %v3951 = vrot.slane %v3914, 4
        %v3952 = vsel %vm2547, %v3951, %v3902
        %v3953 = vrot.slane %v3902, 4
        %v3954 = vsel %vm2547, %v3914, %v3953
        %v3956 = vunpack.c.l.s4 1934713408
        %v3957 = vunpack.c.0.s8 %v3956
        %v3958 = vperm.slane %v3952, %v3957
        %v3960 = vunpack.c.l.s4 1934713408
        %v3961 = vunpack.c.0.s8 %v3960
        %v3962 = vperm.slane %v3954, %v3961
        %v3963 = vrot.slane %v3934, 4
        %v3964 = vsel %vm2547, %v3963, %v3922
        %v3965 = vrot.slane %v3922, 4
        %v3966 = vsel %vm2547, %v3934, %v3965
        %v3968 = vunpack.c.l.s4 1934713408
        %v3969 = vunpack.c.0.s8 %v3968
        %v3970 = vperm.slane %v3964, %v3969
        %v3972 = vunpack.c.l.s4 1934713408
        %v3973 = vunpack.c.0.s8 %v3972
        %v3974 = vperm.slane %v3966, %v3973
        %v3975 = vrot.slane %v3938, 4
        %v3976 = vsel %vm2547, %v3975, %v3926
        %v3977 = vrot.slane %v3926, 4
        %v3978 = vsel %vm2547, %v3938, %v3977
        %v3980 = vunpack.c.l.s4 1934713408
        %v3981 = vunpack.c.0.s8 %v3980
        %v3982 = vperm.slane %v3976, %v3981
        %v3984 = vunpack.c.l.s4 1934713408
        %v3985 = vunpack.c.0.s8 %v3984
        %v3986 = vperm.slane %v3978, %v3985
        %v3987 = vrot.slane %v3970, 4
        %v3988 = vsel %vm2547, %v3987, %v3946
        %v3989 = vrot.slane %v3946, 4
        %v3990 = vsel %vm2547, %v3970, %v3989
        %v3991 = vrot.slane %v3974, 4
        %v3992 = vsel %vm2547, %v3991, %v3950
        %v3993 = vrot.slane %v3950, 4
        %v3994 = vsel %vm2547, %v3974, %v3993
        %v3995 = vrot.slane %v3982, 4
        %v3996 = vsel %vm2547, %v3995, %v3958
        %v3997 = vrot.slane %v3958, 4
        %v3998 = vsel %vm2547, %v3982, %v3997
        %v3999 = vrot.slane %v3986, 4
        %v4000 = vsel %vm2547, %v3999, %v3962
        %v4001 = vrot.slane %v3962, 4
        %v4002 = vsel %vm2547, %v3986, %v4001
        %v4003 = vrot.slane %v2279, 4
        %v4004 = vsel %vm2547, %v4003, %v2278
        %v4005 = vrot.slane %v2278, 4
        %v4006 = vsel %vm2547, %v2279, %v4005
        %v4008 = vunpack.c.l.s4 1983009808
        %v4009 = vunpack.c.0.s8 %v4008
        %v4010 = vperm.slane %v4004, %v4009
        %v4012 = vunpack.c.l.s4 1983009808
        %v4013 = vunpack.c.0.s8 %v4012
        %v4014 = vperm.slane %v4006, %v4013
        %v4015 = vrot.slane %v2397, 4
        %v4016 = vsel %vm2547, %v4015, %v2333
        %v4017 = vrot.slane %v2333, 4
        %v4018 = vsel %vm2547, %v2397, %v4017
        %v4020 = vunpack.c.l.s4 1983009808
        %v4021 = vunpack.c.0.s8 %v4020
        %v4022 = vperm.slane %v4016, %v4021
        %v4024 = vunpack.c.l.s4 1983009808
        %v4025 = vunpack.c.0.s8 %v4024
        %v4026 = vperm.slane %v4018, %v4025
        %v4027 = vrot.slane %v2281, 4
        %v4028 = vsel %vm2547, %v4027, %v2280
        %v4029 = vrot.slane %v2280, 4
        %v4030 = vsel %vm2547, %v2281, %v4029
        %v4032 = vunpack.c.l.s4 1983009808
        %v4033 = vunpack.c.0.s8 %v4032
        %v4034 = vperm.slane %v4028, %v4033
        %v4036 = vunpack.c.l.s4 1983009808
        %v4037 = vunpack.c.0.s8 %v4036
        %v4038 = vperm.slane %v4030, %v4037
        %v4039 = vrot.slane %v2525, 4
        %v4040 = vsel %vm2547, %v4039, %v2461
        %v4041 = vrot.slane %v2461, 4
        %v4042 = vsel %vm2547, %v2525, %v4041
        %v4044 = vunpack.c.l.s4 1983009808
        %v4045 = vunpack.c.0.s8 %v4044
        %v4046 = vperm.slane %v4040, %v4045
        %v4048 = vunpack.c.l.s4 1983009808
        %v4049 = vunpack.c.0.s8 %v4048
        %v4050 = vperm.slane %v4042, %v4049
        %v4051 = vrot.slane %v4022, 4
        %v4052 = vsel %vm2547, %v4051, %v4010
        %v4053 = vrot.slane %v4010, 4
        %v4054 = vsel %vm2547, %v4022, %v4053
        %v4056 = vunpack.c.l.s4 1934713408
        %v4057 = vunpack.c.0.s8 %v4056
        %v4058 = vperm.slane %v4052, %v4057
        %v4060 = vunpack.c.l.s4 1934713408
        %v4061 = vunpack.c.0.s8 %v4060
        %v4062 = vperm.slane %v4054, %v4061
        %v4063 = vrot.slane %v4026, 4
        %v4064 = vsel %vm2547, %v4063, %v4014
        %v4065 = vrot.slane %v4014, 4
        %v4066 = vsel %vm2547, %v4026, %v4065
        %v4068 = vunpack.c.l.s4 1934713408
        %v4069 = vunpack.c.0.s8 %v4068
        %v4070 = vperm.slane %v4064, %v4069
        %v4072 = vunpack.c.l.s4 1934713408
        %v4073 = vunpack.c.0.s8 %v4072
        %v4074 = vperm.slane %v4066, %v4073
        %v4075 = vrot.slane %v4046, 4
        %v4076 = vsel %vm2547, %v4075, %v4034
        %v4077 = vrot.slane %v4034, 4
        %v4078 = vsel %vm2547, %v4046, %v4077
        %v4080 = vunpack.c.l.s4 1934713408
        %v4081 = vunpack.c.0.s8 %v4080
        %v4082 = vperm.slane %v4076, %v4081
        %v4084 = vunpack.c.l.s4 1934713408
        %v4085 = vunpack.c.0.s8 %v4084
        %v4086 = vperm.slane %v4078, %v4085
        %v4087 = vrot.slane %v4050, 4
        %v4088 = vsel %vm2547, %v4087, %v4038
        %v4089 = vrot.slane %v4038, 4
        %v4090 = vsel %vm2547, %v4050, %v4089
        %v4092 = vunpack.c.l.s4 1934713408
        %v4093 = vunpack.c.0.s8 %v4092
        %v4094 = vperm.slane %v4088, %v4093
        %v4096 = vunpack.c.l.s4 1934713408
        %v4097 = vunpack.c.0.s8 %v4096
        %v4098 = vperm.slane %v4090, %v4097
        %v4099 = vrot.slane %v4082, 4
        %v4100 = vsel %vm2547, %v4099, %v4058
        %v4101 = vrot.slane %v4058, 4
        %v4102 = vsel %vm2547, %v4082, %v4101
        %v4103 = vrot.slane %v4086, 4
        %v4104 = vsel %vm2547, %v4103, %v4062
        %v4105 = vrot.slane %v4062, 4
        %v4106 = vsel %vm2547, %v4086, %v4105
        %v4107 = vrot.slane %v4094, 4
        %v4108 = vsel %vm2547, %v4107, %v4070
        %v4109 = vrot.slane %v4070, 4
        %v4110 = vsel %vm2547, %v4094, %v4109
        %v4111 = vrot.slane %v4098, 4
        %v4112 = vsel %vm2547, %v4111, %v4074
        %v4113 = vrot.slane %v4074, 4
        %v4114 = vsel %vm2547, %v4098, %v4113
        %v4115 = vrot.slane %v2283, 4
        %v4116 = vsel %vm2547, %v4115, %v2282
        %v4117 = vrot.slane %v2282, 4
        %v4118 = vsel %vm2547, %v2283, %v4117
        %v4120 = vunpack.c.l.s4 1983009808
        %v4121 = vunpack.c.0.s8 %v4120
        %v4122 = vperm.slane %v4116, %v4121
        %v4124 = vunpack.c.l.s4 1983009808
        %v4125 = vunpack.c.0.s8 %v4124
        %v4126 = vperm.slane %v4118, %v4125
        %v4127 = vrot.slane %v2399, 4
        %v4128 = vsel %vm2547, %v4127, %v2335
        %v4129 = vrot.slane %v2335, 4
        %v4130 = vsel %vm2547, %v2399, %v4129
        %v4132 = vunpack.c.l.s4 1983009808
        %v4133 = vunpack.c.0.s8 %v4132
        %v4134 = vperm.slane %v4128, %v4133
        %v4136 = vunpack.c.l.s4 1983009808
        %v4137 = vunpack.c.0.s8 %v4136
        %v4138 = vperm.slane %v4130, %v4137
        %v4139 = vrot.slane %v2285, 4
        %v4140 = vsel %vm2547, %v4139, %v2284
        %v4141 = vrot.slane %v2284, 4
        %v4142 = vsel %vm2547, %v2285, %v4141
        %v4144 = vunpack.c.l.s4 1983009808
        %v4145 = vunpack.c.0.s8 %v4144
        %v4146 = vperm.slane %v4140, %v4145
        %v4148 = vunpack.c.l.s4 1983009808
        %v4149 = vunpack.c.0.s8 %v4148
        %v4150 = vperm.slane %v4142, %v4149
        %v4151 = vrot.slane %v2527, 4
        %v4152 = vsel %vm2547, %v4151, %v2463
        %v4153 = vrot.slane %v2463, 4
        %v4154 = vsel %vm2547, %v2527, %v4153
        %v4156 = vunpack.c.l.s4 1983009808
        %v4157 = vunpack.c.0.s8 %v4156
        %v4158 = vperm.slane %v4152, %v4157
        %v4160 = vunpack.c.l.s4 1983009808
        %v4161 = vunpack.c.0.s8 %v4160
        %v4162 = vperm.slane %v4154, %v4161
        %v4163 = vrot.slane %v4134, 4
        %v4164 = vsel %vm2547, %v4163, %v4122
        %v4165 = vrot.slane %v4122, 4
        %v4166 = vsel %vm2547, %v4134, %v4165
        %v4168 = vunpack.c.l.s4 1934713408
        %v4169 = vunpack.c.0.s8 %v4168
        %v4170 = vperm.slane %v4164, %v4169
        %v4172 = vunpack.c.l.s4 1934713408
        %v4173 = vunpack.c.0.s8 %v4172
        %v4174 = vperm.slane %v4166, %v4173
        %v4175 = vrot.slane %v4138, 4
        %v4176 = vsel %vm2547, %v4175, %v4126
        %v4177 = vrot.slane %v4126, 4
        %v4178 = vsel %vm2547, %v4138, %v4177
        %v4180 = vunpack.c.l.s4 1934713408
        %v4181 = vunpack.c.0.s8 %v4180
        %v4182 = vperm.slane %v4176, %v4181
        %v4184 = vunpack.c.l.s4 1934713408
        %v4185 = vunpack.c.0.s8 %v4184
        %v4186 = vperm.slane %v4178, %v4185
        %v4187 = vrot.slane %v4158, 4
        %v4188 = vsel %vm2547, %v4187, %v4146
        %v4189 = vrot.slane %v4146, 4
        %v4190 = vsel %vm2547, %v4158, %v4189
        %v4192 = vunpack.c.l.s4 1934713408
        %v4193 = vunpack.c.0.s8 %v4192
        %v4194 = vperm.slane %v4188, %v4193
        %v4196 = vunpack.c.l.s4 1934713408
        %v4197 = vunpack.c.0.s8 %v4196
        %v4198 = vperm.slane %v4190, %v4197
        %v4199 = vrot.slane %v4162, 4
        %v4200 = vsel %vm2547, %v4199, %v4150
        %v4201 = vrot.slane %v4150, 4
        %v4202 = vsel %vm2547, %v4162, %v4201
        %v4204 = vunpack.c.l.s4 1934713408
        %v4205 = vunpack.c.0.s8 %v4204
        %v4206 = vperm.slane %v4200, %v4205
        %v4208 = vunpack.c.l.s4 1934713408
        %v4209 = vunpack.c.0.s8 %v4208
        %v4210 = vperm.slane %v4202, %v4209
        %v4211 = vrot.slane %v4194, 4
        %v4212 = vsel %vm2547, %v4211, %v4170
        %v4213 = vrot.slane %v4170, 4
        %v4214 = vsel %vm2547, %v4194, %v4213
        %v4215 = vrot.slane %v4198, 4
        %v4216 = vsel %vm2547, %v4215, %v4174
        %v4217 = vrot.slane %v4174, 4
        %v4218 = vsel %vm2547, %v4198, %v4217
        %v4219 = vrot.slane %v4206, 4
        %v4220 = vsel %vm2547, %v4219, %v4182
        %v4221 = vrot.slane %v4182, 4
        %v4222 = vsel %vm2547, %v4206, %v4221
        %v4223 = vrot.slane %v4210, 4
        %v4224 = vsel %vm2547, %v4223, %v4186
        %v4225 = vrot.slane %v4186, 4
        %v4226 = vsel %vm2547, %v4210, %v4225
        %v4227 = vrot.slane %v2287, 4
        %v4228 = vsel %vm2547, %v4227, %v2286
        %v4229 = vrot.slane %v2286, 4
        %v4230 = vsel %vm2547, %v2287, %v4229
        %v4232 = vunpack.c.l.s4 1983009808
        %v4233 = vunpack.c.0.s8 %v4232
        %v4234 = vperm.slane %v4228, %v4233
        %v4236 = vunpack.c.l.s4 1983009808
        %v4237 = vunpack.c.0.s8 %v4236
        %v4238 = vperm.slane %v4230, %v4237
        %v4239 = vrot.slane %v2401, 4
        %v4240 = vsel %vm2547, %v4239, %v2337
        %v4241 = vrot.slane %v2337, 4
        %v4242 = vsel %vm2547, %v2401, %v4241
        %v4244 = vunpack.c.l.s4 1983009808
        %v4245 = vunpack.c.0.s8 %v4244
        %v4246 = vperm.slane %v4240, %v4245
        %v4248 = vunpack.c.l.s4 1983009808
        %v4249 = vunpack.c.0.s8 %v4248
        %v4250 = vperm.slane %v4242, %v4249
        %v4251 = vrot.slane %v2289, 4
        %v4252 = vsel %vm2547, %v4251, %v2288
        %v4253 = vrot.slane %v2288, 4
        %v4254 = vsel %vm2547, %v2289, %v4253
        %v4256 = vunpack.c.l.s4 1983009808
        %v4257 = vunpack.c.0.s8 %v4256
        %v4258 = vperm.slane %v4252, %v4257
        %v4260 = vunpack.c.l.s4 1983009808
        %v4261 = vunpack.c.0.s8 %v4260
        %v4262 = vperm.slane %v4254, %v4261
        %v4263 = vrot.slane %v2529, 4
        %v4264 = vsel %vm2547, %v4263, %v2465
        %v4265 = vrot.slane %v2465, 4
        %v4266 = vsel %vm2547, %v2529, %v4265
        %v4268 = vunpack.c.l.s4 1983009808
        %v4269 = vunpack.c.0.s8 %v4268
        %v4270 = vperm.slane %v4264, %v4269
        %v4272 = vunpack.c.l.s4 1983009808
        %v4273 = vunpack.c.0.s8 %v4272
        %v4274 = vperm.slane %v4266, %v4273
        %v4275 = vrot.slane %v4246, 4
        %v4276 = vsel %vm2547, %v4275, %v4234
        %v4277 = vrot.slane %v4234, 4
        %v4278 = vsel %vm2547, %v4246, %v4277
        %v4280 = vunpack.c.l.s4 1934713408
        %v4281 = vunpack.c.0.s8 %v4280
        %v4282 = vperm.slane %v4276, %v4281
        %v4284 = vunpack.c.l.s4 1934713408
        %v4285 = vunpack.c.0.s8 %v4284
        %v4286 = vperm.slane %v4278, %v4285
        %v4287 = vrot.slane %v4250, 4
        %v4288 = vsel %vm2547, %v4287, %v4238
        %v4289 = vrot.slane %v4238, 4
        %v4290 = vsel %vm2547, %v4250, %v4289
        %v4292 = vunpack.c.l.s4 1934713408
        %v4293 = vunpack.c.0.s8 %v4292
        %v4294 = vperm.slane %v4288, %v4293
        %v4296 = vunpack.c.l.s4 1934713408
        %v4297 = vunpack.c.0.s8 %v4296
        %v4298 = vperm.slane %v4290, %v4297
        %v4299 = vrot.slane %v4270, 4
        %v4300 = vsel %vm2547, %v4299, %v4258
        %v4301 = vrot.slane %v4258, 4
        %v4302 = vsel %vm2547, %v4270, %v4301
        %v4304 = vunpack.c.l.s4 1934713408
        %v4305 = vunpack.c.0.s8 %v4304
        %v4306 = vperm.slane %v4300, %v4305
        %v4308 = vunpack.c.l.s4 1934713408
        %v4309 = vunpack.c.0.s8 %v4308
        %v4310 = vperm.slane %v4302, %v4309
        %v4311 = vrot.slane %v4274, 4
        %v4312 = vsel %vm2547, %v4311, %v4262
        %v4313 = vrot.slane %v4262, 4
        %v4314 = vsel %vm2547, %v4274, %v4313
        %v4316 = vunpack.c.l.s4 1934713408
        %v4317 = vunpack.c.0.s8 %v4316
        %v4318 = vperm.slane %v4312, %v4317
        %v4320 = vunpack.c.l.s4 1934713408
        %v4321 = vunpack.c.0.s8 %v4320
        %v4322 = vperm.slane %v4314, %v4321
        %v4323 = vrot.slane %v4306, 4
        %v4324 = vsel %vm2547, %v4323, %v4282
        %v4325 = vrot.slane %v4282, 4
        %v4326 = vsel %vm2547, %v4306, %v4325
        %v4327 = vrot.slane %v4310, 4
        %v4328 = vsel %vm2547, %v4327, %v4286
        %v4329 = vrot.slane %v4286, 4
        %v4330 = vsel %vm2547, %v4310, %v4329
        %v4331 = vrot.slane %v4318, 4
        %v4332 = vsel %vm2547, %v4331, %v4294
        %v4333 = vrot.slane %v4294, 4
        %v4334 = vsel %vm2547, %v4318, %v4333
        %v4335 = vrot.slane %v4322, 4
        %v4336 = vsel %vm2547, %v4335, %v4298
        %v4337 = vrot.slane %v4298, 4
        %v4338 = vsel %vm2547, %v4322, %v4337
        %v4339 = vsel %vm877, %v2644, -inf
        %4340 = vmax.xlane.f32.xlu0 %v4339
        %v4341 = vpop.xlane.xlu0 %4340
        %v4342 = vsel %vm877, %v2646, -inf
        %4343 = vmax.xlane.f32.xlu0 %v4342
        %v4344 = vpop.xlane.xlu0 %4343
        %v4345 = vsel %vm877, %v2648, -inf
        %4346 = vmax.xlane.f32.xlu0 %v4345
        %v4347 = vpop.xlane.xlu0 %4346
        %v4348 = vsel %vm877, %v2650, -inf
        %4349 = vmax.xlane.f32.xlu0 %v4348
        %v4350 = vpop.xlane.xlu0 %4349
        %v4351 = vsel %vm877, %v2652, -inf
        %4352 = vmax.xlane.f32.xlu0 %v4351
        %v4353 = vpop.xlane.xlu0 %4352
        %v4354 = vsel %vm877, %v2654, -inf
        %4355 = vmax.xlane.f32.xlu0 %v4354
        %v4356 = vpop.xlane.xlu0 %4355
        %v4357 = vsel %vm877, %v2656, -inf
        %4358 = vmax.xlane.f32.xlu0 %v4357
        %v4359 = vpop.xlane.xlu0 %4358
        %v4360 = vsel %vm877, %v2658, -inf
        %4361 = vmax.xlane.f32.xlu0 %v4360
        %v4362 = vpop.xlane.xlu0 %4361
        %v4363 = vsel %vm877, %v2756, -inf
        %4364 = vmax.xlane.f32.xlu0 %v4363
        %v4365 = vpop.xlane.xlu0 %4364
        %v4366 = vsel %vm877, %v2758, -inf
        %4367 = vmax.xlane.f32.xlu0 %v4366
        %v4368 = vpop.xlane.xlu0 %4367
        %v4369 = vsel %vm877, %v2760, -inf
        %4370 = vmax.xlane.f32.xlu0 %v4369
        %v4371 = vpop.xlane.xlu0 %4370
        %v4372 = vsel %vm877, %v2762, -inf
        %4373 = vmax.xlane.f32.xlu0 %v4372
        %v4374 = vpop.xlane.xlu0 %4373
        %v4375 = vsel %vm877, %v2764, -inf
        %4376 = vmax.xlane.f32.xlu0 %v4375
        %v4377 = vpop.xlane.xlu0 %4376
        %v4378 = vsel %vm877, %v2766, -inf
        %4379 = vmax.xlane.f32.xlu0 %v4378
        %v4380 = vpop.xlane.xlu0 %4379
        %v4381 = vsel %vm877, %v2768, -inf
        %4382 = vmax.xlane.f32.xlu0 %v4381
        %v4383 = vpop.xlane.xlu0 %4382
        %v4384 = vsel %vm877, %v2770, -inf
        %4385 = vmax.xlane.f32.xlu0 %v4384
        %v4386 = vpop.xlane.xlu0 %4385
        %v4387 = vsel %vm877, %v2868, -inf
        %4388 = vmax.xlane.f32.xlu0 %v4387
        %v4389 = vpop.xlane.xlu0 %4388
        %v4390 = vsel %vm877, %v2870, -inf
        %4391 = vmax.xlane.f32.xlu0 %v4390
        %v4392 = vpop.xlane.xlu0 %4391
        %v4393 = vsel %vm877, %v2872, -inf
        %4394 = vmax.xlane.f32.xlu0 %v4393
        %v4395 = vpop.xlane.xlu0 %4394
        %v4396 = vsel %vm877, %v2874, -inf
        %4397 = vmax.xlane.f32.xlu0 %v4396
        %v4398 = vpop.xlane.xlu0 %4397
        %v4399 = vsel %vm877, %v2876, -inf
        %4400 = vmax.xlane.f32.xlu0 %v4399
        %v4401 = vpop.xlane.xlu0 %4400
        %v4402 = vsel %vm877, %v2878, -inf
        %4403 = vmax.xlane.f32.xlu0 %v4402
        %v4404 = vpop.xlane.xlu0 %4403
        %v4405 = vsel %vm877, %v2880, -inf
        %4406 = vmax.xlane.f32.xlu0 %v4405
        %v4407 = vpop.xlane.xlu0 %4406
        %v4408 = vsel %vm877, %v2882, -inf
        %4409 = vmax.xlane.f32.xlu0 %v4408
        %v4410 = vpop.xlane.xlu0 %4409
        %v4411 = vsel %vm877, %v2980, -inf
        %4412 = vmax.xlane.f32.xlu0 %v4411
        %v4413 = vpop.xlane.xlu0 %4412
        %v4414 = vsel %vm877, %v2982, -inf
        %4415 = vmax.xlane.f32.xlu0 %v4414
        %v4416 = vpop.xlane.xlu0 %4415
        %v4417 = vsel %vm877, %v2984, -inf
        %4418 = vmax.xlane.f32.xlu0 %v4417
        %v4419 = vpop.xlane.xlu0 %4418
        %v4420 = vsel %vm877, %v2986, -inf
        %4421 = vmax.xlane.f32.xlu0 %v4420
        %v4422 = vpop.xlane.xlu0 %4421
        %v4423 = vsel %vm877, %v2988, -inf
        %4424 = vmax.xlane.f32.xlu0 %v4423
        %v4425 = vpop.xlane.xlu0 %4424
        %v4426 = vsel %vm877, %v2990, -inf
        %4427 = vmax.xlane.f32.xlu0 %v4426
        %v4428 = vpop.xlane.xlu0 %4427
        %v4429 = vsel %vm877, %v2992, -inf
        %4430 = vmax.xlane.f32.xlu0 %v4429
        %v4431 = vpop.xlane.xlu0 %4430
        %v4432 = vsel %vm877, %v2994, -inf
        %4433 = vmax.xlane.f32.xlu0 %v4432
        %v4434 = vpop.xlane.xlu0 %4433
        %v4435 = vsel %vm877, %v3092, -inf
        %4436 = vmax.xlane.f32.xlu0 %v4435
        %v4437 = vpop.xlane.xlu0 %4436
        %v4438 = vsel %vm877, %v3094, -inf
        %4439 = vmax.xlane.f32.xlu0 %v4438
        %v4440 = vpop.xlane.xlu0 %4439
        %v4441 = vsel %vm877, %v3096, -inf
        %4442 = vmax.xlane.f32.xlu0 %v4441
        %v4443 = vpop.xlane.xlu0 %4442
        %v4444 = vsel %vm877, %v3098, -inf
        %4445 = vmax.xlane.f32.xlu0 %v4444
        %v4446 = vpop.xlane.xlu0 %4445
        %v4447 = vsel %vm877, %v3100, -inf
        %4448 = vmax.xlane.f32.xlu0 %v4447
        %v4449 = vpop.xlane.xlu0 %4448
        %v4450 = vsel %vm877, %v3102, -inf
        %4451 = vmax.xlane.f32.xlu0 %v4450
        %v4452 = vpop.xlane.xlu0 %4451
        %v4453 = vsel %vm877, %v3104, -inf
        %4454 = vmax.xlane.f32.xlu0 %v4453
        %v4455 = vpop.xlane.xlu0 %4454
        %v4456 = vsel %vm877, %v3106, -inf
        %4457 = vmax.xlane.f32.xlu0 %v4456
        %v4458 = vpop.xlane.xlu0 %4457
        %v4459 = vsel %vm877, %v3204, -inf
        %4460 = vmax.xlane.f32.xlu0 %v4459
        %v4461 = vpop.xlane.xlu0 %4460
        %v4462 = vsel %vm877, %v3206, -inf
        %4463 = vmax.xlane.f32.xlu0 %v4462
        %v4464 = vpop.xlane.xlu0 %4463
        %v4465 = vsel %vm877, %v3208, -inf
        %4466 = vmax.xlane.f32.xlu0 %v4465
        %v4467 = vpop.xlane.xlu0 %4466
        %v4468 = vsel %vm877, %v3210, -inf
        %4469 = vmax.xlane.f32.xlu0 %v4468
        %v4470 = vpop.xlane.xlu0 %4469
        %v4471 = vsel %vm877, %v3212, -inf
        %4472 = vmax.xlane.f32.xlu0 %v4471
        %v4473 = vpop.xlane.xlu0 %4472
        %v4474 = vsel %vm877, %v3214, -inf
        %4475 = vmax.xlane.f32.xlu0 %v4474
        %v4476 = vpop.xlane.xlu0 %4475
        %v4477 = vsel %vm877, %v3216, -inf
        %4478 = vmax.xlane.f32.xlu0 %v4477
        %v4479 = vpop.xlane.xlu0 %4478
        %v4480 = vsel %vm877, %v3218, -inf
        %4481 = vmax.xlane.f32.xlu0 %v4480
        %v4482 = vpop.xlane.xlu0 %4481
        %v4483 = vsel %vm877, %v3316, -inf
        %4484 = vmax.xlane.f32.xlu0 %v4483
        %v4485 = vpop.xlane.xlu0 %4484
        %v4486 = vsel %vm877, %v3318, -inf
        %4487 = vmax.xlane.f32.xlu0 %v4486
        %v4488 = vpop.xlane.xlu0 %4487
        %v4489 = vsel %vm877, %v3320, -inf
        %4490 = vmax.xlane.f32.xlu0 %v4489
        %v4491 = vpop.xlane.xlu0 %4490
        %v4492 = vsel %vm877, %v3322, -inf
        %4493 = vmax.xlane.f32.xlu0 %v4492
        %v4494 = vpop.xlane.xlu0 %4493
        %v4495 = vsel %vm877, %v3324, -inf
        %4496 = vmax.xlane.f32.xlu0 %v4495
        %v4497 = vpop.xlane.xlu0 %4496
        %v4498 = vsel %vm877, %v3326, -inf
        %4499 = vmax.xlane.f32.xlu0 %v4498
        %v4500 = vpop.xlane.xlu0 %4499
        %v4501 = vsel %vm877, %v3328, -inf
        %4502 = vmax.xlane.f32.xlu0 %v4501
        %v4503 = vpop.xlane.xlu0 %4502
        %v4504 = vsel %vm877, %v3330, -inf
        %4505 = vmax.xlane.f32.xlu0 %v4504
        %v4506 = vpop.xlane.xlu0 %4505
        %v4507 = vsel %vm877, %v3428, -inf
        %4508 = vmax.xlane.f32.xlu0 %v4507
        %v4509 = vpop.xlane.xlu0 %4508
        %v4510 = vsel %vm877, %v3430, -inf
        %4511 = vmax.xlane.f32.xlu0 %v4510
        %v4512 = vpop.xlane.xlu0 %4511
        %v4513 = vsel %vm877, %v3432, -inf
        %4514 = vmax.xlane.f32.xlu0 %v4513
        %v4515 = vpop.xlane.xlu0 %4514
        %v4516 = vsel %vm877, %v3434, -inf
        %4517 = vmax.xlane.f32.xlu0 %v4516
        %v4518 = vpop.xlane.xlu0 %4517
        %v4519 = vsel %vm877, %v3436, -inf
        %4520 = vmax.xlane.f32.xlu0 %v4519
        %v4521 = vpop.xlane.xlu0 %4520
        %v4522 = vsel %vm877, %v3438, -inf
        %4523 = vmax.xlane.f32.xlu0 %v4522
        %v4524 = vpop.xlane.xlu0 %4523
        %v4525 = vsel %vm877, %v3440, -inf
        %4526 = vmax.xlane.f32.xlu0 %v4525
        %v4527 = vpop.xlane.xlu0 %4526
        %v4528 = vsel %vm877, %v3442, -inf
        %4529 = vmax.xlane.f32.xlu0 %v4528
        %v4530 = vpop.xlane.xlu0 %4529
        %v4531 = vsel %vm877, %v3540, -inf
        %4532 = vmax.xlane.f32.xlu0 %v4531
        %v4533 = vpop.xlane.xlu0 %4532
        %v4534 = vsel %vm877, %v3542, -inf
        %4535 = vmax.xlane.f32.xlu0 %v4534
        %v4536 = vpop.xlane.xlu0 %4535
        %v4537 = vsel %vm877, %v3544, -inf
        %4538 = vmax.xlane.f32.xlu0 %v4537
        %v4539 = vpop.xlane.xlu0 %4538
        %v4540 = vsel %vm877, %v3546, -inf
        %4541 = vmax.xlane.f32.xlu0 %v4540
        %v4542 = vpop.xlane.xlu0 %4541
        %v4543 = vsel %vm877, %v3548, -inf
        %4544 = vmax.xlane.f32.xlu0 %v4543
        %v4545 = vpop.xlane.xlu0 %4544
        %v4546 = vsel %vm877, %v3550, -inf
        %4547 = vmax.xlane.f32.xlu0 %v4546
        %v4548 = vpop.xlane.xlu0 %4547
        %v4549 = vsel %vm877, %v3552, -inf
        %4550 = vmax.xlane.f32.xlu0 %v4549
        %v4551 = vpop.xlane.xlu0 %4550
        %v4552 = vsel %vm877, %v3554, -inf
        %4553 = vmax.xlane.f32.xlu0 %v4552
        %v4554 = vpop.xlane.xlu0 %4553
        %v4555 = vsel %vm877, %v3652, -inf
        %4556 = vmax.xlane.f32.xlu0 %v4555
        %v4557 = vpop.xlane.xlu0 %4556
        %v4558 = vsel %vm877, %v3654, -inf
        %4559 = vmax.xlane.f32.xlu0 %v4558
        %v4560 = vpop.xlane.xlu0 %4559
        %v4561 = vsel %vm877, %v3656, -inf
        %4562 = vmax.xlane.f32.xlu0 %v4561
        %v4563 = vpop.xlane.xlu0 %4562
        %v4564 = vsel %vm877, %v3658, -inf
        %4565 = vmax.xlane.f32.xlu0 %v4564
        %v4566 = vpop.xlane.xlu0 %4565
        %v4567 = vsel %vm877, %v3660, -inf
        %4568 = vmax.xlane.f32.xlu0 %v4567
        %v4569 = vpop.xlane.xlu0 %4568
        %v4570 = vsel %vm877, %v3662, -inf
        %4571 = vmax.xlane.f32.xlu0 %v4570
        %v4572 = vpop.xlane.xlu0 %4571
        %v4573 = vsel %vm877, %v3664, -inf
        %4574 = vmax.xlane.f32.xlu0 %v4573
        %v4575 = vpop.xlane.xlu0 %4574
        %v4576 = vsel %vm877, %v3666, -inf
        %4577 = vmax.xlane.f32.xlu0 %v4576
        %v4578 = vpop.xlane.xlu0 %4577
        %v4579 = vsel %vm877, %v3764, -inf
        %4580 = vmax.xlane.f32.xlu0 %v4579
        %v4581 = vpop.xlane.xlu0 %4580
        %v4582 = vsel %vm877, %v3766, -inf
        %4583 = vmax.xlane.f32.xlu0 %v4582
        %v4584 = vpop.xlane.xlu0 %4583
        %v4585 = vsel %vm877, %v3768, -inf
        %4586 = vmax.xlane.f32.xlu0 %v4585
        %v4587 = vpop.xlane.xlu0 %4586
        %v4588 = vsel %vm877, %v3770, -inf
        %4589 = vmax.xlane.f32.xlu0 %v4588
        %v4590 = vpop.xlane.xlu0 %4589
        %v4591 = vsel %vm877, %v3772, -inf
        %4592 = vmax.xlane.f32.xlu0 %v4591
        %v4593 = vpop.xlane.xlu0 %4592
        %v4594 = vsel %vm877, %v3774, -inf
        %4595 = vmax.xlane.f32.xlu0 %v4594
        %v4596 = vpop.xlane.xlu0 %4595
        %v4597 = vsel %vm877, %v3776, -inf
        %4598 = vmax.xlane.f32.xlu0 %v4597
        %v4599 = vpop.xlane.xlu0 %4598
        %v4600 = vsel %vm877, %v3778, -inf
        %4601 = vmax.xlane.f32.xlu0 %v4600
        %v4602 = vpop.xlane.xlu0 %4601
        %v4603 = vsel %vm877, %v3876, -inf
        %4604 = vmax.xlane.f32.xlu0 %v4603
        %v4605 = vpop.xlane.xlu0 %4604
        %v4606 = vsel %vm877, %v3878, -inf
        %4607 = vmax.xlane.f32.xlu0 %v4606
        %v4608 = vpop.xlane.xlu0 %4607
        %v4609 = vsel %vm877, %v3880, -inf
        %4610 = vmax.xlane.f32.xlu0 %v4609
        %v4611 = vpop.xlane.xlu0 %4610
        %v4612 = vsel %vm877, %v3882, -inf
        %4613 = vmax.xlane.f32.xlu0 %v4612
        %v4614 = vpop.xlane.xlu0 %4613
        %v4615 = vsel %vm877, %v3884, -inf
        %4616 = vmax.xlane.f32.xlu0 %v4615
        %v4617 = vpop.xlane.xlu0 %4616
        %v4618 = vsel %vm877, %v3886, -inf
        %4619 = vmax.xlane.f32.xlu0 %v4618
        %v4620 = vpop.xlane.xlu0 %4619
        %v4621 = vsel %vm877, %v3888, -inf
        %4622 = vmax.xlane.f32.xlu0 %v4621
        %v4623 = vpop.xlane.xlu0 %4622
        %v4624 = vsel %vm877, %v3890, -inf
        %4625 = vmax.xlane.f32.xlu0 %v4624
        %v4626 = vpop.xlane.xlu0 %4625
        %v4627 = vsel %vm877, %v3988, -inf
        %4628 = vmax.xlane.f32.xlu0 %v4627
        %v4629 = vpop.xlane.xlu0 %4628
        %v4630 = vsel %vm877, %v3990, -inf
        %4631 = vmax.xlane.f32.xlu0 %v4630
        %v4632 = vpop.xlane.xlu0 %4631
        %v4633 = vsel %vm877, %v3992, -inf
        %4634 = vmax.xlane.f32.xlu0 %v4633
        %v4635 = vpop.xlane.xlu0 %4634
        %v4636 = vsel %vm877, %v3994, -inf
        %4637 = vmax.xlane.f32.xlu0 %v4636
        %v4638 = vpop.xlane.xlu0 %4637
        %v4639 = vsel %vm877, %v3996, -inf
        %4640 = vmax.xlane.f32.xlu0 %v4639
        %v4641 = vpop.xlane.xlu0 %4640
        %v4642 = vsel %vm877, %v3998, -inf
        %4643 = vmax.xlane.f32.xlu0 %v4642
        %v4644 = vpop.xlane.xlu0 %4643
        %v4645 = vsel %vm877, %v4000, -inf
        %4646 = vmax.xlane.f32.xlu0 %v4645
        %v4647 = vpop.xlane.xlu0 %4646
        %v4648 = vsel %vm877, %v4002, -inf
        %4649 = vmax.xlane.f32.xlu0 %v4648
        %v4650 = vpop.xlane.xlu0 %4649
        %v4651 = vsel %vm877, %v4100, -inf
        %4652 = vmax.xlane.f32.xlu0 %v4651
        %v4653 = vpop.xlane.xlu0 %4652
        %v4654 = vsel %vm877, %v4102, -inf
        %4655 = vmax.xlane.f32.xlu0 %v4654
        %v4656 = vpop.xlane.xlu0 %4655
        %v4657 = vsel %vm877, %v4104, -inf
        %4658 = vmax.xlane.f32.xlu0 %v4657
        %v4659 = vpop.xlane.xlu0 %4658
        %v4660 = vsel %vm877, %v4106, -inf
        %4661 = vmax.xlane.f32.xlu0 %v4660
        %v4662 = vpop.xlane.xlu0 %4661
        %v4663 = vsel %vm877, %v4108, -inf
        %4664 = vmax.xlane.f32.xlu0 %v4663
        %v4665 = vpop.xlane.xlu0 %4664
        %v4666 = vsel %vm877, %v4110, -inf
        %4667 = vmax.xlane.f32.xlu0 %v4666
        %v4668 = vpop.xlane.xlu0 %4667
        %v4669 = vsel %vm877, %v4112, -inf
        %4670 = vmax.xlane.f32.xlu0 %v4669
        %v4671 = vpop.xlane.xlu0 %4670
        %v4672 = vsel %vm877, %v4114, -inf
        %4673 = vmax.xlane.f32.xlu0 %v4672
        %v4674 = vpop.xlane.xlu0 %4673
        %v4675 = vsel %vm877, %v4212, -inf
        %4676 = vmax.xlane.f32.xlu0 %v4675
        %v4677 = vpop.xlane.xlu0 %4676
        %v4678 = vsel %vm877, %v4214, -inf
        %4679 = vmax.xlane.f32.xlu0 %v4678
        %v4680 = vpop.xlane.xlu0 %4679
        %v4681 = vsel %vm877, %v4216, -inf
        %4682 = vmax.xlane.f32.xlu0 %v4681
        %v4683 = vpop.xlane.xlu0 %4682
        %v4684 = vsel %vm877, %v4218, -inf
        %4685 = vmax.xlane.f32.xlu0 %v4684
        %v4686 = vpop.xlane.xlu0 %4685
        %v4687 = vsel %vm877, %v4220, -inf
        %4688 = vmax.xlane.f32.xlu0 %v4687
        %v4689 = vpop.xlane.xlu0 %4688
        %v4690 = vsel %vm877, %v4222, -inf
        %4691 = vmax.xlane.f32.xlu0 %v4690
        %v4692 = vpop.xlane.xlu0 %4691
        %v4693 = vsel %vm877, %v4224, -inf
        %4694 = vmax.xlane.f32.xlu0 %v4693
        %v4695 = vpop.xlane.xlu0 %4694
        %v4696 = vsel %vm877, %v4226, -inf
        %4697 = vmax.xlane.f32.xlu0 %v4696
        %v4698 = vpop.xlane.xlu0 %4697
        %v4699 = vsel %vm877, %v4324, -inf
        %4700 = vmax.xlane.f32.xlu0 %v4699
        %v4701 = vpop.xlane.xlu0 %4700
        %v4702 = vsel %vm877, %v4326, -inf
        %4703 = vmax.xlane.f32.xlu0 %v4702
        %v4704 = vpop.xlane.xlu0 %4703
        %v4705 = vsel %vm877, %v4328, -inf
        %4706 = vmax.xlane.f32.xlu0 %v4705
        %v4707 = vpop.xlane.xlu0 %4706
        %v4708 = vsel %vm877, %v4330, -inf
        %4709 = vmax.xlane.f32.xlu0 %v4708
        %v4710 = vpop.xlane.xlu0 %4709
        %v4711 = vsel %vm877, %v4332, -inf
        %4712 = vmax.xlane.f32.xlu0 %v4711
        %v4713 = vpop.xlane.xlu0 %4712
        %v4714 = vsel %vm877, %v4334, -inf
        %4715 = vmax.xlane.f32.xlu0 %v4714
        %v4716 = vpop.xlane.xlu0 %4715
        %v4717 = vsel %vm877, %v4336, -inf
        %4718 = vmax.xlane.f32.xlu0 %v4717
        %v4719 = vpop.xlane.xlu0 %4718
        %v4720 = vsel %vm877, %v4338, -inf
        %4721 = vmax.xlane.f32.xlu0 %v4720
        %v4722 = vpop.xlane.xlu0 %4721
        %v4851 = vlaneseq
        %v4852 = vand.u32 %v4851, 127
        %v4853 = vperm.slane %v4341, %v4852
        %v4854 = vperm.slane %v4344, %v4852
        %v4855 = vperm.slane %v4347, %v4852
        %v4856 = vperm.slane %v4350, %v4852
        %v4857 = vperm.slane %v4353, %v4852
        %v4858 = vperm.slane %v4356, %v4852
        %v4859 = vperm.slane %v4359, %v4852
        %v4860 = vperm.slane %v4362, %v4852
        %v4861 = vperm.slane %v4365, %v4852
        %v4862 = vperm.slane %v4368, %v4852
        %v4863 = vperm.slane %v4371, %v4852
        %v4864 = vperm.slane %v4374, %v4852
        %v4865 = vperm.slane %v4377, %v4852
        %v4866 = vperm.slane %v4380, %v4852
        %v4867 = vperm.slane %v4383, %v4852
        %v4868 = vperm.slane %v4386, %v4852
        %v4869 = vperm.slane %v4389, %v4852
        %v4870 = vperm.slane %v4392, %v4852
        %v4871 = vperm.slane %v4395, %v4852
        %v4872 = vperm.slane %v4398, %v4852
        %v4873 = vperm.slane %v4401, %v4852
        %v4874 = vperm.slane %v4404, %v4852
        %v4875 = vperm.slane %v4407, %v4852
        %v4876 = vperm.slane %v4410, %v4852
        %v4877 = vperm.slane %v4413, %v4852
        %v4878 = vperm.slane %v4416, %v4852
        %v4879 = vperm.slane %v4419, %v4852
        %v4880 = vperm.slane %v4422, %v4852
        %v4881 = vperm.slane %v4425, %v4852
        %v4882 = vperm.slane %v4428, %v4852
        %v4883 = vperm.slane %v4431, %v4852
        %v4884 = vperm.slane %v4434, %v4852
        %v4885 = vperm.slane %v4437, %v4852
        %v4886 = vperm.slane %v4440, %v4852
        %v4887 = vperm.slane %v4443, %v4852
        %v4888 = vperm.slane %v4446, %v4852
        %v4889 = vperm.slane %v4449, %v4852
        %v4890 = vperm.slane %v4452, %v4852
        %v4891 = vperm.slane %v4455, %v4852
        %v4892 = vperm.slane %v4458, %v4852
        %v4893 = vperm.slane %v4461, %v4852
        %v4894 = vperm.slane %v4464, %v4852
        %v4895 = vperm.slane %v4467, %v4852
        %v4896 = vperm.slane %v4470, %v4852
        %v4897 = vperm.slane %v4473, %v4852
        %v4898 = vperm.slane %v4476, %v4852
        %v4899 = vperm.slane %v4479, %v4852
        %v4900 = vperm.slane %v4482, %v4852
        %v4901 = vperm.slane %v4485, %v4852
        %v4902 = vperm.slane %v4488, %v4852
        %v4903 = vperm.slane %v4491, %v4852
        %v4904 = vperm.slane %v4494, %v4852
        %v4905 = vperm.slane %v4497, %v4852
        %v4906 = vperm.slane %v4500, %v4852
        %v4907 = vperm.slane %v4503, %v4852
        %v4908 = vperm.slane %v4506, %v4852
        %v4909 = vperm.slane %v4509, %v4852
        %v4910 = vperm.slane %v4512, %v4852
        %v4911 = vperm.slane %v4515, %v4852
        %v4912 = vperm.slane %v4518, %v4852
        %v4913 = vperm.slane %v4521, %v4852
        %v4914 = vperm.slane %v4524, %v4852
        %v4915 = vperm.slane %v4527, %v4852
        %v4916 = vperm.slane %v4530, %v4852
        %v4917 = vperm.slane %v4533, %v4852
        %v4918 = vperm.slane %v4536, %v4852
        %v4919 = vperm.slane %v4539, %v4852
        %v4920 = vperm.slane %v4542, %v4852
        %v4921 = vperm.slane %v4545, %v4852
        %v4922 = vperm.slane %v4548, %v4852
        %v4923 = vperm.slane %v4551, %v4852
        %v4924 = vperm.slane %v4554, %v4852
        %v4925 = vperm.slane %v4557, %v4852
        %v4926 = vperm.slane %v4560, %v4852
        %v4927 = vperm.slane %v4563, %v4852
        %v4928 = vperm.slane %v4566, %v4852
        %v4929 = vperm.slane %v4569, %v4852
        %v4930 = vperm.slane %v4572, %v4852
        %v4931 = vperm.slane %v4575, %v4852
        %v4932 = vperm.slane %v4578, %v4852
        %v4933 = vperm.slane %v4581, %v4852
        %v4934 = vperm.slane %v4584, %v4852
        %v4935 = vperm.slane %v4587, %v4852
        %v4936 = vperm.slane %v4590, %v4852
        %v4937 = vperm.slane %v4593, %v4852
        %v4938 = vperm.slane %v4596, %v4852
        %v4939 = vperm.slane %v4599, %v4852
        %v4940 = vperm.slane %v4602, %v4852
        %v4941 = vperm.slane %v4605, %v4852
        %v4942 = vperm.slane %v4608, %v4852
        %v4943 = vperm.slane %v4611, %v4852
        %v4944 = vperm.slane %v4614, %v4852
        %v4945 = vperm.slane %v4617, %v4852
        %v4946 = vperm.slane %v4620, %v4852
        %v4947 = vperm.slane %v4623, %v4852
        %v4948 = vperm.slane %v4626, %v4852
        %v4949 = vperm.slane %v4629, %v4852
        %v4950 = vperm.slane %v4632, %v4852
        %v4951 = vperm.slane %v4635, %v4852
        %v4952 = vperm.slane %v4638, %v4852
        %v4953 = vperm.slane %v4641, %v4852
        %v4954 = vperm.slane %v4644, %v4852
        %v4955 = vperm.slane %v4647, %v4852
        %v4956 = vperm.slane %v4650, %v4852
        %v4957 = vperm.slane %v4653, %v4852
        %v4958 = vperm.slane %v4656, %v4852
        %v4959 = vperm.slane %v4659, %v4852
        %v4960 = vperm.slane %v4662, %v4852
        %v4961 = vperm.slane %v4665, %v4852
        %v4962 = vperm.slane %v4668, %v4852
        %v4963 = vperm.slane %v4671, %v4852
        %v4964 = vperm.slane %v4674, %v4852
        %v4965 = vperm.slane %v4677, %v4852
        %v4966 = vperm.slane %v4680, %v4852
        %v4967 = vperm.slane %v4683, %v4852
        %v4968 = vperm.slane %v4686, %v4852
        %v4969 = vperm.slane %v4689, %v4852
        %v4970 = vperm.slane %v4692, %v4852
        %v4971 = vperm.slane %v4695, %v4852
        %v4972 = vperm.slane %v4698, %v4852
        %v4973 = vperm.slane %v4701, %v4852
        %v4974 = vperm.slane %v4704, %v4852
        %v4975 = vperm.slane %v4707, %v4852
        %v4976 = vperm.slane %v4710, %v4852
        %v4977 = vperm.slane %v4713, %v4852
        %v4978 = vperm.slane %v4716, %v4852
        %v4979 = vperm.slane %v4719, %v4852
        %v4980 = vperm.slane %v4722, %v4852
        %vm4981 = vcmask 1041409
        %v4982 = vsel %vm4981, %v4854, %v4853
        %vm4983 = vcmask 1042434
        %v4984 = vsel %vm4983, %v4855, %v4982
        %vm4985 = vcmask 1043459
        %v4986 = vsel %vm4985, %v4856, %v4984
        %vm4987 = vcmask 1044484
        %v4988 = vsel %vm4987, %v4857, %v4986
        %vm4989 = vcmask 1045509
        %v4990 = vsel %vm4989, %v4858, %v4988
        %vm4991 = vcmask 1046534
        %v4992 = vsel %vm4991, %v4859, %v4990
        %vm4993 = vcmask 1047559
        %v4994 = vsel %vm4993, %v4860, %v4992
        %v4995 = vsel %vm4981, %v4862, %v4861
        %v4996 = vsel %vm4983, %v4863, %v4995
        %v4997 = vsel %vm4985, %v4864, %v4996
        %v4998 = vsel %vm4987, %v4865, %v4997
        %v4999 = vsel %vm4989, %v4866, %v4998
        %v5000 = vsel %vm4991, %v4867, %v4999
        %v5001 = vsel %vm4993, %v4868, %v5000
        %v5002 = vsel %vm4981, %v4870, %v4869
        %v5003 = vsel %vm4983, %v4871, %v5002
        %v5004 = vsel %vm4985, %v4872, %v5003
        %v5005 = vsel %vm4987, %v4873, %v5004
        %v5006 = vsel %vm4989, %v4874, %v5005
        %v5007 = vsel %vm4991, %v4875, %v5006
        %v5008 = vsel %vm4993, %v4876, %v5007
        %v5009 = vsel %vm4981, %v4878, %v4877
        %v5010 = vsel %vm4983, %v4879, %v5009
        %v5011 = vsel %vm4985, %v4880, %v5010
        %v5012 = vsel %vm4987, %v4881, %v5011
        %v5013 = vsel %vm4989, %v4882, %v5012
        %v5014 = vsel %vm4991, %v4883, %v5013
        %v5015 = vsel %vm4993, %v4884, %v5014
        %v5016 = vsel %vm4981, %v4886, %v4885
        %v5017 = vsel %vm4983, %v4887, %v5016
        %v5018 = vsel %vm4985, %v4888, %v5017
        %v5019 = vsel %vm4987, %v4889, %v5018
        %v5020 = vsel %vm4989, %v4890, %v5019
        %v5021 = vsel %vm4991, %v4891, %v5020
        %v5022 = vsel %vm4993, %v4892, %v5021
        %v5023 = vsel %vm4981, %v4894, %v4893
        %v5024 = vsel %vm4983, %v4895, %v5023
        %v5025 = vsel %vm4985, %v4896, %v5024
        %v5026 = vsel %vm4987, %v4897, %v5025
        %v5027 = vsel %vm4989, %v4898, %v5026
        %v5028 = vsel %vm4991, %v4899, %v5027
        %v5029 = vsel %vm4993, %v4900, %v5028
        %v5030 = vsel %vm4981, %v4902, %v4901
        %v5031 = vsel %vm4983, %v4903, %v5030
        %v5032 = vsel %vm4985, %v4904, %v5031
        %v5033 = vsel %vm4987, %v4905, %v5032
        %v5034 = vsel %vm4989, %v4906, %v5033
        %v5035 = vsel %vm4991, %v4907, %v5034
        %v5036 = vsel %vm4993, %v4908, %v5035
        %v5037 = vsel %vm4981, %v4910, %v4909
        %v5038 = vsel %vm4983, %v4911, %v5037
        %v5039 = vsel %vm4985, %v4912, %v5038
        %v5040 = vsel %vm4987, %v4913, %v5039
        %v5041 = vsel %vm4989, %v4914, %v5040
        %v5042 = vsel %vm4991, %v4915, %v5041
        %v5043 = vsel %vm4993, %v4916, %v5042
        %v5044 = vsel %vm4981, %v4918, %v4917
        %v5045 = vsel %vm4983, %v4919, %v5044
        %v5046 = vsel %vm4985, %v4920, %v5045
        %v5047 = vsel %vm4987, %v4921, %v5046
        %v5048 = vsel %vm4989, %v4922, %v5047
        %v5049 = vsel %vm4991, %v4923, %v5048
        %v5050 = vsel %vm4993, %v4924, %v5049
        %v5051 = vsel %vm4981, %v4926, %v4925
        %v5052 = vsel %vm4983, %v4927, %v5051
        %v5053 = vsel %vm4985, %v4928, %v5052
        %v5054 = vsel %vm4987, %v4929, %v5053
        %v5055 = vsel %vm4989, %v4930, %v5054
        %v5056 = vsel %vm4991, %v4931, %v5055
        %v5057 = vsel %vm4993, %v4932, %v5056
        %v5058 = vsel %vm4981, %v4934, %v4933
        %v5059 = vsel %vm4983, %v4935, %v5058
        %v5060 = vsel %vm4985, %v4936, %v5059
        %v5061 = vsel %vm4987, %v4937, %v5060
        %v5062 = vsel %vm4989, %v4938, %v5061
        %v5063 = vsel %vm4991, %v4939, %v5062
        %v5064 = vsel %vm4993, %v4940, %v5063
        %v5065 = vsel %vm4981, %v4942, %v4941
        %v5066 = vsel %vm4983, %v4943, %v5065
        %v5067 = vsel %vm4985, %v4944, %v5066
        %v5068 = vsel %vm4987, %v4945, %v5067
        %v5069 = vsel %vm4989, %v4946, %v5068
        %v5070 = vsel %vm4991, %v4947, %v5069
        %v5071 = vsel %vm4993, %v4948, %v5070
        %v5072 = vsel %vm4981, %v4950, %v4949
        %v5073 = vsel %vm4983, %v4951, %v5072
        %v5074 = vsel %vm4985, %v4952, %v5073
        %v5075 = vsel %vm4987, %v4953, %v5074
        %v5076 = vsel %vm4989, %v4954, %v5075
        %v5077 = vsel %vm4991, %v4955, %v5076
        %v5078 = vsel %vm4993, %v4956, %v5077
        %v5079 = vsel %vm4981, %v4958, %v4957
        %v5080 = vsel %vm4983, %v4959, %v5079
        %v5081 = vsel %vm4985, %v4960, %v5080
        %v5082 = vsel %vm4987, %v4961, %v5081
        %v5083 = vsel %vm4989, %v4962, %v5082
        %v5084 = vsel %vm4991, %v4963, %v5083
        %v5085 = vsel %vm4993, %v4964, %v5084
        %v5086 = vsel %vm4981, %v4966, %v4965
        %v5087 = vsel %vm4983, %v4967, %v5086
        %v5088 = vsel %vm4985, %v4968, %v5087
        %v5089 = vsel %vm4987, %v4969, %v5088
        %v5090 = vsel %vm4989, %v4970, %v5089
        %v5091 = vsel %vm4991, %v4971, %v5090
        %v5092 = vsel %vm4993, %v4972, %v5091
        %v5093 = vsel %vm4981, %v4974, %v4973
        %v5094 = vsel %vm4983, %v4975, %v5093
        %v5095 = vsel %vm4985, %v4976, %v5094
        %v5096 = vsel %vm4987, %v4977, %v5095
        %v5097 = vsel %vm4989, %v4978, %v5096
        %v5098 = vsel %vm4991, %v4979, %v5097
        %v5099 = vsel %vm4993, %v4980, %v5098
        %5116 = vxpose.xlu0.b32.start [1/16] %v4994, 128
        %5117 = vxpose.xlu0.b32.cont [2/16] %v5001, 128
        %5118 = vxpose.xlu0.b32.cont [3/16] %v5008, 128
        %5119 = vxpose.xlu0.b32.cont [4/16] %v5015, 128
        %5120 = vxpose.xlu0.b32.cont [5/16] %v5022, 128
        %5121 = vxpose.xlu0.b32.cont [6/16] %v5029, 128
        %5122 = vxpose.xlu0.b32.cont [7/16] %v5036, 128
        %5123 = vxpose.xlu0.b32.cont [8/16] %v5043, 128
        %5124 = vxpose.xlu0.b32.cont [9/16] %v5050, 128
        %5125 = vxpose.xlu0.b32.cont [10/16] %v5057, 128
        %5126 = vxpose.xlu0.b32.cont [11/16] %v5064, 128
        %5127 = vxpose.xlu0.b32.cont [12/16] %v5071, 128
        %5128 = vxpose.xlu0.b32.cont [13/16] %v5078, 128
        %5129 = vxpose.xlu0.b32.cont [14/16] %v5085, 128
        %5130 = vxpose.xlu0.b32.cont [15/16] %v5092, 128
        %5131 = vxpose.xlu0.b32.end [16/16] %v5099, 128
        %v5132 = vpop.trf.xlu0
        %v5133 = vpop.trf.xlu0
        %v5134 = vpop.trf.xlu0
        %v5135 = vpop.trf.xlu0
        %v5136 = vpop.trf.xlu0
        %v5137 = vpop.trf.xlu0
        %v5138 = vpop.trf.xlu0
        %v5139 = vpop.trf.xlu0
        %v5140 = vpop.trf.xlu0
        %v5141 = vpop.trf.xlu0
        %v5142 = vpop.trf.xlu0
        %v5143 = vpop.trf.xlu0
        %v5144 = vpop.trf.xlu0
        %v5145 = vpop.trf.xlu0
        %v5146 = vpop.trf.xlu0
        %v5147 = vpop.trf.xlu0
        %v5148 = vpack.c.bf16 %v5132, %v5132
        %v5149 = vld [vmem:[%s11] sm:$0xff]
        %v5150 = vld [vmem:[%s11 + $0x8] sm:$0xff]
        %v5151 = vld [vmem:[%s11 + $0x10] sm:$0xff]
        %v5152 = vld [vmem:[%s11 + $0x18] sm:$0xff]
        %v5153 = vld [vmem:[%s11 + $0x20] sm:$0xff]
        %v5154 = vld [vmem:[%s11 + $0x28] sm:$0xff]
        %v5155 = vld [vmem:[%s11 + $0x30] sm:$0xff]
        %v5156 = vld [vmem:[%s11 + $0x38] sm:$0xff]
        %v5157 = vld [vmem:[%s11 + $0x40] sm:$0xff]
        %v5158 = vld [vmem:[%s11 + $0x48] sm:$0xff]
        %v5159 = vld [vmem:[%s11 + $0x50] sm:$0xff]
        %v5160 = vld [vmem:[%s11 + $0x58] sm:$0xff]
        %v5161 = vld [vmem:[%s11 + $0x60] sm:$0xff]
        %v5162 = vld [vmem:[%s11 + $0x68] sm:$0xff]
        %v5163 = vld [vmem:[%s11 + $0x70] sm:$0xff]
        %v5164 = vld [vmem:[%s11 + $0x78] sm:$0xff]
        %v5165 = vld [vmem:[%s11 + $0x80] sm:$0xff]
        %v5166 = vld [vmem:[%s11 + $0x88] sm:$0xff]
        %v5167 = vld [vmem:[%s11 + $0x90] sm:$0xff]
        %v5168 = vld [vmem:[%s11 + $0x98] sm:$0xff]
        %v5169 = vld [vmem:[%s11 + $0xa0] sm:$0xff]
        %v5170 = vld [vmem:[%s11 + $0xa8] sm:$0xff]
        %v5171 = vld [vmem:[%s11 + $0xb0] sm:$0xff]
        %v5172 = vld [vmem:[%s11 + $0xb8] sm:$0xff]
        %v5173 = vld [vmem:[%s11 + $0xc0] sm:$0xff]
        %v5174 = vld [vmem:[%s11 + $0xc8] sm:$0xff]
        %v5175 = vld [vmem:[%s11 + $0xd0] sm:$0xff]
        %v5176 = vld [vmem:[%s11 + $0xd8] sm:$0xff]
        %v5177 = vld [vmem:[%s11 + $0xe0] sm:$0xff]
        %v5178 = vld [vmem:[%s11 + $0xe8] sm:$0xff]
        %v5179 = vld [vmem:[%s11 + $0xf0] sm:$0xff]
        %v5180 = vld [vmem:[%s11 + $0xf8] sm:$0xff]
        %v5181 = vld [vmem:[%s12] sm:$0xf]
        %v5183 = vperm.slane %v5181, 0
        %v5184 = vperm.slane %v5181, 1
        %v5185 = vperm.slane %v5181, 2
        %v5186 = vperm.slane %v5181, 3
        %v5223 = vunpack.c.l.b16 %v5149
        %v5224 = vunpack.c.h.b16 %v5149
        %v5225 = vunpack.c.l.b16 %v5150
        %v5226 = vunpack.c.h.b16 %v5150
        %v5227 = vunpack.c.l.b16 %v5151
        %v5228 = vunpack.c.h.b16 %v5151
        %v5229 = vunpack.c.l.b16 %v5152
        %v5230 = vunpack.c.h.b16 %v5152
        %v5231 = vunpack.c.l.b16 %v5153
        %v5232 = vunpack.c.h.b16 %v5153
        %v5233 = vunpack.c.l.b16 %v5154
        %v5234 = vunpack.c.h.b16 %v5154
        %v5235 = vunpack.c.l.b16 %v5155
        %v5236 = vunpack.c.h.b16 %v5155
        %v5237 = vunpack.c.l.b16 %v5156
        %v5238 = vunpack.c.h.b16 %v5156
        %v5239 = vunpack.c.l.b16 %v5157
        %v5240 = vunpack.c.h.b16 %v5157
        %v5241 = vunpack.c.l.b16 %v5158
        %v5242 = vunpack.c.h.b16 %v5158
        %v5243 = vunpack.c.l.b16 %v5159
        %v5244 = vunpack.c.h.b16 %v5159
        %v5245 = vunpack.c.l.b16 %v5160
        %v5246 = vunpack.c.h.b16 %v5160
        %v5247 = vunpack.c.l.b16 %v5161
        %v5248 = vunpack.c.h.b16 %v5161
        %v5249 = vunpack.c.l.b16 %v5162
        %v5250 = vunpack.c.h.b16 %v5162
        %v5251 = vunpack.c.l.b16 %v5163
        %v5252 = vunpack.c.h.b16 %v5163
        %v5253 = vunpack.c.l.b16 %v5164
        %v5254 = vunpack.c.h.b16 %v5164
        %v5255 = vunpack.c.l.b16 %v5165
        %v5256 = vunpack.c.h.b16 %v5165
        %v5257 = vunpack.c.l.b16 %v5166
        %v5258 = vunpack.c.h.b16 %v5166
        %v5259 = vunpack.c.l.b16 %v5167
        %v5260 = vunpack.c.h.b16 %v5167
        %v5261 = vunpack.c.l.b16 %v5168
        %v5262 = vunpack.c.h.b16 %v5168
        %v5263 = vunpack.c.l.b16 %v5169
        %v5264 = vunpack.c.h.b16 %v5169
        %v5265 = vunpack.c.l.b16 %v5170
        %v5266 = vunpack.c.h.b16 %v5170
        %v5267 = vunpack.c.l.b16 %v5171
        %v5268 = vunpack.c.h.b16 %v5171
        %v5269 = vunpack.c.l.b16 %v5172
        %v5270 = vunpack.c.h.b16 %v5172
        %v5271 = vunpack.c.l.b16 %v5173
        %v5272 = vunpack.c.h.b16 %v5173
        %v5273 = vunpack.c.l.b16 %v5174
        %v5274 = vunpack.c.h.b16 %v5174
        %v5275 = vunpack.c.l.b16 %v5175
        %v5276 = vunpack.c.h.b16 %v5175
        %v5277 = vunpack.c.l.b16 %v5176
        %v5278 = vunpack.c.h.b16 %v5176
        %v5279 = vunpack.c.l.b16 %v5177
        %v5280 = vunpack.c.h.b16 %v5177
        %v5281 = vunpack.c.l.b16 %v5178
        %v5282 = vunpack.c.h.b16 %v5178
        %v5283 = vunpack.c.l.b16 %v5179
        %v5284 = vunpack.c.h.b16 %v5179
        %v5285 = vunpack.c.l.b16 %v5180
        %v5286 = vunpack.c.h.b16 %v5180
        %v5287 = vpack.c.b16 %v5227, %v5223
        %v5288 = vpack.c.b16 %v5228, %v5224
        %v5289 = vpack.c.b16 %v5229, %v5225
        %v5290 = vpack.c.b16 %v5230, %v5226
        %v5291 = vpack.c.b16 %v5235, %v5231
        %v5292 = vpack.c.b16 %v5236, %v5232
        %v5293 = vpack.c.b16 %v5237, %v5233
        %v5294 = vpack.c.b16 %v5238, %v5234
        %v5295 = vpack.c.b16 %v5243, %v5239
        %v5296 = vpack.c.b16 %v5244, %v5240
        %v5297 = vpack.c.b16 %v5245, %v5241
        %v5298 = vpack.c.b16 %v5246, %v5242
        %v5299 = vpack.c.b16 %v5251, %v5247
        %v5300 = vpack.c.b16 %v5252, %v5248
        %v5301 = vpack.c.b16 %v5253, %v5249
        %v5302 = vpack.c.b16 %v5254, %v5250
        %v5303 = vpack.c.b16 %v5259, %v5255
        %v5304 = vpack.c.b16 %v5260, %v5256
        %v5305 = vpack.c.b16 %v5261, %v5257
        %v5306 = vpack.c.b16 %v5262, %v5258
        %v5307 = vpack.c.b16 %v5267, %v5263
        %v5308 = vpack.c.b16 %v5268, %v5264
        %v5309 = vpack.c.b16 %v5269, %v5265
        %v5310 = vpack.c.b16 %v5270, %v5266
        %v5311 = vpack.c.b16 %v5275, %v5271
        %v5312 = vpack.c.b16 %v5276, %v5272
        %v5313 = vpack.c.b16 %v5277, %v5273
        %v5314 = vpack.c.b16 %v5278, %v5274
        %v5315 = vpack.c.b16 %v5283, %v5279
        %v5316 = vpack.c.b16 %v5284, %v5280
        %v5317 = vpack.c.b16 %v5285, %v5281
        %v5318 = vpack.c.b16 %v5286, %v5282
        %5351 = vmatpush.bf16.msra.mxu0 %v5315
        %5352 = vmatpush.bf16.msra.mxu0 %v5311
        %5353 = vmatpush.bf16.msra.mxu0 %v5307
        %5354 = vmatpush.bf16.msra.mxu0 %v5303
        %5355 = vmatpush.bf16.msra.mxu0 %v5299
        %5356 = vmatpush.bf16.msra.mxu0 %v5295
        %5357 = vmatpush.bf16.msra.mxu0 %v5291
        %5358 = vmatpush.bf16.msra.mxu0 %v5287
        %5359 = vmatmul.bf16.gmra.mxu0 %v5148
        %v5360 = vpop.f32.mrf.mxu0
        %v5361 = vadd.f32 %v5183, %v5360
        %v5362 = vpop.f32.mrf.mxu0
        %5363 = vdwg.mxu0
        %5364 = vmatpush.bf16.msra.mxu0 %v5316
        %5365 = vmatpush.bf16.msra.mxu0 %v5312
        %5366 = vmatpush.bf16.msra.mxu0 %v5308
        %5367 = vmatpush.bf16.msra.mxu0 %v5304
        %5368 = vmatpush.bf16.msra.mxu0 %v5300
        %5369 = vmatpush.bf16.msra.mxu0 %v5296
        %5370 = vmatpush.bf16.msra.mxu0 %v5292
        %5371 = vmatpush.bf16.msra.mxu0 %v5288
        %5372 = vmatmul.bf16.gmra.mxu0 %v5148
        %v5373 = vpop.f32.mrf.mxu0
        %v5374 = vadd.f32 %v5184, %v5373
        %v5375 = vpop.f32.mrf.mxu0
        %5376 = vdwg.mxu0
        %5377 = vmatpush.bf16.msra.mxu0 %v5317
        %5378 = vmatpush.bf16.msra.mxu0 %v5313
        %5379 = vmatpush.bf16.msra.mxu0 %v5309
        %5380 = vmatpush.bf16.msra.mxu0 %v5305
        %5381 = vmatpush.bf16.msra.mxu0 %v5301
        %5382 = vmatpush.bf16.msra.mxu0 %v5297
        %5383 = vmatpush.bf16.msra.mxu0 %v5293
        %5384 = vmatpush.bf16.msra.mxu0 %v5289
        %5385 = vmatmul.bf16.gmra.mxu0 %v5148
        %v5386 = vpop.f32.mrf.mxu0
        %v5387 = vadd.f32 %v5185, %v5386
        %v5388 = vpop.f32.mrf.mxu0
        %5389 = vdwg.mxu0
        %5390 = vmatpush.bf16.msra.mxu0 %v5318
        %5391 = vmatpush.bf16.msra.mxu0 %v5314
        %5392 = vmatpush.bf16.msra.mxu0 %v5310
        %5393 = vmatpush.bf16.msra.mxu0 %v5306
        %5394 = vmatpush.bf16.msra.mxu0 %v5302
        %5395 = vmatpush.bf16.msra.mxu0 %v5298
        %5396 = vmatpush.bf16.msra.mxu0 %v5294
        %5397 = vmatpush.bf16.msra.mxu0 %v5290
        %5398 = vmatmul.bf16.gmra.mxu0 %v5148
        %v5399 = vpop.f32.mrf.mxu0
        %v5400 = vadd.f32 %v5186, %v5399
        %v5401 = vpop.f32.mrf.mxu0
        %5402 = vdwg.mxu0
        %v5403 = vmax.f32 %v5361, 0.0
        %v5404 = vmax.f32 %v5374, 0.0
        %v5405 = vmax.f32 %v5387, 0.0
        %v5406 = vmax.f32 %v5400, 0.0
        %v5407 = vpack.c.bf16 %v5403, %v5403
        %v5408 = vpack.c.bf16 %v5404, %v5404
        %v5409 = vpack.c.bf16 %v5405, %v5405
        %v5410 = vpack.c.bf16 %v5406, %v5406
        %v5411 = vld [vmem:[#allocation2] sm:$0xf]
        %v5412 = vld [vmem:[#allocation2 + $0x4] sm:$0xf]
        %v5413 = vld [vmem:[#allocation2 + $0x8] sm:$0xf]
        %v5414 = vld [vmem:[#allocation2 + $0xc] sm:$0xf]
        %v5415 = vld [vmem:[#allocation2 + $0x10] sm:$0xf]
        %v5416 = vld [vmem:[#allocation2 + $0x14] sm:$0xf]
        %v5417 = vld [vmem:[#allocation2 + $0x18] sm:$0xf]
        %v5418 = vld [vmem:[#allocation2 + $0x1c] sm:$0xf]
        %v5419 = vld [vmem:[#allocation2 + $0x20] sm:$0xf]
        %v5420 = vld [vmem:[#allocation2 + $0x24] sm:$0xf]
        %v5421 = vld [vmem:[#allocation2 + $0x28] sm:$0xf]
        %v5422 = vld [vmem:[#allocation2 + $0x2c] sm:$0xf]
        %v5423 = vld [vmem:[#allocation2 + $0x30] sm:$0xf]
        %v5424 = vld [vmem:[#allocation2 + $0x34] sm:$0xf]
        %v5425 = vld [vmem:[#allocation2 + $0x38] sm:$0xf]
        %v5426 = vld [vmem:[#allocation2 + $0x3c] sm:$0xf]
        %v5427 = vld [vmem:[#allocation2 + $0x40] sm:$0xf]
        %v5428 = vld [vmem:[#allocation2 + $0x44] sm:$0xf]
        %v5429 = vld [vmem:[#allocation2 + $0x48] sm:$0xf]
        %v5430 = vld [vmem:[#allocation2 + $0x4c] sm:$0xf]
        %v5431 = vld [vmem:[#allocation2 + $0x50] sm:$0xf]
        %v5432 = vld [vmem:[#allocation2 + $0x54] sm:$0xf]
        %v5433 = vld [vmem:[#allocation2 + $0x58] sm:$0xf]
        %v5434 = vld [vmem:[#allocation2 + $0x5c] sm:$0xf]
        %v5435 = vld [vmem:[#allocation2 + $0x60] sm:$0xf]
        %v5436 = vld [vmem:[#allocation2 + $0x64] sm:$0xf]
        %v5437 = vld [vmem:[#allocation2 + $0x68] sm:$0xf]
        %v5438 = vld [vmem:[#allocation2 + $0x6c] sm:$0xf]
        %v5439 = vld [vmem:[#allocation2 + $0x70] sm:$0xf]
        %v5440 = vld [vmem:[#allocation2 + $0x74] sm:$0xf]
        %v5441 = vld [vmem:[#allocation2 + $0x78] sm:$0xf]
        %v5442 = vld [vmem:[#allocation2 + $0x7c] sm:$0xf]
        %v5443 = vld [vmem:[#allocation2 + $0x80] sm:$0xf]
        %v5444 = vld [vmem:[#allocation2 + $0x84] sm:$0xf]
        %v5445 = vld [vmem:[#allocation2 + $0x88] sm:$0xf]
        %v5446 = vld [vmem:[#allocation2 + $0x8c] sm:$0xf]
        %v5447 = vld [vmem:[#allocation2 + $0x90] sm:$0xf]
        %v5448 = vld [vmem:[#allocation2 + $0x94] sm:$0xf]
        %v5449 = vld [vmem:[#allocation2 + $0x98] sm:$0xf]
        %v5450 = vld [vmem:[#allocation2 + $0x9c] sm:$0xf]
        %v5451 = vld [vmem:[#allocation2 + $0xa0] sm:$0xf]
        %v5452 = vld [vmem:[#allocation2 + $0xa4] sm:$0xf]
        %v5453 = vld [vmem:[#allocation2 + $0xa8] sm:$0xf]
        %v5454 = vld [vmem:[#allocation2 + $0xac] sm:$0xf]
        %v5455 = vld [vmem:[#allocation2 + $0xb0] sm:$0xf]
        %v5456 = vld [vmem:[#allocation2 + $0xb4] sm:$0xf]
        %v5457 = vld [vmem:[#allocation2 + $0xb8] sm:$0xf]
        %v5458 = vld [vmem:[#allocation2 + $0xbc] sm:$0xf]
        %v5459 = vld [vmem:[#allocation2 + $0xc0] sm:$0xf]
        %v5460 = vld [vmem:[#allocation2 + $0xc4] sm:$0xf]
        %v5461 = vld [vmem:[#allocation2 + $0xc8] sm:$0xf]
        %v5462 = vld [vmem:[#allocation2 + $0xcc] sm:$0xf]
        %v5463 = vld [vmem:[#allocation2 + $0xd0] sm:$0xf]
        %v5464 = vld [vmem:[#allocation2 + $0xd4] sm:$0xf]
        %v5465 = vld [vmem:[#allocation2 + $0xd8] sm:$0xf]
        %v5466 = vld [vmem:[#allocation2 + $0xdc] sm:$0xf]
        %v5467 = vld [vmem:[#allocation2 + $0xe0] sm:$0xf]
        %v5468 = vld [vmem:[#allocation2 + $0xe4] sm:$0xf]
        %v5469 = vld [vmem:[#allocation2 + $0xe8] sm:$0xf]
        %v5470 = vld [vmem:[#allocation2 + $0xec] sm:$0xf]
        %v5471 = vld [vmem:[#allocation2 + $0xf0] sm:$0xf]
        %v5472 = vld [vmem:[#allocation2 + $0xf4] sm:$0xf]
        %v5473 = vld [vmem:[#allocation2 + $0xf8] sm:$0xf]
        %v5474 = vld [vmem:[#allocation2 + $0xfc] sm:$0xf]
        %v5475 = vld [vmem:[%s14] sm:$0x1]
        %v5477 = vperm.slane %v5475, 0
        %v5543 = vunpack.c.l.b16 %v5411
        %v5544 = vunpack.c.l.b16 %v5412
        %v5545 = vunpack.c.l.b16 %v5413
        %v5546 = vunpack.c.l.b16 %v5414
        %v5547 = vunpack.c.l.b16 %v5415
        %v5548 = vunpack.c.l.b16 %v5416
        %v5549 = vunpack.c.l.b16 %v5417
        %v5550 = vunpack.c.l.b16 %v5418
        %v5551 = vunpack.c.l.b16 %v5419
        %v5552 = vunpack.c.l.b16 %v5420
        %v5553 = vunpack.c.l.b16 %v5421
        %v5554 = vunpack.c.l.b16 %v5422
        %v5555 = vunpack.c.l.b16 %v5423
        %v5556 = vunpack.c.l.b16 %v5424
        %v5557 = vunpack.c.l.b16 %v5425
        %v5558 = vunpack.c.l.b16 %v5426
        %v5559 = vunpack.c.l.b16 %v5427
        %v5560 = vunpack.c.l.b16 %v5428
        %v5561 = vunpack.c.l.b16 %v5429
        %v5562 = vunpack.c.l.b16 %v5430
        %v5563 = vunpack.c.l.b16 %v5431
        %v5564 = vunpack.c.l.b16 %v5432
        %v5565 = vunpack.c.l.b16 %v5433
        %v5566 = vunpack.c.l.b16 %v5434
        %v5567 = vunpack.c.l.b16 %v5435
        %v5568 = vunpack.c.l.b16 %v5436
        %v5569 = vunpack.c.l.b16 %v5437
        %v5570 = vunpack.c.l.b16 %v5438
        %v5571 = vunpack.c.l.b16 %v5439
        %v5572 = vunpack.c.l.b16 %v5440
        %v5573 = vunpack.c.l.b16 %v5441
        %v5574 = vunpack.c.l.b16 %v5442
        %v5575 = vunpack.c.l.b16 %v5443
        %v5576 = vunpack.c.l.b16 %v5444
        %v5577 = vunpack.c.l.b16 %v5445
        %v5578 = vunpack.c.l.b16 %v5446
        %v5579 = vunpack.c.l.b16 %v5447
        %v5580 = vunpack.c.l.b16 %v5448
        %v5581 = vunpack.c.l.b16 %v5449
        %v5582 = vunpack.c.l.b16 %v5450
        %v5583 = vunpack.c.l.b16 %v5451
        %v5584 = vunpack.c.l.b16 %v5452
        %v5585 = vunpack.c.l.b16 %v5453
        %v5586 = vunpack.c.l.b16 %v5454
        %v5587 = vunpack.c.l.b16 %v5455
        %v5588 = vunpack.c.l.b16 %v5456
        %v5589 = vunpack.c.l.b16 %v5457
        %v5590 = vunpack.c.l.b16 %v5458
        %v5591 = vunpack.c.l.b16 %v5459
        %v5592 = vunpack.c.l.b16 %v5460
        %v5593 = vunpack.c.l.b16 %v5461
        %v5594 = vunpack.c.l.b16 %v5462
        %v5595 = vunpack.c.l.b16 %v5463
        %v5596 = vunpack.c.l.b16 %v5464
        %v5597 = vunpack.c.l.b16 %v5465
        %v5598 = vunpack.c.l.b16 %v5466
        %v5599 = vunpack.c.l.b16 %v5467
        %v5600 = vunpack.c.l.b16 %v5468
        %v5601 = vunpack.c.l.b16 %v5469
        %v5602 = vunpack.c.l.b16 %v5470
        %v5603 = vunpack.c.l.b16 %v5471
        %v5604 = vunpack.c.l.b16 %v5472
        %v5605 = vunpack.c.l.b16 %v5473
        %v5606 = vunpack.c.l.b16 %v5474
        %v5607 = vpack.c.b16 %v5544, %v5543
        %v5608 = vpack.c.b16 %v5546, %v5545
        %v5609 = vpack.c.b16 %v5548, %v5547
        %v5610 = vpack.c.b16 %v5550, %v5549
        %v5611 = vpack.c.b16 %v5552, %v5551
        %v5612 = vpack.c.b16 %v5554, %v5553
        %v5613 = vpack.c.b16 %v5556, %v5555
        %v5614 = vpack.c.b16 %v5558, %v5557
        %v5615 = vpack.c.b16 %v5560, %v5559
        %v5616 = vpack.c.b16 %v5562, %v5561
        %v5617 = vpack.c.b16 %v5564, %v5563
        %v5618 = vpack.c.b16 %v5566, %v5565
        %v5619 = vpack.c.b16 %v5568, %v5567
        %v5620 = vpack.c.b16 %v5570, %v5569
        %v5621 = vpack.c.b16 %v5572, %v5571
        %v5622 = vpack.c.b16 %v5574, %v5573
        %v5623 = vpack.c.b16 %v5576, %v5575
        %v5624 = vpack.c.b16 %v5578, %v5577
        %v5625 = vpack.c.b16 %v5580, %v5579
        %v5626 = vpack.c.b16 %v5582, %v5581
        %v5627 = vpack.c.b16 %v5584, %v5583
        %v5628 = vpack.c.b16 %v5586, %v5585
        %v5629 = vpack.c.b16 %v5588, %v5587
        %v5630 = vpack.c.b16 %v5590, %v5589
        %v5631 = vpack.c.b16 %v5592, %v5591
        %v5632 = vpack.c.b16 %v5594, %v5593
        %v5633 = vpack.c.b16 %v5596, %v5595
        %v5634 = vpack.c.b16 %v5598, %v5597
        %v5635 = vpack.c.b16 %v5600, %v5599
        %v5636 = vpack.c.b16 %v5602, %v5601
        %v5637 = vpack.c.b16 %v5604, %v5603
        %v5638 = vpack.c.b16 %v5606, %v5605
        %5671 = vmatpush.bf16.msra.mxu0 %v5614
        %5672 = vmatpush.bf16.msra.mxu0 %v5613
        %5673 = vmatpush.bf16.msra.mxu0 %v5612
        %5674 = vmatpush.bf16.msra.mxu0 %v5611
        %5675 = vmatpush.bf16.msra.mxu0 %v5610
        %5676 = vmatpush.bf16.msra.mxu0 %v5609
        %5677 = vmatpush.bf16.msra.mxu0 %v5608
        %5678 = vmatpush.bf16.msra.mxu0 %v5607
        %5679 = vmatmul.bf16.gmra.mxu0 %v5407
        %v5680 = vpop.f32.mrf.mxu0
        %v5681 = vadd.f32 %v5477, %v5680
        %v5682 = vpop.f32.mrf.mxu0
        %5683 = vdwg.mxu0
        %5684 = vmatpush.bf16.msra.mxu0 %v5622
        %5685 = vmatpush.bf16.msra.mxu0 %v5621
        %5686 = vmatpush.bf16.msra.mxu0 %v5620
        %5687 = vmatpush.bf16.msra.mxu0 %v5619
        %5688 = vmatpush.bf16.msra.mxu0 %v5618
        %5689 = vmatpush.bf16.msra.mxu0 %v5617
        %5690 = vmatpush.bf16.msra.mxu0 %v5616
        %5691 = vmatpush.bf16.msra.mxu0 %v5615
        %5692 = vmatmul.bf16.gmra.mxu0 %v5408
        %v5693 = vpop.f32.mrf.mxu0
        %v5694 = vadd.f32 %v5681, %v5693
        %v5695 = vpop.f32.mrf.mxu0
        %5696 = vdwg.mxu0
        %5697 = vmatpush.bf16.msra.mxu0 %v5630
        %5698 = vmatpush.bf16.msra.mxu0 %v5629
        %5699 = vmatpush.bf16.msra.mxu0 %v5628
        %5700 = vmatpush.bf16.msra.mxu0 %v5627
        %5701 = vmatpush.bf16.msra.mxu0 %v5626
        %5702 = vmatpush.bf16.msra.mxu0 %v5625
        %5703 = vmatpush.bf16.msra.mxu0 %v5624
        %5704 = vmatpush.bf16.msra.mxu0 %v5623
        %5705 = vmatmul.bf16.gmra.mxu0 %v5409
        %v5706 = vpop.f32.mrf.mxu0
        %v5707 = vadd.f32 %v5694, %v5706
        %v5708 = vpop.f32.mrf.mxu0
        %5709 = vdwg.mxu0
        %5710 = vmatpush.bf16.msra.mxu0 %v5638
        %5711 = vmatpush.bf16.msra.mxu0 %v5637
        %5712 = vmatpush.bf16.msra.mxu0 %v5636
        %5713 = vmatpush.bf16.msra.mxu0 %v5635
        %5714 = vmatpush.bf16.msra.mxu0 %v5634
        %5715 = vmatpush.bf16.msra.mxu0 %v5633
        %5716 = vmatpush.bf16.msra.mxu0 %v5632
        %5717 = vmatpush.bf16.msra.mxu0 %v5631
        %5718 = vmatmul.bf16.gmra.mxu0 %v5410
        %v5719 = vpop.f32.mrf.mxu0
        %v5720 = vadd.f32 %v5707, %v5719
        %v5721 = vpop.f32.mrf.mxu0
        %5722 = vdwg.mxu0
        %5723 = vst [vmem:[%s505] sm:$0xff] %v5720
        %s5724 = sand.u32 %s358, 1
        %s5725 = scalar_lea.sflag [#allocation4], %s5724
        %s5726 = sand.u32 %s358, 1
        %s5727 = smul.addr %s5726, 8
        %s5728 = scalar_lea.vmem [#allocation5], %s5727
        // Predicated region
        $region85: #{tpu_custom_call.1} parent=79 // pred_check
          %p5729 = pneg %p368
        $region86: #{tpu_custom_call.1} parent=79 // pred_check_branch
          %5731 = sbr.rel (%p5729) target = $region88
        $region87: #{tpu_custom_call.1} parent=79 // pred_region
          %5733 = vsyncadd %s5725, 0
          %s5734 = smul.addr %s30, 8
          %s5735 = scalar_lea.hbm %s15, %s5734
          %s5737 = sshll.u32 %s5728, 4
          %s5738 = int_to_ptr.vmem [resolvable:$true] %s5737
          %s5739 = sshll.u32 %s5735, 4
          %s5740 = int_to_ptr.hbm [resolvable:$true] %s5739
          %5742 = dma.vmem_to_hbm [thread:$0]  %s5738, 128, %s5740, %s5725
        $region88: #{tpu_custom_call.1} parent=79 // pred_fallthru
          _
      $region80: #{tpu_custom_call.1} parent=5 // pred_fallthru
        _
      %p5743 = scmp.le.s32.totalorder 2, %s25
      // Predicated region
      $region89: #{tpu_custom_call.1} parent=5 // pred_check
        %p5744 = pneg %p5743
      $region90: #{tpu_custom_call.1} parent=5 // pred_check_branch
        %5746 = sbr.rel (%p5744) target = $region92
      $region91: #{tpu_custom_call.1} parent=5 // pred_region
        %s5747 = ssub.s32 %s25, 2
        // Predicated region
        $region93: #{tpu_custom_call.1} parent=91 // pred_check
          %p5748 = pneg %p374
        $region94: #{tpu_custom_call.1} parent=91 // pred_check_branch
          %5750 = sbr.rel (%p5748) target = $region96
        $region95: #{tpu_custom_call.1} parent=91 // pred_region
          %s5751 = sand.u32 %s359, 1
          %s5752 = scalar_lea.sflag [#allocation4], %s5751
          %s5753 = sand.u32 %s359, 1
          %s5754 = smul.addr %s5753, 8
          %s5755 = scalar_lea.vmem [#allocation5], %s5754
          %5757 = dma.done %s5752, 128
        $region96: #{tpu_custom_call.1} parent=91 // pred_fallthru
          _
      $region92: #{tpu_custom_call.1} parent=5 // pred_fallthru
        _
    $region6: #{tpu_custom_call.1} parent=1 // loop_footer
      %s29 = sadd.s32 1, %s25
    $region7: #{tpu_custom_call.1} parent=1 // loop_footer_branch
      %24 = sbr.rel target = $region3
    $region8: #{tpu_custom_call.1} parent=1 // loop_exit
      _
    %5758 = vsyncpa [#allocation3], 1
    %s5759 = scalar_lea.sflag [#allocation3], 1
    %5760 = vsyncpa %s5759, 1
    %5761 = vsyncpa [#allocation4], 1
    %s5762 = scalar_lea.sflag [#allocation4], 1
    %5763 = vsyncpa %s5762, 1

</llo_original>
